<compile_context>
chip_gen: v7x
topology: tpu7x:2x2x1
jax: 0.10.0
libtpu: 0.0.40
codegen_flags: <defaults>
</compile_context>

<pallas_src>
import math

import jax
import jax.numpy as jnp
from jax import lax
from jax.experimental import pallas as pl
from jax.experimental.pallas import tpu as pltpu

# ---------------------------------------------------------------- hyperparams
B, L, OL = 2, 16, 8            # batch, input seq len, output_length
E, NH, HID, NL = 32, 4, 64, 2  # ninp, nhead, nhid, nlayers
HD = E // NH                   # head dim
N = B * L                      # flattened "sequence" length
NTOKEN = 1
FUSION = 3                     # ntoken + hist(1) + IDM(1)
E3, E4 = 3 * E, 4 * E          # fused QKV width / QKV+O width (=96 / 128)
# IDM parameters (s_0, T, a, b, v_d, dt)
S0, T_HW, A_P, B_P, V_D, DT = 2.0, 1.5, 1.0, 2.0, 30.0, 0.1
EPS = 1e-5


def _layer_norm(x, g, b):
    mu = jnp.mean(x, axis=-1, keepdims=True)
    xc = x - mu
    var = jnp.mean(xc * xc, axis=-1, keepdims=True)
    return xc * lax.rsqrt(var + EPS) * g + b


# ------------------------------------------------------------------- kernel
def transformer_kernel(xc_ref, xb_ref, idm_ref, mask_ref, misc_ref,
                       wqkvo_ref, w1_ref, w2_ref, vecs_ref, out_ref):
    f32 = jnp.float32

    misc = misc_ref[...]                       # (8, E) packed head params
    emb_w = misc[0:1, :]                       # (1, E)
    emb_b = misc[1:2, :]
    dec_w = misc[2:3, :]
    sc = misc[3:4, :]                          # scalars row
    dec_b = sc[:, 0:1]
    fw_out, fw_hist, fw_idm = sc[:, 1:2], sc[:, 2:3], sc[:, 3:4]
    fus_b = sc[:, 4:5]

    # --- embedding Linear(1 -> E) on the flattened (B*L, 1) feature-0 trace
    src = xc_ref[...] * emb_w + emb_b          # (N, E)

    mask = mask_ref[...]                       # (N, N) block-diag causal mask
    scale = 1.0 / math.sqrt(HD)

    # --- nlayers post-norm TransformerEncoderLayers (dropout = identity) ---
    for l in range(NL):
        wqkvo = wqkvo_ref[l]                   # (E, 4E): [Wq | Wk | Wv | Wo]
        vl = vecs_ref[l]                       # (8, 3E) bias / LN slab
        bqkv = vl[0:1, :]                      # (1, 3E)
        bo = vl[1:2, 0:E]
        b1 = vl[2:3, 0:HID]
        b2 = vl[3:4, 0:E]
        ln1g, ln1b = vl[4:5, 0:E], vl[5:6, 0:E]
        ln2g, ln2b = vl[6:7, 0:E], vl[7:8, 0:E]

        # fused QKV(+O, unused cols) projection: one (N,E)@(E,4E) matmul
        qkvo = jnp.dot(src, wqkvo, preferred_element_type=f32)   # (N, 4E)
        qkv = qkvo[:, 0:E3] + bqkv                               # (N, 3E)

        heads = []
        for h in range(NH):                    # static lane slices per head
            q = qkv[:, h * HD:(h + 1) * HD]
            k = qkv[:, E + h * HD:E + (h + 1) * HD]
            v = qkv[:, 2 * E + h * HD:2 * E + (h + 1) * HD]
            s = lax.dot_general(q, k, (((1,), (1,)), ((), ())),
                                preferred_element_type=f32) * scale + mask
            s = s - jnp.max(s, axis=-1, keepdims=True)
            p = jnp.exp(s)
            p = p * pl.reciprocal(jnp.sum(p, axis=-1, keepdims=True),
                                  approx=True)
            heads.append(jnp.dot(p, v, preferred_element_type=f32))  # (N, HD)

        attn = jnp.concatenate(heads, axis=-1)                       # (N, E)
        attn = jnp.dot(attn, wqkvo[:, E3:E4],
                       preferred_element_type=f32) + bo              # (N, E)
        src = _layer_norm(src + attn, ln1g, ln1b)

        h1 = jnp.maximum(
            jnp.dot(src, w1_ref[l], preferred_element_type=f32) + b1, 0.0)
        h2 = jnp.dot(h1, w2_ref[l], preferred_element_type=f32) + b2
        src = _layer_norm(src + h2, ln2g, ln2b)

    # --- decoder Linear(E -> 1) on each batch's last time step (the same
    #     value is repeated output_length times in the reference) ---
    enc_last = jnp.concatenate(
        [src[b * L + L - 1:b * L + L, :] for b in range(B)], axis=0)  # (B, E)
    dec_out = jnp.sum(enc_last * dec_w, axis=-1, keepdims=True) + dec_b  # (B,1)

    # --- hist: linear extrapolation of feature 0 ---
    x_bl = xb_ref[...]                                     # (B, L)
    v_last = x_bl[:, L - 1:L]
    v_prev = x_bl[:, L - 1 - OL:L - OL]
    dv = (v_last - v_prev) * (1.0 / OL)
    steps = (lax.broadcasted_iota(jnp.int32, (B, OL), 1) + 1).astype(f32)
    hist = v_last + dv * steps                             # (B, OL)

    idm = idm_ref[...]                                     # (B, OL)

    # --- fusion Linear(3 -> 1) over [decoder, hist, idm] ---
    out_ref[...] = dec_out * fw_out + hist * fw_hist + idm * fw_idm + fus_b


# ---------------------------------------------------------------- IDM (glue)
def model_idm(inputs_last, his_labels):
    """Plain-JAX reproduction of model_IDM (returns y_pred (B, OL, 1)).

    Reproduces the reference code exactly, including the quirk where the first
    row of y_pred uses the *last* batch element's clamped velocity."""
    y = inputs_last[:, 0]
    v = inputs_last[:, 1]
    s = inputs_last[:, 2]
    dvv = inputs_last[:, 3]
    sqrt_ab = math.sqrt(A_P * B_P)
    s_x = S0 + jnp.maximum(0.0, v * T_HW + v * dvv / (2.0 * sqrt_ab))
    a_f = A_P * (1.0 - (v / V_D) ** 4 - (s_x / s) ** 2)
    v0 = v + a_f * DT
    v0 = jnp.where(v0 <= 0.0, 0.0, v0)
    y0 = y + v0[-1] * DT          # quirk in reference: index `i` leaks from loop

    def step(carry, hl_j):
        v_prev, y_prev = carry
        dv_j = hl_j[:, 1] - v_prev
        s_j = hl_j[:, 0] - y_prev
        sx = S0 + jnp.maximum(0.0, v_prev * T_HW + v_prev * dv_j / (2.0 * sqrt_ab))
        acc = A_P * (1.0 - (v_prev / V_D) ** 4 - (sx / s_j) ** 2)
        v2 = v_prev + acc * DT
        v2 = jnp.where(v2 <= 0.0, 0.0, v2)
        y2 = y_prev + v2 * DT
        return (v2, y2), y2

    hl = jnp.transpose(his_labels[:, :OL - 1, :2], (1, 0, 2))   # (OL-1, B, 2)
    _, ys = lax.scan(step, (v0, y0), hl)                        # (OL-1, B)
    y_pred = jnp.concatenate([y0[None, :], ys], axis=0)         # (OL, B)
    return jnp.transpose(y_pred)[:, :, None].astype(jnp.float32)


# ------------------------------------------------------------ param packing
def _pack_params(p):
    """Pack the 22 small parameter tensors into 5 lane-dense slabs."""
    f32 = jnp.float32
    # (NL, NH, E, HD) -> (NL, E, NH*HD) head-major output columns
    wq = jnp.transpose(p["wq"], (0, 2, 1, 3)).reshape(NL, E, E)
    wk = jnp.transpose(p["wk"], (0, 2, 1, 3)).reshape(NL, E, E)
    wv = jnp.transpose(p["wv"], (0, 2, 1, 3)).reshape(NL, E, E)
    wo = p["wo"].reshape(NL, E, E)             # rows = concat-head input dim
    w_qkvo = jnp.concatenate([wq, wk, wv, wo], axis=-1)          # (NL, E, 4E)

    bqkv = jnp.concatenate([p["bq"].reshape(NL, E), p["bk"].reshape(NL, E),
                            p["bv"].reshape(NL, E)], axis=-1)    # (NL, 3E)

    def row(v):
        v = v.reshape(NL, -1)
        return jnp.pad(v, ((0, 0), (0, E3 - v.shape[1])))

    vecs = jnp.stack([bqkv, row(p["bo"]), row(p["b1"]), row(p["b2"]),
                      row(p["ln1g"]), row(p["ln1b"]),
                      row(p["ln2g"]), row(p["ln2b"])], axis=1)   # (NL, 8, 3E)

    scal = jnp.zeros((1, E), f32)
    scal = scal.at[0, 0].set(p["dec_b"][0, 0])
    scal = scal.at[0, 1:4].set(p["fus_w"][0])
    scal = scal.at[0, 4].set(p["fus_b"][0, 0])
    misc = jnp.concatenate([p["emb_w"], p["emb_b"], p["dec_w"], scal,
                            jnp.zeros((4, E), f32)], axis=0)     # (8, E)
    return w_qkvo, p["w1"], p["w2"], vecs, misc


# ---------------------------------------------------------------- wrapper
@jax.jit
def run_model(inputs, his_labels, params):
    x_bl = inputs[:, :, 0].astype(jnp.float32)              # (B, L)
    x_col = x_bl.reshape(N, 1)                               # (B*L, 1)
    idm = model_idm(inputs[:, -1, :], his_labels)[:, :, 0]   # (B, OL)

    # block-diagonal causal additive mask over the flattened (B*L) sequence
    idx = jnp.arange(N)
    r, c = idx[:, None], idx[None, :]
    mask = jnp.where((r // L == c // L) & (c <= r),
                     0.0, -1e30).astype(jnp.float32)          # (N, N)

    w_qkvo, w1, w2, vecs, misc = _pack_params(params)

    vmem = pltpu.MemorySpace.VMEM
    out = pl.pallas_call(
        transformer_kernel,
        out_shape=jax.ShapeDtypeStruct((B, OL), jnp.float32),
        in_specs=[pl.BlockSpec(memory_space=vmem) for _ in range(9)],
        out_specs=pl.BlockSpec(memory_space=vmem),
    )(x_col, x_bl, idm, mask, misc, w_qkvo, w1, w2, vecs)
    return out[:, :, None]                                    # (B, OL, 1)


# ---------------------------------------------------------------- params
def init_params(key):
    ks = jax.random.split(key, 20)

    def n(k, shape, scale=0.1):
        return (scale * jax.random.normal(k, shape)).astype(jnp.float32)

    # Weights stored pre-transposed (in -> out layout) so the kernel does x @ W.
    return {
        "emb_w": n(ks[0], (1, E)),
        "emb_b": n(ks[1], (1, E), 0.01),
        "wq": n(ks[2], (NL, NH, E, HD)),
        "wk": n(ks[3], (NL, NH, E, HD)),
        "wv": n(ks[4], (NL, NH, E, HD)),
        "bq": n(ks[5], (NL, NH, 1, HD), 0.01),
        "bk": n(ks[6], (NL, NH, 1, HD), 0.01),
        "bv": n(ks[7], (NL, NH, 1, HD), 0.01),
        "wo": n(ks[8], (NL, NH, HD, E)),
        "bo": n(ks[9], (NL, 1, E), 0.01),
        "w1": n(ks[10], (NL, E, HID)),
        "b1": n(ks[11], (NL, 1, HID), 0.01),
        "w2": n(ks[12], (NL, HID, E)),
        "b2": n(ks[13], (NL, 1, E), 0.01),
        "ln1g": jnp.ones((NL, 1, E), jnp.float32),
        "ln1b": jnp.zeros((NL, 1, E), jnp.float32),
        "ln2g": jnp.ones((NL, 1, E), jnp.float32),
        "ln2b": jnp.zeros((NL, 1, E), jnp.float32),
        "dec_w": n(ks[14], (1, E)),
        "dec_b": jnp.zeros((1, 1), jnp.float32),
        "fus_w": n(ks[15], (1, FUSION), 0.5),
        "fus_b": n(ks[16], (1, 1), 0.1),
    }


if __name__ == "__main__":
    key = jax.random.PRNGKey(0)
    kp, ki, kh = jax.random.split(key, 3)
    params = init_params(kp)

    # inputs: (B, L, 4) with features [y, v, s, delta_v]
    base = jnp.stack([
        jnp.full((B, L), 10.0),   # feature 0 (fed to transformer + hist)
        jnp.full((B, L), 10.0),   # v
        jnp.full((B, L), 20.0),   # s (gap)
        jnp.full((B, L), 0.5),    # delta_v
    ], axis=-1)
    inputs = (base + 0.1 * jax.random.normal(ki, (B, L, 4))).astype(jnp.float32)

    # his_labels: (B, OL, 2) = [lead position, lead speed]
    j_idx = jnp.arange(OL, dtype=jnp.float32)
    lead_pos = 40.0 + 1.2 * j_idx
    lead_vel = jnp.full((OL,), 12.0)
    his_labels = jnp.stack([jnp.broadcast_to(lead_pos, (B, OL)),
                            jnp.broadcast_to(lead_vel, (B, OL))], axis=-1)
    his_labels = (his_labels
                  + 0.05 * jax.random.normal(kh, (B, OL, 2))).astype(jnp.float32)

    out = run_model(inputs, his_labels, params)
    out = jax.block_until_ready(out)
    assert out.shape == (B, OL, NTOKEN), out.shape
    assert bool(jnp.all(jnp.isfinite(out)))
    print("KERNEL_OK")
</pallas_src>

<mosaic_0001>
module attributes {stable_mosaic.version = 11 : i64} {
  func.func @transformer_kernel(%arg0: memref<32x1xf32, #tpu.memory_space<vmem>>, %arg1: memref<2x16xf32, #tpu.memory_space<vmem>>, %arg2: memref<2x8xf32, #tpu.memory_space<vmem>>, %arg3: memref<32x32xf32, #tpu.memory_space<vmem>>, %arg4: memref<8x32xf32, #tpu.memory_space<vmem>>, %arg5: memref<2x32x128xf32, #tpu.memory_space<vmem>>, %arg6: memref<2x32x64xf32, #tpu.memory_space<vmem>>, %arg7: memref<2x64x32xf32, #tpu.memory_space<vmem>>, %arg8: memref<2x8x96xf32, #tpu.memory_space<vmem>>, %arg9: memref<2x8xf32, #tpu.memory_space<vmem>>) attributes {dimension_semantics = [], scalar_prefetch = 0 : i64, scratch_operands = 0 : i64, tpu.core_type = #tpu.core_type<tc>} {
    %c0 = arith.constant 0 : index
    %c0_0 = arith.constant 0 : index
    %0 = vector.load %arg4[%c0, %c0_0] : memref<8x32xf32, #tpu.memory_space<vmem>>, vector<8x32xf32>
    %1 = vector.extract_strided_slice %0 {offsets = [0, 0], sizes = [1, 32], strides = [1, 1]} : vector<8x32xf32> to vector<1x32xf32>
    %2 = vector.extract_strided_slice %0 {offsets = [1, 0], sizes = [1, 32], strides = [1, 1]} : vector<8x32xf32> to vector<1x32xf32>
    %3 = vector.extract_strided_slice %0 {offsets = [2, 0], sizes = [1, 32], strides = [1, 1]} : vector<8x32xf32> to vector<1x32xf32>
    %4 = vector.extract_strided_slice %0 {offsets = [3, 0], sizes = [1, 32], strides = [1, 1]} : vector<8x32xf32> to vector<1x32xf32>
    %5 = vector.extract_strided_slice %4 {offsets = [0, 0], sizes = [1, 1], strides = [1, 1]} : vector<1x32xf32> to vector<1x1xf32>
    %6 = vector.extract_strided_slice %4 {offsets = [0, 1], sizes = [1, 1], strides = [1, 1]} : vector<1x32xf32> to vector<1x1xf32>
    %7 = vector.extract_strided_slice %4 {offsets = [0, 2], sizes = [1, 1], strides = [1, 1]} : vector<1x32xf32> to vector<1x1xf32>
    %8 = vector.extract_strided_slice %4 {offsets = [0, 3], sizes = [1, 1], strides = [1, 1]} : vector<1x32xf32> to vector<1x1xf32>
    %9 = vector.extract_strided_slice %4 {offsets = [0, 4], sizes = [1, 1], strides = [1, 1]} : vector<1x32xf32> to vector<1x1xf32>
    %c0_1 = arith.constant 0 : index
    %c0_2 = arith.constant 0 : index
    %10 = vector.load %arg0[%c0_1, %c0_2] : memref<32x1xf32, #tpu.memory_space<vmem>>, vector<32x1xf32>
    %11 = vector.broadcast %10 : vector<32x1xf32> to vector<32x32xf32>
    %12 = vector.broadcast %1 : vector<1x32xf32> to vector<32x32xf32>
    %13 = arith.mulf %11, %12 : vector<32x32xf32>
    %14 = vector.broadcast %2 : vector<1x32xf32> to vector<32x32xf32>
    %15 = arith.addf %13, %14 : vector<32x32xf32>
    %c0_3 = arith.constant 0 : index
    %c0_4 = arith.constant 0 : index
    %16 = vector.load %arg3[%c0_3, %c0_4] : memref<32x32xf32, #tpu.memory_space<vmem>>, vector<32x32xf32>
    %c0_5 = arith.constant 0 : index
    %c0_6 = arith.constant 0 : index
    %c0_7 = arith.constant 0 : index
    %17 = vector.load %arg5[%c0_5, %c0_6, %c0_7] : memref<2x32x128xf32, #tpu.memory_space<vmem>>, vector<1x32x128xf32>
    %18 = vector.shape_cast %17 : vector<1x32x128xf32> to vector<32x128xf32>
    %c0_8 = arith.constant 0 : index
    %c0_9 = arith.constant 0 : index
    %c0_10 = arith.constant 0 : index
    %19 = vector.load %arg8[%c0_8, %c0_9, %c0_10] : memref<2x8x96xf32, #tpu.memory_space<vmem>>, vector<1x8x96xf32>
    %20 = vector.shape_cast %19 : vector<1x8x96xf32> to vector<8x96xf32>
    %21 = vector.extract_strided_slice %20 {offsets = [0, 0], sizes = [1, 96], strides = [1, 1]} : vector<8x96xf32> to vector<1x96xf32>
    %22 = vector.extract_strided_slice %20 {offsets = [1, 0], sizes = [1, 32], strides = [1, 1]} : vector<8x96xf32> to vector<1x32xf32>
    %23 = vector.extract_strided_slice %20 {offsets = [2, 0], sizes = [1, 64], strides = [1, 1]} : vector<8x96xf32> to vector<1x64xf32>
    %24 = vector.extract_strided_slice %20 {offsets = [3, 0], sizes = [1, 32], strides = [1, 1]} : vector<8x96xf32> to vector<1x32xf32>
    %25 = vector.extract_strided_slice %20 {offsets = [4, 0], sizes = [1, 32], strides = [1, 1]} : vector<8x96xf32> to vector<1x32xf32>
    %26 = vector.extract_strided_slice %20 {offsets = [5, 0], sizes = [1, 32], strides = [1, 1]} : vector<8x96xf32> to vector<1x32xf32>
    %27 = vector.extract_strided_slice %20 {offsets = [6, 0], sizes = [1, 32], strides = [1, 1]} : vector<8x96xf32> to vector<1x32xf32>
    %28 = vector.extract_strided_slice %20 {offsets = [7, 0], sizes = [1, 32], strides = [1, 1]} : vector<8x96xf32> to vector<1x32xf32>
    %cst = arith.constant dense<0.000000e+00> : vector<32x128xf32>
    %29 = tpu.matmul %15, %18, %cst {dimension_numbers = #tpu.dot_dimension_numbers<[1], [0], [0], [1], [0, 0, 1, 1], [], []>} : vector<32x32xf32>, vector<32x128xf32>, vector<32x128xf32> -> vector<32x128xf32>
    %30 = vector.extract_strided_slice %29 {offsets = [0, 0], sizes = [32, 96], strides = [1, 1]} : vector<32x128xf32> to vector<32x96xf32>
    %31 = vector.broadcast %21 : vector<1x96xf32> to vector<32x96xf32>
    %32 = arith.addf %30, %31 : vector<32x96xf32>
    %33 = vector.extract_strided_slice %32 {offsets = [0, 0], sizes = [32, 8], strides = [1, 1]} : vector<32x96xf32> to vector<32x8xf32>
    %34 = vector.extract_strided_slice %32 {offsets = [0, 32], sizes = [32, 8], strides = [1, 1]} : vector<32x96xf32> to vector<32x8xf32>
    %35 = vector.extract_strided_slice %32 {offsets = [0, 64], sizes = [32, 8], strides = [1, 1]} : vector<32x96xf32> to vector<32x8xf32>
    %cst_11 = arith.constant dense<0.000000e+00> : vector<32x32xf32>
    %36 = tpu.matmul %33, %34, %cst_11 {dimension_numbers = #tpu.dot_dimension_numbers<[1], [1], [0], [0], [0, 0, 1, 0], [], []>} : vector<32x8xf32>, vector<32x8xf32>, vector<32x32xf32> -> vector<32x32xf32>
    %cst_12 = arith.constant 0.353553385 : f32
    %37 = vector.broadcast %cst_12 : f32 to vector<32x32xf32>
    %38 = arith.mulf %36, %37 : vector<32x32xf32>
    %39 = arith.addf %38, %16 : vector<32x32xf32>
    %cst_13 = arith.constant dense<0xFF800000> : vector<32xf32>
    %40 = vector.multi_reduction <maximumf>, %39, %cst_13 [1] : vector<32x32xf32> to vector<32xf32>
    %41 = vector.shape_cast %40 : vector<32xf32> to vector<32x1xf32>
    %42 = vector.broadcast %41 : vector<32x1xf32> to vector<32x32xf32>
    %43 = arith.subf %39, %42 : vector<32x32xf32>
    %44 = math.exp %43 : vector<32x32xf32>
    %cst_14 = arith.constant dense<0.000000e+00> : vector<32xf32>
    %45 = vector.multi_reduction <add>, %44, %cst_14 [1] : vector<32x32xf32> to vector<32xf32>
    %46 = vector.shape_cast %45 : vector<32xf32> to vector<32x1xf32>
    %47 = tpu.reciprocal %46 {approx = true} : vector<32x1xf32> -> vector<32x1xf32>
    %48 = vector.broadcast %47 : vector<32x1xf32> to vector<32x32xf32>
    %49 = arith.mulf %44, %48 : vector<32x32xf32>
    %cst_15 = arith.constant dense<0.000000e+00> : vector<32x8xf32>
    %50 = tpu.matmul %49, %35, %cst_15 {dimension_numbers = #tpu.dot_dimension_numbers<[1], [0], [0], [1], [0, 0, 1, 1], [], []>} : vector<32x32xf32>, vector<32x8xf32>, vector<32x8xf32> -> vector<32x8xf32>
    %51 = vector.extract_strided_slice %32 {offsets = [0, 8], sizes = [32, 8], strides = [1, 1]} : vector<32x96xf32> to vector<32x8xf32>
    %52 = vector.extract_strided_slice %32 {offsets = [0, 40], sizes = [32, 8], strides = [1, 1]} : vector<32x96xf32> to vector<32x8xf32>
    %53 = vector.extract_strided_slice %32 {offsets = [0, 72], sizes = [32, 8], strides = [1, 1]} : vector<32x96xf32> to vector<32x8xf32>
    %cst_16 = arith.constant dense<0.000000e+00> : vector<32x32xf32>
    %54 = tpu.matmul %51, %52, %cst_16 {dimension_numbers = #tpu.dot_dimension_numbers<[1], [1], [0], [0], [0, 0, 1, 0], [], []>} : vector<32x8xf32>, vector<32x8xf32>, vector<32x32xf32> -> vector<32x32xf32>
    %cst_17 = arith.constant 0.353553385 : f32
    %55 = vector.broadcast %cst_17 : f32 to vector<32x32xf32>
    %56 = arith.mulf %54, %55 : vector<32x32xf32>
    %57 = arith.addf %56, %16 : vector<32x32xf32>
    %cst_18 = arith.constant dense<0xFF800000> : vector<32xf32>
    %58 = vector.multi_reduction <maximumf>, %57, %cst_18 [1] : vector<32x32xf32> to vector<32xf32>
    %59 = vector.shape_cast %58 : vector<32xf32> to vector<32x1xf32>
    %60 = vector.broadcast %59 : vector<32x1xf32> to vector<32x32xf32>
    %61 = arith.subf %57, %60 : vector<32x32xf32>
    %62 = math.exp %61 : vector<32x32xf32>
    %cst_19 = arith.constant dense<0.000000e+00> : vector<32xf32>
    %63 = vector.multi_reduction <add>, %62, %cst_19 [1] : vector<32x32xf32> to vector<32xf32>
    %64 = vector.shape_cast %63 : vector<32xf32> to vector<32x1xf32>
    %65 = tpu.reciprocal %64 {approx = true} : vector<32x1xf32> -> vector<32x1xf32>
    %66 = vector.broadcast %65 : vector<32x1xf32> to vector<32x32xf32>
    %67 = arith.mulf %62, %66 : vector<32x32xf32>
    %cst_20 = arith.constant dense<0.000000e+00> : vector<32x8xf32>
    %68 = tpu.matmul %67, %53, %cst_20 {dimension_numbers = #tpu.dot_dimension_numbers<[1], [0], [0], [1], [0, 0, 1, 1], [], []>} : vector<32x32xf32>, vector<32x8xf32>, vector<32x8xf32> -> vector<32x8xf32>
    %69 = vector.extract_strided_slice %32 {offsets = [0, 16], sizes = [32, 8], strides = [1, 1]} : vector<32x96xf32> to vector<32x8xf32>
    %70 = vector.extract_strided_slice %32 {offsets = [0, 48], sizes = [32, 8], strides = [1, 1]} : vector<32x96xf32> to vector<32x8xf32>
    %71 = vector.extract_strided_slice %32 {offsets = [0, 80], sizes = [32, 8], strides = [1, 1]} : vector<32x96xf32> to vector<32x8xf32>
    %cst_21 = arith.constant dense<0.000000e+00> : vector<32x32xf32>
    %72 = tpu.matmul %69, %70, %cst_21 {dimension_numbers = #tpu.dot_dimension_numbers<[1], [1], [0], [0], [0, 0, 1, 0], [], []>} : vector<32x8xf32>, vector<32x8xf32>, vector<32x32xf32> -> vector<32x32xf32>
    %cst_22 = arith.constant 0.353553385 : f32
    %73 = vector.broadcast %cst_22 : f32 to vector<32x32xf32>
    %74 = arith.mulf %72, %73 : vector<32x32xf32>
    %75 = arith.addf %74, %16 : vector<32x32xf32>
    %cst_23 = arith.constant dense<0xFF800000> : vector<32xf32>
    %76 = vector.multi_reduction <maximumf>, %75, %cst_23 [1] : vector<32x32xf32> to vector<32xf32>
    %77 = vector.shape_cast %76 : vector<32xf32> to vector<32x1xf32>
    %78 = vector.broadcast %77 : vector<32x1xf32> to vector<32x32xf32>
    %79 = arith.subf %75, %78 : vector<32x32xf32>
    %80 = math.exp %79 : vector<32x32xf32>
    %cst_24 = arith.constant dense<0.000000e+00> : vector<32xf32>
    %81 = vector.multi_reduction <add>, %80, %cst_24 [1] : vector<32x32xf32> to vector<32xf32>
    %82 = vector.shape_cast %81 : vector<32xf32> to vector<32x1xf32>
    %83 = tpu.reciprocal %82 {approx = true} : vector<32x1xf32> -> vector<32x1xf32>
    %84 = vector.broadcast %83 : vector<32x1xf32> to vector<32x32xf32>
    %85 = arith.mulf %80, %84 : vector<32x32xf32>
    %cst_25 = arith.constant dense<0.000000e+00> : vector<32x8xf32>
    %86 = tpu.matmul %85, %71, %cst_25 {dimension_numbers = #tpu.dot_dimension_numbers<[1], [0], [0], [1], [0, 0, 1, 1], [], []>} : vector<32x32xf32>, vector<32x8xf32>, vector<32x8xf32> -> vector<32x8xf32>
    %87 = vector.extract_strided_slice %32 {offsets = [0, 24], sizes = [32, 8], strides = [1, 1]} : vector<32x96xf32> to vector<32x8xf32>
    %88 = vector.extract_strided_slice %32 {offsets = [0, 56], sizes = [32, 8], strides = [1, 1]} : vector<32x96xf32> to vector<32x8xf32>
    %89 = vector.extract_strided_slice %32 {offsets = [0, 88], sizes = [32, 8], strides = [1, 1]} : vector<32x96xf32> to vector<32x8xf32>
    %cst_26 = arith.constant dense<0.000000e+00> : vector<32x32xf32>
    %90 = tpu.matmul %87, %88, %cst_26 {dimension_numbers = #tpu.dot_dimension_numbers<[1], [1], [0], [0], [0, 0, 1, 0], [], []>} : vector<32x8xf32>, vector<32x8xf32>, vector<32x32xf32> -> vector<32x32xf32>
    %cst_27 = arith.constant 0.353553385 : f32
    %91 = vector.broadcast %cst_27 : f32 to vector<32x32xf32>
    %92 = arith.mulf %90, %91 : vector<32x32xf32>
    %93 = arith.addf %92, %16 : vector<32x32xf32>
    %cst_28 = arith.constant dense<0xFF800000> : vector<32xf32>
    %94 = vector.multi_reduction <maximumf>, %93, %cst_28 [1] : vector<32x32xf32> to vector<32xf32>
    %95 = vector.shape_cast %94 : vector<32xf32> to vector<32x1xf32>
    %96 = vector.broadcast %95 : vector<32x1xf32> to vector<32x32xf32>
    %97 = arith.subf %93, %96 : vector<32x32xf32>
    %98 = math.exp %97 : vector<32x32xf32>
    %cst_29 = arith.constant dense<0.000000e+00> : vector<32xf32>
    %99 = vector.multi_reduction <add>, %98, %cst_29 [1] : vector<32x32xf32> to vector<32xf32>
    %100 = vector.shape_cast %99 : vector<32xf32> to vector<32x1xf32>
    %101 = tpu.reciprocal %100 {approx = true} : vector<32x1xf32> -> vector<32x1xf32>
    %102 = vector.broadcast %101 : vector<32x1xf32> to vector<32x32xf32>
    %103 = arith.mulf %98, %102 : vector<32x32xf32>
    %cst_30 = arith.constant dense<0.000000e+00> : vector<32x8xf32>
    %104 = tpu.matmul %103, %89, %cst_30 {dimension_numbers = #tpu.dot_dimension_numbers<[1], [0], [0], [1], [0, 0, 1, 1], [], []>} : vector<32x32xf32>, vector<32x8xf32>, vector<32x8xf32> -> vector<32x8xf32>
    %105 = tpu.concatenate %50, %68, %86, %104 in 1 : vector<32x8xf32>, vector<32x8xf32>, vector<32x8xf32>, vector<32x8xf32> -> vector<32x32xf32>
    %106 = vector.extract_strided_slice %18 {offsets = [0, 96], sizes = [32, 32], strides = [1, 1]} : vector<32x128xf32> to vector<32x32xf32>
    %cst_31 = arith.constant dense<0.000000e+00> : vector<32x32xf32>
    %107 = tpu.matmul %105, %106, %cst_31 {dimension_numbers = #tpu.dot_dimension_numbers<[1], [0], [0], [1], [0, 0, 1, 1], [], []>} : vector<32x32xf32>, vector<32x32xf32>, vector<32x32xf32> -> vector<32x32xf32>
    %108 = vector.broadcast %22 : vector<1x32xf32> to vector<32x32xf32>
    %109 = arith.addf %107, %108 : vector<32x32xf32>
    %110 = arith.addf %15, %109 : vector<32x32xf32>
    %cst_32 = arith.constant dense<0.000000e+00> : vector<32xf32>
    %111 = vector.multi_reduction <add>, %110, %cst_32 [1] : vector<32x32xf32> to vector<32xf32>
    %112 = vector.shape_cast %111 : vector<32xf32> to vector<32x1xf32>
    %cst_33 = arith.constant 3.200000e+01 : f32
    %113 = vector.broadcast %cst_33 : f32 to vector<32x1xf32>
    %114 = arith.divf %112, %113 : vector<32x1xf32>
    %115 = vector.broadcast %114 : vector<32x1xf32> to vector<32x32xf32>
    %116 = arith.subf %110, %115 : vector<32x32xf32>
    %117 = arith.mulf %116, %116 : vector<32x32xf32>
    %cst_34 = arith.constant dense<0.000000e+00> : vector<32xf32>
    %118 = vector.multi_reduction <add>, %117, %cst_34 [1] : vector<32x32xf32> to vector<32xf32>
    %119 = vector.shape_cast %118 : vector<32xf32> to vector<32x1xf32>
    %cst_35 = arith.constant 3.200000e+01 : f32
    %120 = vector.broadcast %cst_35 : f32 to vector<32x1xf32>
    %121 = arith.divf %119, %120 : vector<32x1xf32>
    %cst_36 = arith.constant 9.99999974E-6 : f32
    %122 = vector.broadcast %cst_36 : f32 to vector<32x1xf32>
    %123 = arith.addf %121, %122 : vector<32x1xf32>
    %124 = math.rsqrt %123 : vector<32x1xf32>
    %125 = vector.broadcast %124 : vector<32x1xf32> to vector<32x32xf32>
    %126 = arith.mulf %116, %125 : vector<32x32xf32>
    %127 = vector.broadcast %25 : vector<1x32xf32> to vector<32x32xf32>
    %128 = arith.mulf %126, %127 : vector<32x32xf32>
    %129 = vector.broadcast %26 : vector<1x32xf32> to vector<32x32xf32>
    %130 = arith.addf %128, %129 : vector<32x32xf32>
    %c0_37 = arith.constant 0 : index
    %c0_38 = arith.constant 0 : index
    %c0_39 = arith.constant 0 : index
    %131 = vector.load %arg6[%c0_37, %c0_38, %c0_39] : memref<2x32x64xf32, #tpu.memory_space<vmem>>, vector<1x32x64xf32>
    %132 = vector.shape_cast %131 : vector<1x32x64xf32> to vector<32x64xf32>
    %cst_40 = arith.constant dense<0.000000e+00> : vector<32x64xf32>
    %133 = tpu.matmul %130, %132, %cst_40 {dimension_numbers = #tpu.dot_dimension_numbers<[1], [0], [0], [1], [0, 0, 1, 1], [], []>} : vector<32x32xf32>, vector<32x64xf32>, vector<32x64xf32> -> vector<32x64xf32>
    %134 = vector.broadcast %23 : vector<1x64xf32> to vector<32x64xf32>
    %135 = arith.addf %133, %134 : vector<32x64xf32>
    %cst_41 = arith.constant 0.000000e+00 : f32
    %136 = vector.broadcast %cst_41 : f32 to vector<32x64xf32>
    %137 = arith.maximumf %135, %136 : vector<32x64xf32>
    %c0_42 = arith.constant 0 : index
    %c0_43 = arith.constant 0 : index
    %c0_44 = arith.constant 0 : index
    %138 = vector.load %arg7[%c0_42, %c0_43, %c0_44] : memref<2x64x32xf32, #tpu.memory_space<vmem>>, vector<1x64x32xf32>
    %139 = vector.shape_cast %138 : vector<1x64x32xf32> to vector<64x32xf32>
    %cst_45 = arith.constant dense<0.000000e+00> : vector<32x32xf32>
    %140 = tpu.matmul %137, %139, %cst_45 {dimension_numbers = #tpu.dot_dimension_numbers<[1], [0], [0], [1], [0, 0, 1, 1], [], []>} : vector<32x64xf32>, vector<64x32xf32>, vector<32x32xf32> -> vector<32x32xf32>
    %141 = vector.broadcast %24 : vector<1x32xf32> to vector<32x32xf32>
    %142 = arith.addf %140, %141 : vector<32x32xf32>
    %143 = arith.addf %130, %142 : vector<32x32xf32>
    %cst_46 = arith.constant dense<0.000000e+00> : vector<32xf32>
    %144 = vector.multi_reduction <add>, %143, %cst_46 [1] : vector<32x32xf32> to vector<32xf32>
    %145 = vector.shape_cast %144 : vector<32xf32> to vector<32x1xf32>
    %cst_47 = arith.constant 3.200000e+01 : f32
    %146 = vector.broadcast %cst_47 : f32 to vector<32x1xf32>
    %147 = arith.divf %145, %146 : vector<32x1xf32>
    %148 = vector.broadcast %147 : vector<32x1xf32> to vector<32x32xf32>
    %149 = arith.subf %143, %148 : vector<32x32xf32>
    %150 = arith.mulf %149, %149 : vector<32x32xf32>
    %cst_48 = arith.constant dense<0.000000e+00> : vector<32xf32>
    %151 = vector.multi_reduction <add>, %150, %cst_48 [1] : vector<32x32xf32> to vector<32xf32>
    %152 = vector.shape_cast %151 : vector<32xf32> to vector<32x1xf32>
    %cst_49 = arith.constant 3.200000e+01 : f32
    %153 = vector.broadcast %cst_49 : f32 to vector<32x1xf32>
    %154 = arith.divf %152, %153 : vector<32x1xf32>
    %cst_50 = arith.constant 9.99999974E-6 : f32
    %155 = vector.broadcast %cst_50 : f32 to vector<32x1xf32>
    %156 = arith.addf %154, %155 : vector<32x1xf32>
    %157 = math.rsqrt %156 : vector<32x1xf32>
    %158 = vector.broadcast %157 : vector<32x1xf32> to vector<32x32xf32>
    %159 = arith.mulf %149, %158 : vector<32x32xf32>
    %160 = vector.broadcast %27 : vector<1x32xf32> to vector<32x32xf32>
    %161 = arith.mulf %159, %160 : vector<32x32xf32>
    %162 = vector.broadcast %28 : vector<1x32xf32> to vector<32x32xf32>
    %163 = arith.addf %161, %162 : vector<32x32xf32>
    %c1 = arith.constant 1 : index
    %c0_51 = arith.constant 0 : index
    %c0_52 = arith.constant 0 : index
    %164 = vector.load %arg5[%c1, %c0_51, %c0_52] : memref<2x32x128xf32, #tpu.memory_space<vmem>>, vector<1x32x128xf32>
    %165 = vector.shape_cast %164 : vector<1x32x128xf32> to vector<32x128xf32>
    %c1_53 = arith.constant 1 : index
    %c0_54 = arith.constant 0 : index
    %c0_55 = arith.constant 0 : index
    %166 = vector.load %arg8[%c1_53, %c0_54, %c0_55] : memref<2x8x96xf32, #tpu.memory_space<vmem>>, vector<1x8x96xf32>
    %167 = vector.shape_cast %166 : vector<1x8x96xf32> to vector<8x96xf32>
    %168 = vector.extract_strided_slice %167 {offsets = [0, 0], sizes = [1, 96], strides = [1, 1]} : vector<8x96xf32> to vector<1x96xf32>
    %169 = vector.extract_strided_slice %167 {offsets = [1, 0], sizes = [1, 32], strides = [1, 1]} : vector<8x96xf32> to vector<1x32xf32>
    %170 = vector.extract_strided_slice %167 {offsets = [2, 0], sizes = [1, 64], strides = [1, 1]} : vector<8x96xf32> to vector<1x64xf32>
    %171 = vector.extract_strided_slice %167 {offsets = [3, 0], sizes = [1, 32], strides = [1, 1]} : vector<8x96xf32> to vector<1x32xf32>
    %172 = vector.extract_strided_slice %167 {offsets = [4, 0], sizes = [1, 32], strides = [1, 1]} : vector<8x96xf32> to vector<1x32xf32>
    %173 = vector.extract_strided_slice %167 {offsets = [5, 0], sizes = [1, 32], strides = [1, 1]} : vector<8x96xf32> to vector<1x32xf32>
    %174 = vector.extract_strided_slice %167 {offsets = [6, 0], sizes = [1, 32], strides = [1, 1]} : vector<8x96xf32> to vector<1x32xf32>
    %175 = vector.extract_strided_slice %167 {offsets = [7, 0], sizes = [1, 32], strides = [1, 1]} : vector<8x96xf32> to vector<1x32xf32>
    %cst_56 = arith.constant dense<0.000000e+00> : vector<32x128xf32>
    %176 = tpu.matmul %163, %165, %cst_56 {dimension_numbers = #tpu.dot_dimension_numbers<[1], [0], [0], [1], [0, 0, 1, 1], [], []>} : vector<32x32xf32>, vector<32x128xf32>, vector<32x128xf32> -> vector<32x128xf32>
    %177 = vector.extract_strided_slice %176 {offsets = [0, 0], sizes = [32, 96], strides = [1, 1]} : vector<32x128xf32> to vector<32x96xf32>
    %178 = vector.broadcast %168 : vector<1x96xf32> to vector<32x96xf32>
    %179 = arith.addf %177, %178 : vector<32x96xf32>
    %180 = vector.extract_strided_slice %179 {offsets = [0, 0], sizes = [32, 8], strides = [1, 1]} : vector<32x96xf32> to vector<32x8xf32>
    %181 = vector.extract_strided_slice %179 {offsets = [0, 32], sizes = [32, 8], strides = [1, 1]} : vector<32x96xf32> to vector<32x8xf32>
    %182 = vector.extract_strided_slice %179 {offsets = [0, 64], sizes = [32, 8], strides = [1, 1]} : vector<32x96xf32> to vector<32x8xf32>
    %cst_57 = arith.constant dense<0.000000e+00> : vector<32x32xf32>
    %183 = tpu.matmul %180, %181, %cst_57 {dimension_numbers = #tpu.dot_dimension_numbers<[1], [1], [0], [0], [0, 0, 1, 0], [], []>} : vector<32x8xf32>, vector<32x8xf32>, vector<32x32xf32> -> vector<32x32xf32>
    %cst_58 = arith.constant 0.353553385 : f32
    %184 = vector.broadcast %cst_58 : f32 to vector<32x32xf32>
    %185 = arith.mulf %183, %184 : vector<32x32xf32>
    %186 = arith.addf %185, %16 : vector<32x32xf32>
    %cst_59 = arith.constant dense<0xFF800000> : vector<32xf32>
    %187 = vector.multi_reduction <maximumf>, %186, %cst_59 [1] : vector<32x32xf32> to vector<32xf32>
    %188 = vector.shape_cast %187 : vector<32xf32> to vector<32x1xf32>
    %189 = vector.broadcast %188 : vector<32x1xf32> to vector<32x32xf32>
    %190 = arith.subf %186, %189 : vector<32x32xf32>
    %191 = math.exp %190 : vector<32x32xf32>
    %cst_60 = arith.constant dense<0.000000e+00> : vector<32xf32>
    %192 = vector.multi_reduction <add>, %191, %cst_60 [1] : vector<32x32xf32> to vector<32xf32>
    %193 = vector.shape_cast %192 : vector<32xf32> to vector<32x1xf32>
    %194 = tpu.reciprocal %193 {approx = true} : vector<32x1xf32> -> vector<32x1xf32>
    %195 = vector.broadcast %194 : vector<32x1xf32> to vector<32x32xf32>
    %196 = arith.mulf %191, %195 : vector<32x32xf32>
    %cst_61 = arith.constant dense<0.000000e+00> : vector<32x8xf32>
    %197 = tpu.matmul %196, %182, %cst_61 {dimension_numbers = #tpu.dot_dimension_numbers<[1], [0], [0], [1], [0, 0, 1, 1], [], []>} : vector<32x32xf32>, vector<32x8xf32>, vector<32x8xf32> -> vector<32x8xf32>
    %198 = vector.extract_strided_slice %179 {offsets = [0, 8], sizes = [32, 8], strides = [1, 1]} : vector<32x96xf32> to vector<32x8xf32>
    %199 = vector.extract_strided_slice %179 {offsets = [0, 40], sizes = [32, 8], strides = [1, 1]} : vector<32x96xf32> to vector<32x8xf32>
    %200 = vector.extract_strided_slice %179 {offsets = [0, 72], sizes = [32, 8], strides = [1, 1]} : vector<32x96xf32> to vector<32x8xf32>
    %cst_62 = arith.constant dense<0.000000e+00> : vector<32x32xf32>
    %201 = tpu.matmul %198, %199, %cst_62 {dimension_numbers = #tpu.dot_dimension_numbers<[1], [1], [0], [0], [0, 0, 1, 0], [], []>} : vector<32x8xf32>, vector<32x8xf32>, vector<32x32xf32> -> vector<32x32xf32>
    %cst_63 = arith.constant 0.353553385 : f32
    %202 = vector.broadcast %cst_63 : f32 to vector<32x32xf32>
    %203 = arith.mulf %201, %202 : vector<32x32xf32>
    %204 = arith.addf %203, %16 : vector<32x32xf32>
    %cst_64 = arith.constant dense<0xFF800000> : vector<32xf32>
    %205 = vector.multi_reduction <maximumf>, %204, %cst_64 [1] : vector<32x32xf32> to vector<32xf32>
    %206 = vector.shape_cast %205 : vector<32xf32> to vector<32x1xf32>
    %207 = vector.broadcast %206 : vector<32x1xf32> to vector<32x32xf32>
    %208 = arith.subf %204, %207 : vector<32x32xf32>
    %209 = math.exp %208 : vector<32x32xf32>
    %cst_65 = arith.constant dense<0.000000e+00> : vector<32xf32>
    %210 = vector.multi_reduction <add>, %209, %cst_65 [1] : vector<32x32xf32> to vector<32xf32>
    %211 = vector.shape_cast %210 : vector<32xf32> to vector<32x1xf32>
    %212 = tpu.reciprocal %211 {approx = true} : vector<32x1xf32> -> vector<32x1xf32>
    %213 = vector.broadcast %212 : vector<32x1xf32> to vector<32x32xf32>
    %214 = arith.mulf %209, %213 : vector<32x32xf32>
    %cst_66 = arith.constant dense<0.000000e+00> : vector<32x8xf32>
    %215 = tpu.matmul %214, %200, %cst_66 {dimension_numbers = #tpu.dot_dimension_numbers<[1], [0], [0], [1], [0, 0, 1, 1], [], []>} : vector<32x32xf32>, vector<32x8xf32>, vector<32x8xf32> -> vector<32x8xf32>
    %216 = vector.extract_strided_slice %179 {offsets = [0, 16], sizes = [32, 8], strides = [1, 1]} : vector<32x96xf32> to vector<32x8xf32>
    %217 = vector.extract_strided_slice %179 {offsets = [0, 48], sizes = [32, 8], strides = [1, 1]} : vector<32x96xf32> to vector<32x8xf32>
    %218 = vector.extract_strided_slice %179 {offsets = [0, 80], sizes = [32, 8], strides = [1, 1]} : vector<32x96xf32> to vector<32x8xf32>
    %cst_67 = arith.constant dense<0.000000e+00> : vector<32x32xf32>
    %219 = tpu.matmul %216, %217, %cst_67 {dimension_numbers = #tpu.dot_dimension_numbers<[1], [1], [0], [0], [0, 0, 1, 0], [], []>} : vector<32x8xf32>, vector<32x8xf32>, vector<32x32xf32> -> vector<32x32xf32>
    %cst_68 = arith.constant 0.353553385 : f32
    %220 = vector.broadcast %cst_68 : f32 to vector<32x32xf32>
    %221 = arith.mulf %219, %220 : vector<32x32xf32>
    %222 = arith.addf %221, %16 : vector<32x32xf32>
    %cst_69 = arith.constant dense<0xFF800000> : vector<32xf32>
    %223 = vector.multi_reduction <maximumf>, %222, %cst_69 [1] : vector<32x32xf32> to vector<32xf32>
    %224 = vector.shape_cast %223 : vector<32xf32> to vector<32x1xf32>
    %225 = vector.broadcast %224 : vector<32x1xf32> to vector<32x32xf32>
    %226 = arith.subf %222, %225 : vector<32x32xf32>
    %227 = math.exp %226 : vector<32x32xf32>
    %cst_70 = arith.constant dense<0.000000e+00> : vector<32xf32>
    %228 = vector.multi_reduction <add>, %227, %cst_70 [1] : vector<32x32xf32> to vector<32xf32>
    %229 = vector.shape_cast %228 : vector<32xf32> to vector<32x1xf32>
    %230 = tpu.reciprocal %229 {approx = true} : vector<32x1xf32> -> vector<32x1xf32>
    %231 = vector.broadcast %230 : vector<32x1xf32> to vector<32x32xf32>
    %232 = arith.mulf %227, %231 : vector<32x32xf32>
    %cst_71 = arith.constant dense<0.000000e+00> : vector<32x8xf32>
    %233 = tpu.matmul %232, %218, %cst_71 {dimension_numbers = #tpu.dot_dimension_numbers<[1], [0], [0], [1], [0, 0, 1, 1], [], []>} : vector<32x32xf32>, vector<32x8xf32>, vector<32x8xf32> -> vector<32x8xf32>
    %234 = vector.extract_strided_slice %179 {offsets = [0, 24], sizes = [32, 8], strides = [1, 1]} : vector<32x96xf32> to vector<32x8xf32>
    %235 = vector.extract_strided_slice %179 {offsets = [0, 56], sizes = [32, 8], strides = [1, 1]} : vector<32x96xf32> to vector<32x8xf32>
    %236 = vector.extract_strided_slice %179 {offsets = [0, 88], sizes = [32, 8], strides = [1, 1]} : vector<32x96xf32> to vector<32x8xf32>
    %cst_72 = arith.constant dense<0.000000e+00> : vector<32x32xf32>
    %237 = tpu.matmul %234, %235, %cst_72 {dimension_numbers = #tpu.dot_dimension_numbers<[1], [1], [0], [0], [0, 0, 1, 0], [], []>} : vector<32x8xf32>, vector<32x8xf32>, vector<32x32xf32> -> vector<32x32xf32>
    %cst_73 = arith.constant 0.353553385 : f32
    %238 = vector.broadcast %cst_73 : f32 to vector<32x32xf32>
    %239 = arith.mulf %237, %238 : vector<32x32xf32>
    %240 = arith.addf %239, %16 : vector<32x32xf32>
    %cst_74 = arith.constant dense<0xFF800000> : vector<32xf32>
    %241 = vector.multi_reduction <maximumf>, %240, %cst_74 [1] : vector<32x32xf32> to vector<32xf32>
    %242 = vector.shape_cast %241 : vector<32xf32> to vector<32x1xf32>
    %243 = vector.broadcast %242 : vector<32x1xf32> to vector<32x32xf32>
    %244 = arith.subf %240, %243 : vector<32x32xf32>
    %245 = math.exp %244 : vector<32x32xf32>
    %cst_75 = arith.constant dense<0.000000e+00> : vector<32xf32>
    %246 = vector.multi_reduction <add>, %245, %cst_75 [1] : vector<32x32xf32> to vector<32xf32>
    %247 = vector.shape_cast %246 : vector<32xf32> to vector<32x1xf32>
    %248 = tpu.reciprocal %247 {approx = true} : vector<32x1xf32> -> vector<32x1xf32>
    %249 = vector.broadcast %248 : vector<32x1xf32> to vector<32x32xf32>
    %250 = arith.mulf %245, %249 : vector<32x32xf32>
    %cst_76 = arith.constant dense<0.000000e+00> : vector<32x8xf32>
    %251 = tpu.matmul %250, %236, %cst_76 {dimension_numbers = #tpu.dot_dimension_numbers<[1], [0], [0], [1], [0, 0, 1, 1], [], []>} : vector<32x32xf32>, vector<32x8xf32>, vector<32x8xf32> -> vector<32x8xf32>
    %252 = tpu.concatenate %197, %215, %233, %251 in 1 : vector<32x8xf32>, vector<32x8xf32>, vector<32x8xf32>, vector<32x8xf32> -> vector<32x32xf32>
    %253 = vector.extract_strided_slice %165 {offsets = [0, 96], sizes = [32, 32], strides = [1, 1]} : vector<32x128xf32> to vector<32x32xf32>
    %cst_77 = arith.constant dense<0.000000e+00> : vector<32x32xf32>
    %254 = tpu.matmul %252, %253, %cst_77 {dimension_numbers = #tpu.dot_dimension_numbers<[1], [0], [0], [1], [0, 0, 1, 1], [], []>} : vector<32x32xf32>, vector<32x32xf32>, vector<32x32xf32> -> vector<32x32xf32>
    %255 = vector.broadcast %169 : vector<1x32xf32> to vector<32x32xf32>
    %256 = arith.addf %254, %255 : vector<32x32xf32>
    %257 = arith.addf %163, %256 : vector<32x32xf32>
    %cst_78 = arith.constant dense<0.000000e+00> : vector<32xf32>
    %258 = vector.multi_reduction <add>, %257, %cst_78 [1] : vector<32x32xf32> to vector<32xf32>
    %259 = vector.shape_cast %258 : vector<32xf32> to vector<32x1xf32>
    %cst_79 = arith.constant 3.200000e+01 : f32
    %260 = vector.broadcast %cst_79 : f32 to vector<32x1xf32>
    %261 = arith.divf %259, %260 : vector<32x1xf32>
    %262 = vector.broadcast %261 : vector<32x1xf32> to vector<32x32xf32>
    %263 = arith.subf %257, %262 : vector<32x32xf32>
    %264 = arith.mulf %263, %263 : vector<32x32xf32>
    %cst_80 = arith.constant dense<0.000000e+00> : vector<32xf32>
    %265 = vector.multi_reduction <add>, %264, %cst_80 [1] : vector<32x32xf32> to vector<32xf32>
    %266 = vector.shape_cast %265 : vector<32xf32> to vector<32x1xf32>
    %cst_81 = arith.constant 3.200000e+01 : f32
    %267 = vector.broadcast %cst_81 : f32 to vector<32x1xf32>
    %268 = arith.divf %266, %267 : vector<32x1xf32>
    %cst_82 = arith.constant 9.99999974E-6 : f32
    %269 = vector.broadcast %cst_82 : f32 to vector<32x1xf32>
    %270 = arith.addf %268, %269 : vector<32x1xf32>
    %271 = math.rsqrt %270 : vector<32x1xf32>
    %272 = vector.broadcast %271 : vector<32x1xf32> to vector<32x32xf32>
    %273 = arith.mulf %263, %272 : vector<32x32xf32>
    %274 = vector.broadcast %172 : vector<1x32xf32> to vector<32x32xf32>
    %275 = arith.mulf %273, %274 : vector<32x32xf32>
    %276 = vector.broadcast %173 : vector<1x32xf32> to vector<32x32xf32>
    %277 = arith.addf %275, %276 : vector<32x32xf32>
    %c1_83 = arith.constant 1 : index
    %c0_84 = arith.constant 0 : index
    %c0_85 = arith.constant 0 : index
    %278 = vector.load %arg6[%c1_83, %c0_84, %c0_85] : memref<2x32x64xf32, #tpu.memory_space<vmem>>, vector<1x32x64xf32>
    %279 = vector.shape_cast %278 : vector<1x32x64xf32> to vector<32x64xf32>
    %cst_86 = arith.constant dense<0.000000e+00> : vector<32x64xf32>
    %280 = tpu.matmul %277, %279, %cst_86 {dimension_numbers = #tpu.dot_dimension_numbers<[1], [0], [0], [1], [0, 0, 1, 1], [], []>} : vector<32x32xf32>, vector<32x64xf32>, vector<32x64xf32> -> vector<32x64xf32>
    %281 = vector.broadcast %170 : vector<1x64xf32> to vector<32x64xf32>
    %282 = arith.addf %280, %281 : vector<32x64xf32>
    %cst_87 = arith.constant 0.000000e+00 : f32
    %283 = vector.broadcast %cst_87 : f32 to vector<32x64xf32>
    %284 = arith.maximumf %282, %283 : vector<32x64xf32>
    %c1_88 = arith.constant 1 : index
    %c0_89 = arith.constant 0 : index
    %c0_90 = arith.constant 0 : index
    %285 = vector.load %arg7[%c1_88, %c0_89, %c0_90] : memref<2x64x32xf32, #tpu.memory_space<vmem>>, vector<1x64x32xf32>
    %286 = vector.shape_cast %285 : vector<1x64x32xf32> to vector<64x32xf32>
    %cst_91 = arith.constant dense<0.000000e+00> : vector<32x32xf32>
    %287 = tpu.matmul %284, %286, %cst_91 {dimension_numbers = #tpu.dot_dimension_numbers<[1], [0], [0], [1], [0, 0, 1, 1], [], []>} : vector<32x64xf32>, vector<64x32xf32>, vector<32x32xf32> -> vector<32x32xf32>
    %288 = vector.broadcast %171 : vector<1x32xf32> to vector<32x32xf32>
    %289 = arith.addf %287, %288 : vector<32x32xf32>
    %290 = arith.addf %277, %289 : vector<32x32xf32>
    %cst_92 = arith.constant dense<0.000000e+00> : vector<32xf32>
    %291 = vector.multi_reduction <add>, %290, %cst_92 [1] : vector<32x32xf32> to vector<32xf32>
    %292 = vector.shape_cast %291 : vector<32xf32> to vector<32x1xf32>
    %cst_93 = arith.constant 3.200000e+01 : f32
    %293 = vector.broadcast %cst_93 : f32 to vector<32x1xf32>
    %294 = arith.divf %292, %293 : vector<32x1xf32>
    %295 = vector.broadcast %294 : vector<32x1xf32> to vector<32x32xf32>
    %296 = arith.subf %290, %295 : vector<32x32xf32>
    %297 = arith.mulf %296, %296 : vector<32x32xf32>
    %cst_94 = arith.constant dense<0.000000e+00> : vector<32xf32>
    %298 = vector.multi_reduction <add>, %297, %cst_94 [1] : vector<32x32xf32> to vector<32xf32>
    %299 = vector.shape_cast %298 : vector<32xf32> to vector<32x1xf32>
    %cst_95 = arith.constant 3.200000e+01 : f32
    %300 = vector.broadcast %cst_95 : f32 to vector<32x1xf32>
    %301 = arith.divf %299, %300 : vector<32x1xf32>
    %cst_96 = arith.constant 9.99999974E-6 : f32
    %302 = vector.broadcast %cst_96 : f32 to vector<32x1xf32>
    %303 = arith.addf %301, %302 : vector<32x1xf32>
    %304 = math.rsqrt %303 : vector<32x1xf32>
    %305 = vector.broadcast %304 : vector<32x1xf32> to vector<32x32xf32>
    %306 = arith.mulf %296, %305 : vector<32x32xf32>
    %307 = vector.broadcast %174 : vector<1x32xf32> to vector<32x32xf32>
    %308 = arith.mulf %306, %307 : vector<32x32xf32>
    %309 = vector.broadcast %175 : vector<1x32xf32> to vector<32x32xf32>
    %310 = arith.addf %308, %309 : vector<32x32xf32>
    %311 = vector.extract_strided_slice %310 {offsets = [15, 0], sizes = [1, 32], strides = [1, 1]} : vector<32x32xf32> to vector<1x32xf32>
    %312 = vector.extract_strided_slice %310 {offsets = [31, 0], sizes = [1, 32], strides = [1, 1]} : vector<32x32xf32> to vector<1x32xf32>
    %313 = tpu.concatenate %311, %312 in 0 : vector<1x32xf32>, vector<1x32xf32> -> vector<2x32xf32>
    %314 = vector.broadcast %3 : vector<1x32xf32> to vector<2x32xf32>
    %315 = arith.mulf %313, %314 : vector<2x32xf32>
    %cst_97 = arith.constant dense<0.000000e+00> : vector<2xf32>
    %316 = vector.multi_reduction <add>, %315, %cst_97 [1] : vector<2x32xf32> to vector<2xf32>
    %317 = vector.shape_cast %316 : vector<2xf32> to vector<2x1xf32>
    %318 = vector.broadcast %5 : vector<1x1xf32> to vector<2x1xf32>
    %319 = arith.addf %317, %318 : vector<2x1xf32>
    %c0_98 = arith.constant 0 : index
    %c0_99 = arith.constant 0 : index
    %320 = vector.load %arg1[%c0_98, %c0_99] : memref<2x16xf32, #tpu.memory_space<vmem>>, vector<2x16xf32>
    %321 = vector.extract_strided_slice %320 {offsets = [0, 15], sizes = [2, 1], strides = [1, 1]} : vector<2x16xf32> to vector<2x1xf32>
    %322 = vector.extract_strided_slice %320 {offsets = [0, 7], sizes = [2, 1], strides = [1, 1]} : vector<2x16xf32> to vector<2x1xf32>
    %323 = arith.subf %321, %322 : vector<2x1xf32>
    %cst_100 = arith.constant 1.250000e-01 : f32
    %324 = vector.broadcast %cst_100 : f32 to vector<2x1xf32>
    %325 = arith.mulf %323, %324 : vector<2x1xf32>
    %326 = tpu.iota {dimensions = array<i32: 1>} : vector<2x8xi32>
    %c1_i32 = arith.constant 1 : i32
    %327 = vector.broadcast %c1_i32 : i32 to vector<2x8xi32>
    %328 = arith.addi %326, %327 : vector<2x8xi32>
    %329 = arith.sitofp %328 : vector<2x8xi32> to vector<2x8xf32>
    %330 = vector.broadcast %325 : vector<2x1xf32> to vector<2x8xf32>
    %331 = arith.mulf %330, %329 : vector<2x8xf32>
    %332 = vector.broadcast %321 : vector<2x1xf32> to vector<2x8xf32>
    %333 = arith.addf %332, %331 : vector<2x8xf32>
    %c0_101 = arith.constant 0 : index
    %c0_102 = arith.constant 0 : index
    %334 = vector.load %arg2[%c0_101, %c0_102] : memref<2x8xf32, #tpu.memory_space<vmem>>, vector<2x8xf32>
    %335 = vector.broadcast %6 : vector<1x1xf32> to vector<2x1xf32>
    %336 = arith.mulf %319, %335 : vector<2x1xf32>
    %337 = vector.broadcast %7 : vector<1x1xf32> to vector<2x8xf32>
    %338 = arith.mulf %333, %337 : vector<2x8xf32>
    %339 = vector.broadcast %336 : vector<2x1xf32> to vector<2x8xf32>
    %340 = arith.addf %339, %338 : vector<2x8xf32>
    %341 = vector.broadcast %8 : vector<1x1xf32> to vector<2x8xf32>
    %342 = arith.mulf %334, %341 : vector<2x8xf32>
    %343 = arith.addf %340, %342 : vector<2x8xf32>
    %344 = vector.broadcast %9 : vector<1x1xf32> to vector<2x8xf32>
    %345 = arith.addf %343, %344 : vector<2x8xf32>
    %c0_103 = arith.constant 0 : index
    %c0_104 = arith.constant 0 : index
    %346 = vector.load %arg9[%c0_103, %c0_104] : memref<2x8xf32, #tpu.memory_space<vmem>>, vector<2x8xf32>
    tpu.vector_store %arg9[%c0_103, %c0_104], %345 {strides = array<i32>} : memref<2x8xf32, #tpu.memory_space<vmem>>, vector<2x8xf32>,
    return
  }
}

</mosaic_0001>

<llo_original>
// kernel: custom-call
$region0: #{custom-call}
  %s0 = inlined_call_operand.vmem [shape: f32[7,2], index: 0, kind: output, shape index: {}]

// kernel: squeeze.2
$region0: #{squeeze.2}
  %s0 = inlined_call_operand.vmem [shape: f32[2,16], index: 0, kind: input, shape index: {}]
  %s1 = inlined_call_operand.vmem [shape: f32[32,1], index: 1, kind: output, shape index: {}]
  $region1: #{squeeze.2} parent=0
    #allocation0 [shape = 'u8[4096]{0}', space=vmem, size = 0x1000, scoped, tag = 'scoped mem for input reshape']
    %s3 = sshllo.u32 0, 2
    %v4 = vld [vmem:[%s0] sm:%s3]
    %5 = vst [vmem:[#allocation0] sm:%s3] %v4
    %v6 = vld [vmem:[#allocation0] sm:$0x3]
    %vm7 = vcmask 7168
    %8 = vst.msk [vmem:[%s1] ss:$16 sm:$0x3] %vm7, %v6
    %v9 = vld [vmem:[#allocation0] sm:$0x3]
    %10 = vrot.lane.b32.xlu0 %v9, 127
    %v11 = vpop.permute.xlu0 %10
    %vm12 = vcmask 7168
    %s13 = scalar_lea.vmem %s1, 1
    %14 = vst.msk [vmem:[%s13] ss:$16 sm:$0x3] %vm12, %v11
    %v15 = vld [vmem:[#allocation0] sm:$0x3]
    %16 = vrot.lane.b32.xlu0 %v15, 126
    %v17 = vpop.permute.xlu0 %16
    %vm18 = vcmask 7168
    %s19 = scalar_lea.vmem %s1, 2
    %20 = vst.msk [vmem:[%s19] ss:$16 sm:$0x3] %vm18, %v17
    %v21 = vld [vmem:[#allocation0] sm:$0x3]
    %22 = vrot.lane.b32.xlu0 %v21, 125
    %v23 = vpop.permute.xlu0 %22
    %vm24 = vcmask 7168
    %s25 = scalar_lea.vmem %s1, 3
    %26 = vst.msk [vmem:[%s25] ss:$16 sm:$0x3] %vm24, %v23
    %v27 = vld [vmem:[#allocation0] sm:$0x3]
    %28 = vrot.lane.b32.xlu0 %v27, 124
    %v29 = vpop.permute.xlu0 %28
    %vm30 = vcmask 7168
    %s31 = scalar_lea.vmem %s1, 4
    %32 = vst.msk [vmem:[%s31] ss:$16 sm:$0x3] %vm30, %v29
    %v33 = vld [vmem:[#allocation0] sm:$0x3]
    %34 = vrot.lane.b32.xlu0 %v33, 123
    %v35 = vpop.permute.xlu0 %34
    %vm36 = vcmask 7168
    %s37 = scalar_lea.vmem %s1, 5
    %38 = vst.msk [vmem:[%s37] ss:$16 sm:$0x3] %vm36, %v35
    %v39 = vld [vmem:[#allocation0] sm:$0x3]
    %40 = vrot.lane.b32.xlu0 %v39, 122
    %v41 = vpop.permute.xlu0 %40
    %vm42 = vcmask 7168
    %s43 = scalar_lea.vmem %s1, 6
    %44 = vst.msk [vmem:[%s43] ss:$16 sm:$0x3] %vm42, %v41
    %v45 = vld [vmem:[#allocation0] sm:$0x3]
    %46 = vrot.lane.b32.xlu0 %v45, 121
    %v47 = vpop.permute.xlu0 %46
    %vm48 = vcmask 7168
    %s49 = scalar_lea.vmem %s1, 7
    %50 = vst.msk [vmem:[%s49] ss:$16 sm:$0x3] %vm48, %v47
    %v51 = vld [vmem:[#allocation0] sm:$0x3]
    %52 = vrot.lane.b32.xlu0 %v51, 120
    %v53 = vpop.permute.xlu0 %52
    %vm54 = vcmask 7168
    %s55 = scalar_lea.vmem %s1, 8
    %56 = vst.msk [vmem:[%s55] ss:$16 sm:$0x3] %vm54, %v53
    %v57 = vld [vmem:[#allocation0] sm:$0x3]
    %58 = vrot.lane.b32.xlu0 %v57, 119
    %v59 = vpop.permute.xlu0 %58
    %vm60 = vcmask 7168
    %s61 = scalar_lea.vmem %s1, 9
    %62 = vst.msk [vmem:[%s61] ss:$16 sm:$0x3] %vm60, %v59
    %v63 = vld [vmem:[#allocation0] sm:$0x3]
    %64 = vrot.lane.b32.xlu0 %v63, 118
    %v65 = vpop.permute.xlu0 %64
    %vm66 = vcmask 7168
    %s67 = scalar_lea.vmem %s1, 10
    %68 = vst.msk [vmem:[%s67] ss:$16 sm:$0x3] %vm66, %v65
    %v69 = vld [vmem:[#allocation0] sm:$0x3]
    %70 = vrot.lane.b32.xlu0 %v69, 117
    %v71 = vpop.permute.xlu0 %70
    %vm72 = vcmask 7168
    %s73 = scalar_lea.vmem %s1, 11
    %74 = vst.msk [vmem:[%s73] ss:$16 sm:$0x3] %vm72, %v71
    %v75 = vld [vmem:[#allocation0] sm:$0x3]
    %76 = vrot.lane.b32.xlu0 %v75, 116
    %v77 = vpop.permute.xlu0 %76
    %vm78 = vcmask 7168
    %s79 = scalar_lea.vmem %s1, 12
    %80 = vst.msk [vmem:[%s79] ss:$16 sm:$0x3] %vm78, %v77
    %v81 = vld [vmem:[#allocation0] sm:$0x3]
    %82 = vrot.lane.b32.xlu0 %v81, 115
    %v83 = vpop.permute.xlu0 %82
    %vm84 = vcmask 7168
    %s85 = scalar_lea.vmem %s1, 13
    %86 = vst.msk [vmem:[%s85] ss:$16 sm:$0x3] %vm84, %v83
    %v87 = vld [vmem:[#allocation0] sm:$0x3]
    %88 = vrot.lane.b32.xlu0 %v87, 114
    %v89 = vpop.permute.xlu0 %88
    %vm90 = vcmask 7168
    %s91 = scalar_lea.vmem %s1, 14
    %92 = vst.msk [vmem:[%s91] ss:$16 sm:$0x3] %vm90, %v89
    %v93 = vld [vmem:[#allocation0] sm:$0x3]
    %94 = vrot.lane.b32.xlu0 %v93, 113
    %v95 = vpop.permute.xlu0 %94
    %vm96 = vcmask 7168
    %s97 = scalar_lea.vmem %s1, 15
    %98 = vst.msk [vmem:[%s97] ss:$16 sm:$0x3] %vm96, %v95

// kernel: run_model.1
$region0: #{run_model.1}
  #allocation0 [shape = 'u32[]', space=smem, size = 0x4, offset = 0x4, fixed_abs, tag = 'smem constant byte address 0x4 - core index']
  #allocation1 [shape = 'u32[144,128]{1,0:T(1,128)}', space=vmem, size = 0x12000, scoped, tag = 'internal scratch']
  %s0 = inlined_call_operand.vmem [shape: f32[32,1], index: 0, kind: input, shape index: {}]
  %s1 = inlined_call_operand.vmem [shape: f32[2,16], index: 1, kind: input, shape index: {}]
  %s2 = inlined_call_operand.vmem [shape: f32[2,8], index: 2, kind: input, shape index: {}]
  %s3 = inlined_call_operand.vmem [shape: f32[32,32], index: 3, kind: input, shape index: {}]
  %s4 = inlined_call_operand.vmem [shape: f32[8,32], index: 4, kind: input, shape index: {}]
  %s5 = inlined_call_operand.vmem [shape: f32[2,32,128], index: 5, kind: input, shape index: {}]
  %s6 = inlined_call_operand.vmem [shape: f32[2,32,64], index: 6, kind: input, shape index: {}]
  %s7 = inlined_call_operand.vmem [shape: f32[2,64,32], index: 7, kind: input, shape index: {}]
  %s8 = inlined_call_operand.vmem [shape: f32[2,8,96], index: 8, kind: input, shape index: {}]
  %s9 = inlined_call_operand.hbm [shape: f32[2,8], index: 9, kind: output, shape index: {}]
  %s10 = sld [smem:[#allocation0]]
  $region46: #{run_model.1} parent=0
    _
  %s12 = ssub.s32 1, %s10
  %s13 = scalar_select 0, %s12, %s10
  $region1: #{run_model.1} parent=0
    #allocation2 [shape = 'u8[1024]{0}', space=vmem, size = 0x400, scoped, tag = 'output window, operand 0, single buffered']
    #allocation3 [shape = 's32[1]{0}', space=sflag, size = 0x4, scoped, tag = 'scoped memory for run_model.1']
    %14 = vsyncpa [#allocation3], 0
    // Predicated region
    $region2: #{run_model.1} parent=1 // pred_check
      _
    $region3: #{run_model.1} parent=1 // pred_check_branch
      %16 = sbr.rel (0) target = $region5
    $region4: #{run_model.1} parent=1 // pred_region
      _
    $region5: #{run_model.1} parent=1 // pred_fallthru
      _
    // Predicated region
    $region6: #{run_model.1} parent=1 // pred_check
      _
    $region7: #{run_model.1} parent=1 // pred_check_branch
      %18 = sbr.rel (0) target = $region9
    $region8: #{run_model.1} parent=1 // pred_region
      _
    $region9: #{run_model.1} parent=1 // pred_fallthru
      _
    // Predicated region
    $region10: #{run_model.1} parent=1 // pred_check
      _
    $region11: #{run_model.1} parent=1 // pred_check_branch
      %20 = sbr.rel (0) target = $region13
    $region12: #{run_model.1} parent=1 // pred_region
      _
    $region13: #{run_model.1} parent=1 // pred_fallthru
      _
    // Predicated region
    $region14: #{run_model.1} parent=1 // pred_check
      _
    $region15: #{run_model.1} parent=1 // pred_check_branch
      %22 = sbr.rel (0) target = $region17
    $region16: #{run_model.1} parent=1 // pred_region
      _
    $region17: #{run_model.1} parent=1 // pred_fallthru
      _
    // Predicated region
    $region18: #{run_model.1} parent=1 // pred_check
      _
    $region19: #{run_model.1} parent=1 // pred_check_branch
      %24 = sbr.rel (0) target = $region21
    $region20: #{run_model.1} parent=1 // pred_region
      _
    $region21: #{run_model.1} parent=1 // pred_fallthru
      _
    // Predicated region
    $region22: #{run_model.1} parent=1 // pred_check
      _
    $region23: #{run_model.1} parent=1 // pred_check_branch
      %26 = sbr.rel (0) target = $region25
    $region24: #{run_model.1} parent=1 // pred_region
      _
    $region25: #{run_model.1} parent=1 // pred_fallthru
      _
    // Predicated region
    $region26: #{run_model.1} parent=1 // pred_check
      _
    $region27: #{run_model.1} parent=1 // pred_check_branch
      %28 = sbr.rel (0) target = $region29
    $region28: #{run_model.1} parent=1 // pred_region
      _
    $region29: #{run_model.1} parent=1 // pred_fallthru
      _
    // Predicated region
    $region30: #{run_model.1} parent=1 // pred_check
      _
    $region31: #{run_model.1} parent=1 // pred_check_branch
      %30 = sbr.rel (0) target = $region33
    $region32: #{run_model.1} parent=1 // pred_region
      _
    $region33: #{run_model.1} parent=1 // pred_fallthru
      _
    // Predicated region
    $region34: #{run_model.1} parent=1 // pred_check
      _
    $region35: #{run_model.1} parent=1 // pred_check_branch
      %32 = sbr.rel (0) target = $region37
    $region36: #{run_model.1} parent=1 // pred_region
      _
    $region37: #{run_model.1} parent=1 // pred_fallthru
      _
    %v33 = vld [vmem:[%s4] sm:$0xff]
    %v34 = vld [vmem:[%s0] sm:$0xff]
    %v35 = vld [vmem:[%s0 + $0x8] sm:$0xff]
    %v36 = vld [vmem:[%s0 + $0x10] sm:$0xff]
    %v37 = vld [vmem:[%s0 + $0x18] sm:$0xff]
    %39 = vset.pattern.permute.xlu0 0
    %40 = vperm.xlu0 %39, %v34
    %v41 = vpop.permute.xlu0 %40
    %44 = vset.pattern.permute.xlu0 0
    %45 = vperm.xlu0 %44, %v35
    %v46 = vpop.permute.xlu0 %45
    %49 = vset.pattern.permute.xlu0 0
    %50 = vperm.xlu0 %49, %v36
    %v51 = vpop.permute.xlu0 %50
    %54 = vset.pattern.permute.xlu0 0
    %55 = vperm.xlu0 %54, %v37
    %v56 = vpop.permute.xlu0 %55
    %v58 = vlaneseq
    %v59 = vshrl.u32 %v58, 7
    %v60 = vsub.s32 0, %v59
    %v61 = vrot.slane %v33, %v60
    %v62 = vmul.f32 %v41, %v61
    %v63 = vmul.f32 %v46, %v61
    %v64 = vmul.f32 %v51, %v61
    %v65 = vmul.f32 %v56, %v61
    %v66 = vlaneseq
    %v67 = vshrl.u32 %v66, 7
    %v68 = vsub.s32 1, %v67
    %v69 = vrot.slane %v33, %v68
    %v70 = vadd.f32 %v62, %v69
    %v71 = vadd.f32 %v63, %v69
    %v72 = vadd.f32 %v64, %v69
    %v73 = vadd.f32 %v65, %v69
    %v74 = vld [vmem:[%s3] sm:$0xff]
    %v75 = vld [vmem:[%s3 + $0x8] sm:$0xff]
    %v76 = vld [vmem:[%s3 + $0x10] sm:$0xff]
    %v77 = vld [vmem:[%s3 + $0x18] sm:$0xff]
    %v78 = vld [vmem:[%s5] sm:$0xff]
    %v79 = vld [vmem:[%s5 + $0x8] sm:$0xff]
    %v80 = vld [vmem:[%s5 + $0x10] sm:$0xff]
    %v81 = vld [vmem:[%s5 + $0x18] sm:$0xff]
    %v82 = vld [vmem:[%s8] sm:$0xff]
    %vm83 = vcmask 261120
    %v85 = vsel %vm83, %v70, 0
    %v88 = vsel %vm83, %v71, 0
    %v91 = vsel %vm83, %v72, 0
    %v94 = vsel %vm83, %v73, 0
    %96 = vmatprep.subr.mxu0 0.0
    %97 = vmatpush1.msra.mxu0 %v78
    %98 = vmatprep.subr.mxu0 0.0
    %99 = vmatpush1.msra.mxu0 %v79
    %100 = vmatprep.subr.mxu0 0.0
    %101 = vmatpush1.msra.mxu0 %v80
    %102 = vmatprep.subr.mxu0 0.0
    %103 = vmatpush1.msra.mxu0 %v81
    %104 = vmatprep.subr.mxu0 0.0
    %105 = vmatpush1.msra.mxu0 0.0
    %106 = vmatprep.subr.mxu0 0.0
    %107 = vmatpush1.msra.mxu0 0.0
    %108 = vmatprep.subr.mxu0 0.0
    %109 = vmatpush1.msra.mxu0 0.0
    %110 = vmatprep.subr.mxu0 0.0
    %111 = vmatpush1.msra.mxu0 0.0
    %112 = vmatprep.subr.mxu0 0.0
    %113 = vmatpush1.msra.mxu0 0.0
    %114 = vmatprep.subr.mxu0 0.0
    %115 = vmatpush1.msra.mxu0 0.0
    %116 = vmatprep.subr.mxu0 0.0
    %117 = vmatpush1.msra.mxu0 0.0
    %118 = vmatprep.subr.mxu0 0.0
    %119 = vmatpush1.msra.mxu0 0.0
    %120 = vmatprep.subr.mxu0 0.0
    %121 = vmatpush1.msra.mxu0 0.0
    %122 = vmatprep.subr.mxu0 0.0
    %123 = vmatpush1.msra.mxu0 0.0
    %124 = vmatprep.subr.mxu0 0.0
    %125 = vmatpush1.msra.mxu0 0.0
    %126 = vmatprep.subr.mxu0 0.0
    %127 = vmatpush1.msra.mxu0 0.0
    %128 = vmatprep.subr.mxu0 0.0
    %129 = vmatpush1.msra.mxu0 0.0
    %130 = vmatprep.subr.mxu0 0.0
    %131 = vmatpush1.msra.mxu0 0.0
    %132 = vmatprep.subr.mxu0 0.0
    %133 = vmatpush1.msra.mxu0 0.0
    %134 = vmatprep.subr.mxu0 0.0
    %135 = vmatpush1.msra.mxu0 0.0
    %136 = vmatprep.subr.mxu0 0.0
    %137 = vmatpush1.msra.mxu0 0.0
    %138 = vmatprep.subr.mxu0 0.0
    %139 = vmatpush1.msra.mxu0 0.0
    %140 = vmatprep.subr.mxu0 0.0
    %141 = vmatpush1.msra.mxu0 0.0
    %142 = vmatprep.subr.mxu0 0.0
    %143 = vmatpush1.msra.mxu0 0.0
    %144 = vmatprep.subr.mxu0 0.0
    %145 = vmatpush1.msra.mxu0 0.0
    %146 = vmatprep.subr.mxu0 0.0
    %147 = vmatpush1.msra.mxu0 0.0
    %148 = vmatprep.subr.mxu0 0.0
    %149 = vmatpush1.msra.mxu0 0.0
    %150 = vmatprep.subr.mxu0 0.0
    %151 = vmatpush1.msra.mxu0 0.0
    %152 = vmatprep.subr.mxu0 0.0
    %153 = vmatpush1.msra.mxu0 0.0
    %154 = vmatprep.subr.mxu0 0.0
    %155 = vmatpush1.msra.mxu0 0.0
    %156 = vmatprep.subr.mxu0 0.0
    %157 = vmatpush1.msra.mxu0 0.0
    %158 = vmatprep.subr.mxu0 0.0
    %159 = vmatpush1.msra.mxu0 0.0
    %160 = vmatprep.mubr.f32.mxu0 0.0
    %161 = vmatmul.mubr.f32.gmra.mrb[0].mxu0 %v85
    %v162 = vpop.f32.mrb[0].mxu0
    %v163 = vadd.f32 0.0, %v162
    %v164 = vpop.f32.mrb[0].mxu0
    %165 = vmatprep.mubr.f32.mxu0 0.0
    %166 = vmatmul.mubr.f32.gmra.mrb[0].mxu0 %v88
    %v167 = vpop.f32.mrb[0].mxu0
    %v168 = vadd.f32 0.0, %v167
    %v169 = vpop.f32.mrb[0].mxu0
    %170 = vmatprep.mubr.f32.mxu0 0.0
    %171 = vmatmul.mubr.f32.gmra.mrb[0].mxu0 %v91
    %v172 = vpop.f32.mrb[0].mxu0
    %v173 = vadd.f32 0.0, %v172
    %v174 = vpop.f32.mrb[0].mxu0
    %175 = vmatprep.mubr.f32.mxu0 0.0
    %176 = vmatmul.mubr.f32.gmra.mrb[0].mxu0 %v94
    %v177 = vpop.f32.mrb[0].mxu0
    %v178 = vadd.f32 0.0, %v177
    %v179 = vpop.f32.mrb[0].mxu0
    %180 = vdwg.mxu0
    %v181 = vlaneseq
    %v182 = vshrl.u32 %v181, 7
    %v183 = vsub.s32 0, %v182
    %v184 = vrot.slane %v82, %v183
    %v185 = vadd.f32 %v163, %v184
    %v186 = vadd.f32 %v168, %v184
    %v187 = vadd.f32 %v173, %v184
    %v188 = vadd.f32 %v178, %v184
    %193 = vrot.lane.b32.xlu0 %v185, 96
    %v194 = vpop.permute.xlu0 %193
    %195 = vrot.lane.b32.xlu0 %v186, 96
    %v196 = vpop.permute.xlu0 %195
    %197 = vrot.lane.b32.xlu0 %v187, 96
    %v198 = vpop.permute.xlu0 %197
    %199 = vrot.lane.b32.xlu0 %v188, 96
    %v200 = vpop.permute.xlu0 %199
    %vm201 = vcmask 64512
    %v202 = vsel %vm201, %v185, 0
    %v204 = vsel %vm201, %v186, 0
    %v206 = vsel %vm201, %v187, 0
    %v208 = vsel %vm201, %v188, 0
    %v210 = vsel %vm201, %v194, 0
    %v212 = vsel %vm201, %v196, 0
    %v214 = vsel %vm201, %v198, 0
    %v216 = vsel %vm201, %v200, 0
    %218 = vmatprep.subr.mxu0 0.0
    %219 = vmatpush1.xpose.msra.mxu0 %v210
    %220 = vmatprep.subr.mxu0 0.0
    %221 = vmatpush1.xpose.msra.mxu0 %v212
    %222 = vmatprep.subr.mxu0 0.0
    %223 = vmatpush1.xpose.msra.mxu0 %v214
    %224 = vmatprep.subr.mxu0 0.0
    %225 = vmatpush1.xpose.msra.mxu0 %v216
    %226 = vmatprep.subr.mxu0 0.0
    %227 = vmatpush1.xpose.msra.mxu0 0.0
    %228 = vmatprep.subr.mxu0 0.0
    %229 = vmatpush1.xpose.msra.mxu0 0.0
    %230 = vmatprep.subr.mxu0 0.0
    %231 = vmatpush1.xpose.msra.mxu0 0.0
    %232 = vmatprep.subr.mxu0 0.0
    %233 = vmatpush1.xpose.msra.mxu0 0.0
    %234 = vmatprep.subr.mxu0 0.0
    %235 = vmatpush1.xpose.msra.mxu0 0.0
    %236 = vmatprep.subr.mxu0 0.0
    %237 = vmatpush1.xpose.msra.mxu0 0.0
    %238 = vmatprep.subr.mxu0 0.0
    %239 = vmatpush1.xpose.msra.mxu0 0.0
    %240 = vmatprep.subr.mxu0 0.0
    %241 = vmatpush1.xpose.msra.mxu0 0.0
    %242 = vmatprep.subr.mxu0 0.0
    %243 = vmatpush1.xpose.msra.mxu0 0.0
    %244 = vmatprep.subr.mxu0 0.0
    %245 = vmatpush1.xpose.msra.mxu0 0.0
    %246 = vmatprep.subr.mxu0 0.0
    %247 = vmatpush1.xpose.msra.mxu0 0.0
    %248 = vmatprep.subr.mxu0 0.0
    %249 = vmatpush1.xpose.msra.mxu0 0.0
    %250 = vmatprep.subr.mxu0 0.0
    %251 = vmatpush1.xpose.msra.mxu0 0.0
    %252 = vmatprep.subr.mxu0 0.0
    %253 = vmatpush1.xpose.msra.mxu0 0.0
    %254 = vmatprep.subr.mxu0 0.0
    %255 = vmatpush1.xpose.msra.mxu0 0.0
    %256 = vmatprep.subr.mxu0 0.0
    %257 = vmatpush1.xpose.msra.mxu0 0.0
    %258 = vmatprep.subr.mxu0 0.0
    %259 = vmatpush1.xpose.msra.mxu0 0.0
    %260 = vmatprep.subr.mxu0 0.0
    %261 = vmatpush1.xpose.msra.mxu0 0.0
    %262 = vmatprep.subr.mxu0 0.0
    %263 = vmatpush1.xpose.msra.mxu0 0.0
    %264 = vmatprep.subr.mxu0 0.0
    %265 = vmatpush1.xpose.msra.mxu0 0.0
    %266 = vmatprep.subr.mxu0 0.0
    %267 = vmatpush1.xpose.msra.mxu0 0.0
    %268 = vmatprep.subr.mxu0 0.0
    %269 = vmatpush1.xpose.msra.mxu0 0.0
    %270 = vmatprep.subr.mxu0 0.0
    %271 = vmatpush1.xpose.msra.mxu0 0.0
    %272 = vmatprep.subr.mxu0 0.0
    %273 = vmatpush1.xpose.msra.mxu0 0.0
    %274 = vmatprep.subr.mxu0 0.0
    %275 = vmatpush1.xpose.msra.mxu0 0.0
    %276 = vmatprep.subr.mxu0 0.0
    %277 = vmatpush1.xpose.msra.mxu0 0.0
    %278 = vmatprep.subr.mxu0 0.0
    %279 = vmatpush1.xpose.msra.mxu0 0.0
    %280 = vmatprep.subr.mxu0 0.0
    %281 = vmatpush1.xpose.msra.mxu0 0.0
    %282 = vmatprep.mubr.f32.mxu0 0.0
    %283 = vmatmul.mubr.f32.gmra.mrb[0].mxu0 %v202
    %v284 = vpop.f32.mrb[0].mxu0
    %v285 = vadd.f32 0.0, %v284
    %v286 = vpop.f32.mrb[0].mxu0
    %287 = vmatprep.mubr.f32.mxu0 0.0
    %288 = vmatmul.mubr.f32.gmra.mrb[0].mxu0 %v204
    %v289 = vpop.f32.mrb[0].mxu0
    %v290 = vadd.f32 0.0, %v289
    %v291 = vpop.f32.mrb[0].mxu0
    %292 = vmatprep.mubr.f32.mxu0 0.0
    %293 = vmatmul.mubr.f32.gmra.mrb[0].mxu0 %v206
    %v294 = vpop.f32.mrb[0].mxu0
    %v295 = vadd.f32 0.0, %v294
    %v296 = vpop.f32.mrb[0].mxu0
    %297 = vmatprep.mubr.f32.mxu0 0.0
    %298 = vmatmul.mubr.f32.gmra.mrb[0].mxu0 %v208
    %v299 = vpop.f32.mrb[0].mxu0
    %v300 = vadd.f32 0.0, %v299
    %v301 = vpop.f32.mrb[0].mxu0
    %302 = vdwg.mxu0
    %v303 = vmul.f32 %v285, 0.35355338
    %v304 = vmul.f32 %v290, 0.35355338
    %v305 = vmul.f32 %v295, 0.35355338
    %v306 = vmul.f32 %v300, 0.35355338
    %v307 = vadd.f32 %v303, %v74
    %v308 = vadd.f32 %v304, %v75
    %v309 = vadd.f32 %v305, %v76
    %v310 = vadd.f32 %v306, %v77
    %v311 = vsel %vm83, %v307, -inf
    %312 = vmax.xlane.f32.xlu0 %v311
    %v313 = vpop.xlane.xlu0 %312
    %v314 = vsel %vm83, %v308, -inf
    %315 = vmax.xlane.f32.xlu0 %v314
    %v316 = vpop.xlane.xlu0 %315
    %v317 = vsel %vm83, %v309, -inf
    %318 = vmax.xlane.f32.xlu0 %v317
    %v319 = vpop.xlane.xlu0 %318
    %v320 = vsel %vm83, %v310, -inf
    %321 = vmax.xlane.f32.xlu0 %v320
    %v322 = vpop.xlane.xlu0 %321
    %v323 = vsub.f32 %v307, %v313
    %v324 = vsub.f32 %v308, %v316
    %v325 = vsub.f32 %v309, %v319
    %v326 = vsub.f32 %v310, %v322
    %v327 = vmul.f32 %v323, 1.442695
    %v328 = vpow.pop %v327
    %v329 = vmul.f32 %v324, 1.442695
    %v330 = vpow.pop %v329
    %v331 = vmul.f32 %v325, 1.442695
    %v332 = vpow.pop %v331
    %v333 = vmul.f32 %v326, 1.442695
    %v334 = vpow.pop %v333
    %v335 = vsel %vm83, %v328, 0.0
    %336 = vadd.xlane.f32.xlu0 %v335
    %v337 = vpop.xlane.xlu0 %336
    %v338 = vsel %vm83, %v330, 0.0
    %339 = vadd.xlane.f32.xlu0 %v338
    %v340 = vpop.xlane.xlu0 %339
    %v341 = vsel %vm83, %v332, 0.0
    %342 = vadd.xlane.f32.xlu0 %v341
    %v343 = vpop.xlane.xlu0 %342
    %v344 = vsel %vm83, %v334, 0.0
    %345 = vadd.xlane.f32.xlu0 %v344
    %v346 = vpop.xlane.xlu0 %345
    %v347 = vrcp.pop %v337
    %v348 = vrcp.pop %v340
    %v349 = vrcp.pop %v343
    %v350 = vrcp.pop %v346
    %v351 = vmul.f32 %v328, %v347
    %v352 = vmul.f32 %v330, %v348
    %v353 = vmul.f32 %v332, %v349
    %v354 = vmul.f32 %v334, %v350
    %355 = vrot.lane.b32.xlu0 %v185, 64
    %v356 = vpop.permute.xlu0 %355
    %357 = vrot.lane.b32.xlu0 %v186, 64
    %v358 = vpop.permute.xlu0 %357
    %359 = vrot.lane.b32.xlu0 %v187, 64
    %v360 = vpop.permute.xlu0 %359
    %361 = vrot.lane.b32.xlu0 %v188, 64
    %v362 = vpop.permute.xlu0 %361
    %v368 = vsel %vm83, %v351, 0
    %v371 = vsel %vm83, %v352, 0
    %v374 = vsel %vm83, %v353, 0
    %v377 = vsel %vm83, %v354, 0
    %379 = vmatprep.subr.mxu0 0.0
    %380 = vmatpush1.msra.mxu0 %v356
    %381 = vmatprep.subr.mxu0 0.0
    %382 = vmatpush1.msra.mxu0 %v358
    %383 = vmatprep.subr.mxu0 0.0
    %384 = vmatpush1.msra.mxu0 %v360
    %385 = vmatprep.subr.mxu0 0.0
    %386 = vmatpush1.msra.mxu0 %v362
    %387 = vmatprep.subr.mxu0 0.0
    %388 = vmatpush1.msra.mxu0 0.0
    %389 = vmatprep.subr.mxu0 0.0
    %390 = vmatpush1.msra.mxu0 0.0
    %391 = vmatprep.subr.mxu0 0.0
    %392 = vmatpush1.msra.mxu0 0.0
    %393 = vmatprep.subr.mxu0 0.0
    %394 = vmatpush1.msra.mxu0 0.0
    %395 = vmatprep.subr.mxu0 0.0
    %396 = vmatpush1.msra.mxu0 0.0
    %397 = vmatprep.subr.mxu0 0.0
    %398 = vmatpush1.msra.mxu0 0.0
    %399 = vmatprep.subr.mxu0 0.0
    %400 = vmatpush1.msra.mxu0 0.0
    %401 = vmatprep.subr.mxu0 0.0
    %402 = vmatpush1.msra.mxu0 0.0
    %403 = vmatprep.subr.mxu0 0.0
    %404 = vmatpush1.msra.mxu0 0.0
    %405 = vmatprep.subr.mxu0 0.0
    %406 = vmatpush1.msra.mxu0 0.0
    %407 = vmatprep.subr.mxu0 0.0
    %408 = vmatpush1.msra.mxu0 0.0
    %409 = vmatprep.subr.mxu0 0.0
    %410 = vmatpush1.msra.mxu0 0.0
    %411 = vmatprep.subr.mxu0 0.0
    %412 = vmatpush1.msra.mxu0 0.0
    %413 = vmatprep.subr.mxu0 0.0
    %414 = vmatpush1.msra.mxu0 0.0
    %415 = vmatprep.subr.mxu0 0.0
    %416 = vmatpush1.msra.mxu0 0.0
    %417 = vmatprep.subr.mxu0 0.0
    %418 = vmatpush1.msra.mxu0 0.0
    %419 = vmatprep.subr.mxu0 0.0
    %420 = vmatpush1.msra.mxu0 0.0
    %421 = vmatprep.subr.mxu0 0.0
    %422 = vmatpush1.msra.mxu0 0.0
    %423 = vmatprep.subr.mxu0 0.0
    %424 = vmatpush1.msra.mxu0 0.0
    %425 = vmatprep.subr.mxu0 0.0
    %426 = vmatpush1.msra.mxu0 0.0
    %427 = vmatprep.subr.mxu0 0.0
    %428 = vmatpush1.msra.mxu0 0.0
    %429 = vmatprep.subr.mxu0 0.0
    %430 = vmatpush1.msra.mxu0 0.0
    %431 = vmatprep.subr.mxu0 0.0
    %432 = vmatpush1.msra.mxu0 0.0
    %433 = vmatprep.subr.mxu0 0.0
    %434 = vmatpush1.msra.mxu0 0.0
    %435 = vmatprep.subr.mxu0 0.0
    %436 = vmatpush1.msra.mxu0 0.0
    %437 = vmatprep.subr.mxu0 0.0
    %438 = vmatpush1.msra.mxu0 0.0
    %439 = vmatprep.subr.mxu0 0.0
    %440 = vmatpush1.msra.mxu0 0.0
    %441 = vmatprep.subr.mxu0 0.0
    %442 = vmatpush1.msra.mxu0 0.0
    %443 = vmatprep.mubr.f32.mxu0 0.0
    %444 = vmatmul.mubr.f32.gmra.mrb[0].mxu0 %v368
    %v445 = vpop.f32.mrb[0].mxu0
    %v446 = vadd.f32 0.0, %v445
    %v447 = vpop.f32.mrb[0].mxu0
    %448 = vmatprep.mubr.f32.mxu0 0.0
    %449 = vmatmul.mubr.f32.gmra.mrb[0].mxu0 %v371
    %v450 = vpop.f32.mrb[0].mxu0
    %v451 = vadd.f32 0.0, %v450
    %v452 = vpop.f32.mrb[0].mxu0
    %453 = vmatprep.mubr.f32.mxu0 0.0
    %454 = vmatmul.mubr.f32.gmra.mrb[0].mxu0 %v374
    %v455 = vpop.f32.mrb[0].mxu0
    %v456 = vadd.f32 0.0, %v455
    %v457 = vpop.f32.mrb[0].mxu0
    %458 = vmatprep.mubr.f32.mxu0 0.0
    %459 = vmatmul.mubr.f32.gmra.mrb[0].mxu0 %v377
    %v460 = vpop.f32.mrb[0].mxu0
    %v461 = vadd.f32 0.0, %v460
    %v462 = vpop.f32.mrb[0].mxu0
    %463 = vdwg.mxu0
    %464 = vrot.lane.b32.xlu0 %v185, 120
    %v465 = vpop.permute.xlu0 %464
    %466 = vrot.lane.b32.xlu0 %v186, 120
    %v467 = vpop.permute.xlu0 %466
    %468 = vrot.lane.b32.xlu0 %v187, 120
    %v469 = vpop.permute.xlu0 %468
    %470 = vrot.lane.b32.xlu0 %v188, 120
    %v471 = vpop.permute.xlu0 %470
    %472 = vrot.lane.b32.xlu0 %v185, 88
    %v473 = vpop.permute.xlu0 %472
    %474 = vrot.lane.b32.xlu0 %v186, 88
    %v475 = vpop.permute.xlu0 %474
    %476 = vrot.lane.b32.xlu0 %v187, 88
    %v477 = vpop.permute.xlu0 %476
    %478 = vrot.lane.b32.xlu0 %v188, 88
    %v479 = vpop.permute.xlu0 %478
    %v480 = vsel %vm201, %v465, 0
    %v482 = vsel %vm201, %v467, 0
    %v484 = vsel %vm201, %v469, 0
    %v486 = vsel %vm201, %v471, 0
    %v488 = vsel %vm201, %v473, 0
    %v490 = vsel %vm201, %v475, 0
    %v492 = vsel %vm201, %v477, 0
    %v494 = vsel %vm201, %v479, 0
    %496 = vmatprep.subr.mxu0 0.0
    %497 = vmatpush1.xpose.msra.mxu0 %v488
    %498 = vmatprep.subr.mxu0 0.0
    %499 = vmatpush1.xpose.msra.mxu0 %v490
    %500 = vmatprep.subr.mxu0 0.0
    %501 = vmatpush1.xpose.msra.mxu0 %v492
    %502 = vmatprep.subr.mxu0 0.0
    %503 = vmatpush1.xpose.msra.mxu0 %v494
    %504 = vmatprep.subr.mxu0 0.0
    %505 = vmatpush1.xpose.msra.mxu0 0.0
    %506 = vmatprep.subr.mxu0 0.0
    %507 = vmatpush1.xpose.msra.mxu0 0.0
    %508 = vmatprep.subr.mxu0 0.0
    %509 = vmatpush1.xpose.msra.mxu0 0.0
    %510 = vmatprep.subr.mxu0 0.0
    %511 = vmatpush1.xpose.msra.mxu0 0.0
    %512 = vmatprep.subr.mxu0 0.0
    %513 = vmatpush1.xpose.msra.mxu0 0.0
    %514 = vmatprep.subr.mxu0 0.0
    %515 = vmatpush1.xpose.msra.mxu0 0.0
    %516 = vmatprep.subr.mxu0 0.0
    %517 = vmatpush1.xpose.msra.mxu0 0.0
    %518 = vmatprep.subr.mxu0 0.0
    %519 = vmatpush1.xpose.msra.mxu0 0.0
    %520 = vmatprep.subr.mxu0 0.0
    %521 = vmatpush1.xpose.msra.mxu0 0.0
    %522 = vmatprep.subr.mxu0 0.0
    %523 = vmatpush1.xpose.msra.mxu0 0.0
    %524 = vmatprep.subr.mxu0 0.0
    %525 = vmatpush1.xpose.msra.mxu0 0.0
    %526 = vmatprep.subr.mxu0 0.0
    %527 = vmatpush1.xpose.msra.mxu0 0.0
    %528 = vmatprep.subr.mxu0 0.0
    %529 = vmatpush1.xpose.msra.mxu0 0.0
    %530 = vmatprep.subr.mxu0 0.0
    %531 = vmatpush1.xpose.msra.mxu0 0.0
    %532 = vmatprep.subr.mxu0 0.0
    %533 = vmatpush1.xpose.msra.mxu0 0.0
    %534 = vmatprep.subr.mxu0 0.0
    %535 = vmatpush1.xpose.msra.mxu0 0.0
    %536 = vmatprep.subr.mxu0 0.0
    %537 = vmatpush1.xpose.msra.mxu0 0.0
    %538 = vmatprep.subr.mxu0 0.0
    %539 = vmatpush1.xpose.msra.mxu0 0.0
    %540 = vmatprep.subr.mxu0 0.0
    %541 = vmatpush1.xpose.msra.mxu0 0.0
    %542 = vmatprep.subr.mxu0 0.0
    %543 = vmatpush1.xpose.msra.mxu0 0.0
    %544 = vmatprep.subr.mxu0 0.0
    %545 = vmatpush1.xpose.msra.mxu0 0.0
    %546 = vmatprep.subr.mxu0 0.0
    %547 = vmatpush1.xpose.msra.mxu0 0.0
    %548 = vmatprep.subr.mxu0 0.0
    %549 = vmatpush1.xpose.msra.mxu0 0.0
    %550 = vmatprep.subr.mxu0 0.0
    %551 = vmatpush1.xpose.msra.mxu0 0.0
    %552 = vmatprep.subr.mxu0 0.0
    %553 = vmatpush1.xpose.msra.mxu0 0.0
    %554 = vmatprep.subr.mxu0 0.0
    %555 = vmatpush1.xpose.msra.mxu0 0.0
    %556 = vmatprep.subr.mxu0 0.0
    %557 = vmatpush1.xpose.msra.mxu0 0.0
    %558 = vmatprep.subr.mxu0 0.0
    %559 = vmatpush1.xpose.msra.mxu0 0.0
    %560 = vmatprep.mubr.f32.mxu0 0.0
    %561 = vmatmul.mubr.f32.gmra.mrb[0].mxu0 %v480
    %v562 = vpop.f32.mrb[0].mxu0
    %v563 = vadd.f32 0.0, %v562
    %v564 = vpop.f32.mrb[0].mxu0
    %565 = vmatprep.mubr.f32.mxu0 0.0
    %566 = vmatmul.mubr.f32.gmra.mrb[0].mxu0 %v482
    %v567 = vpop.f32.mrb[0].mxu0
    %v568 = vadd.f32 0.0, %v567
    %v569 = vpop.f32.mrb[0].mxu0
    %570 = vmatprep.mubr.f32.mxu0 0.0
    %571 = vmatmul.mubr.f32.gmra.mrb[0].mxu0 %v484
    %v572 = vpop.f32.mrb[0].mxu0
    %v573 = vadd.f32 0.0, %v572
    %v574 = vpop.f32.mrb[0].mxu0
    %575 = vmatprep.mubr.f32.mxu0 0.0
    %576 = vmatmul.mubr.f32.gmra.mrb[0].mxu0 %v486
    %v577 = vpop.f32.mrb[0].mxu0
    %v578 = vadd.f32 0.0, %v577
    %v579 = vpop.f32.mrb[0].mxu0
    %580 = vdwg.mxu0
    %v581 = vmul.f32 %v563, 0.35355338
    %v582 = vmul.f32 %v568, 0.35355338
    %v583 = vmul.f32 %v573, 0.35355338
    %v584 = vmul.f32 %v578, 0.35355338
    %v585 = vadd.f32 %v581, %v74
    %v586 = vadd.f32 %v582, %v75
    %v587 = vadd.f32 %v583, %v76
    %v588 = vadd.f32 %v584, %v77
    %v589 = vsel %vm83, %v585, -inf
    %590 = vmax.xlane.f32.xlu0 %v589
    %v591 = vpop.xlane.xlu0 %590
    %v592 = vsel %vm83, %v586, -inf
    %593 = vmax.xlane.f32.xlu0 %v592
    %v594 = vpop.xlane.xlu0 %593
    %v595 = vsel %vm83, %v587, -inf
    %596 = vmax.xlane.f32.xlu0 %v595
    %v597 = vpop.xlane.xlu0 %596
    %v598 = vsel %vm83, %v588, -inf
    %599 = vmax.xlane.f32.xlu0 %v598
    %v600 = vpop.xlane.xlu0 %599
    %v601 = vsub.f32 %v585, %v591
    %v602 = vsub.f32 %v586, %v594
    %v603 = vsub.f32 %v587, %v597
    %v604 = vsub.f32 %v588, %v600
    %v605 = vmul.f32 %v601, 1.442695
    %v606 = vpow.pop %v605
    %v607 = vmul.f32 %v602, 1.442695
    %v608 = vpow.pop %v607
    %v609 = vmul.f32 %v603, 1.442695
    %v610 = vpow.pop %v609
    %v611 = vmul.f32 %v604, 1.442695
    %v612 = vpow.pop %v611
    %v613 = vsel %vm83, %v606, 0.0
    %614 = vadd.xlane.f32.xlu0 %v613
    %v615 = vpop.xlane.xlu0 %614
    %v616 = vsel %vm83, %v608, 0.0
    %617 = vadd.xlane.f32.xlu0 %v616
    %v618 = vpop.xlane.xlu0 %617
    %v619 = vsel %vm83, %v610, 0.0
    %620 = vadd.xlane.f32.xlu0 %v619
    %v621 = vpop.xlane.xlu0 %620
    %v622 = vsel %vm83, %v612, 0.0
    %623 = vadd.xlane.f32.xlu0 %v622
    %v624 = vpop.xlane.xlu0 %623
    %v625 = vrcp.pop %v615
    %v626 = vrcp.pop %v618
    %v627 = vrcp.pop %v621
    %v628 = vrcp.pop %v624
    %v629 = vmul.f32 %v606, %v625
    %v630 = vmul.f32 %v608, %v626
    %v631 = vmul.f32 %v610, %v627
    %v632 = vmul.f32 %v612, %v628
    %633 = vrot.lane.b32.xlu0 %v185, 56
    %v634 = vpop.permute.xlu0 %633
    %635 = vrot.lane.b32.xlu0 %v186, 56
    %v636 = vpop.permute.xlu0 %635
    %637 = vrot.lane.b32.xlu0 %v187, 56
    %v638 = vpop.permute.xlu0 %637
    %639 = vrot.lane.b32.xlu0 %v188, 56
    %v640 = vpop.permute.xlu0 %639
    %v646 = vsel %vm83, %v629, 0
    %v649 = vsel %vm83, %v630, 0
    %v652 = vsel %vm83, %v631, 0
    %v655 = vsel %vm83, %v632, 0
    %657 = vmatprep.subr.mxu0 0.0
    %658 = vmatpush1.msra.mxu0 %v634
    %659 = vmatprep.subr.mxu0 0.0
    %660 = vmatpush1.msra.mxu0 %v636
    %661 = vmatprep.subr.mxu0 0.0
    %662 = vmatpush1.msra.mxu0 %v638
    %663 = vmatprep.subr.mxu0 0.0
    %664 = vmatpush1.msra.mxu0 %v640
    %665 = vmatprep.subr.mxu0 0.0
    %666 = vmatpush1.msra.mxu0 0.0
    %667 = vmatprep.subr.mxu0 0.0
    %668 = vmatpush1.msra.mxu0 0.0
    %669 = vmatprep.subr.mxu0 0.0
    %670 = vmatpush1.msra.mxu0 0.0
    %671 = vmatprep.subr.mxu0 0.0
    %672 = vmatpush1.msra.mxu0 0.0
    %673 = vmatprep.subr.mxu0 0.0
    %674 = vmatpush1.msra.mxu0 0.0
    %675 = vmatprep.subr.mxu0 0.0
    %676 = vmatpush1.msra.mxu0 0.0
    %677 = vmatprep.subr.mxu0 0.0
    %678 = vmatpush1.msra.mxu0 0.0
    %679 = vmatprep.subr.mxu0 0.0
    %680 = vmatpush1.msra.mxu0 0.0
    %681 = vmatprep.subr.mxu0 0.0
    %682 = vmatpush1.msra.mxu0 0.0
    %683 = vmatprep.subr.mxu0 0.0
    %684 = vmatpush1.msra.mxu0 0.0
    %685 = vmatprep.subr.mxu0 0.0
    %686 = vmatpush1.msra.mxu0 0.0
    %687 = vmatprep.subr.mxu0 0.0
    %688 = vmatpush1.msra.mxu0 0.0
    %689 = vmatprep.subr.mxu0 0.0
    %690 = vmatpush1.msra.mxu0 0.0
    %691 = vmatprep.subr.mxu0 0.0
    %692 = vmatpush1.msra.mxu0 0.0
    %693 = vmatprep.subr.mxu0 0.0
    %694 = vmatpush1.msra.mxu0 0.0
    %695 = vmatprep.subr.mxu0 0.0
    %696 = vmatpush1.msra.mxu0 0.0
    %697 = vmatprep.subr.mxu0 0.0
    %698 = vmatpush1.msra.mxu0 0.0
    %699 = vmatprep.subr.mxu0 0.0
    %700 = vmatpush1.msra.mxu0 0.0
    %701 = vmatprep.subr.mxu0 0.0
    %702 = vmatpush1.msra.mxu0 0.0
    %703 = vmatprep.subr.mxu0 0.0
    %704 = vmatpush1.msra.mxu0 0.0
    %705 = vmatprep.subr.mxu0 0.0
    %706 = vmatpush1.msra.mxu0 0.0
    %707 = vmatprep.subr.mxu0 0.0
    %708 = vmatpush1.msra.mxu0 0.0
    %709 = vmatprep.subr.mxu0 0.0
    %710 = vmatpush1.msra.mxu0 0.0
    %711 = vmatprep.subr.mxu0 0.0
    %712 = vmatpush1.msra.mxu0 0.0
    %713 = vmatprep.subr.mxu0 0.0
    %714 = vmatpush1.msra.mxu0 0.0
    %715 = vmatprep.subr.mxu0 0.0
    %716 = vmatpush1.msra.mxu0 0.0
    %717 = vmatprep.subr.mxu0 0.0
    %718 = vmatpush1.msra.mxu0 0.0
    %719 = vmatprep.subr.mxu0 0.0
    %720 = vmatpush1.msra.mxu0 0.0
    %721 = vmatprep.mubr.f32.mxu0 0.0
    %722 = vmatmul.mubr.f32.gmra.mrb[0].mxu0 %v646
    %v723 = vpop.f32.mrb[0].mxu0
    %v724 = vadd.f32 0.0, %v723
    %v725 = vpop.f32.mrb[0].mxu0
    %726 = vmatprep.mubr.f32.mxu0 0.0
    %727 = vmatmul.mubr.f32.gmra.mrb[0].mxu0 %v649
    %v728 = vpop.f32.mrb[0].mxu0
    %v729 = vadd.f32 0.0, %v728
    %v730 = vpop.f32.mrb[0].mxu0
    %731 = vmatprep.mubr.f32.mxu0 0.0
    %732 = vmatmul.mubr.f32.gmra.mrb[0].mxu0 %v652
    %v733 = vpop.f32.mrb[0].mxu0
    %v734 = vadd.f32 0.0, %v733
    %v735 = vpop.f32.mrb[0].mxu0
    %736 = vmatprep.mubr.f32.mxu0 0.0
    %737 = vmatmul.mubr.f32.gmra.mrb[0].mxu0 %v655
    %v738 = vpop.f32.mrb[0].mxu0
    %v739 = vadd.f32 0.0, %v738
    %v740 = vpop.f32.mrb[0].mxu0
    %741 = vdwg.mxu0
    %742 = vrot.lane.b32.xlu0 %v185, 112
    %v743 = vpop.permute.xlu0 %742
    %744 = vrot.lane.b32.xlu0 %v186, 112
    %v745 = vpop.permute.xlu0 %744
    %746 = vrot.lane.b32.xlu0 %v187, 112
    %v747 = vpop.permute.xlu0 %746
    %748 = vrot.lane.b32.xlu0 %v188, 112
    %v749 = vpop.permute.xlu0 %748
    %750 = vrot.lane.b32.xlu0 %v185, 80
    %v751 = vpop.permute.xlu0 %750
    %752 = vrot.lane.b32.xlu0 %v186, 80
    %v753 = vpop.permute.xlu0 %752
    %754 = vrot.lane.b32.xlu0 %v187, 80
    %v755 = vpop.permute.xlu0 %754
    %756 = vrot.lane.b32.xlu0 %v188, 80
    %v757 = vpop.permute.xlu0 %756
    %v758 = vsel %vm201, %v743, 0
    %v760 = vsel %vm201, %v745, 0
    %v762 = vsel %vm201, %v747, 0
    %v764 = vsel %vm201, %v749, 0
    %v766 = vsel %vm201, %v751, 0
    %v768 = vsel %vm201, %v753, 0
    %v770 = vsel %vm201, %v755, 0
    %v772 = vsel %vm201, %v757, 0
    %774 = vmatprep.subr.mxu0 0.0
    %775 = vmatpush1.xpose.msra.mxu0 %v766
    %776 = vmatprep.subr.mxu0 0.0
    %777 = vmatpush1.xpose.msra.mxu0 %v768
    %778 = vmatprep.subr.mxu0 0.0
    %779 = vmatpush1.xpose.msra.mxu0 %v770
    %780 = vmatprep.subr.mxu0 0.0
    %781 = vmatpush1.xpose.msra.mxu0 %v772
    %782 = vmatprep.subr.mxu0 0.0
    %783 = vmatpush1.xpose.msra.mxu0 0.0
    %784 = vmatprep.subr.mxu0 0.0
    %785 = vmatpush1.xpose.msra.mxu0 0.0
    %786 = vmatprep.subr.mxu0 0.0
    %787 = vmatpush1.xpose.msra.mxu0 0.0
    %788 = vmatprep.subr.mxu0 0.0
    %789 = vmatpush1.xpose.msra.mxu0 0.0
    %790 = vmatprep.subr.mxu0 0.0
    %791 = vmatpush1.xpose.msra.mxu0 0.0
    %792 = vmatprep.subr.mxu0 0.0
    %793 = vmatpush1.xpose.msra.mxu0 0.0
    %794 = vmatprep.subr.mxu0 0.0
    %795 = vmatpush1.xpose.msra.mxu0 0.0
    %796 = vmatprep.subr.mxu0 0.0
    %797 = vmatpush1.xpose.msra.mxu0 0.0
    %798 = vmatprep.subr.mxu0 0.0
    %799 = vmatpush1.xpose.msra.mxu0 0.0
    %800 = vmatprep.subr.mxu0 0.0
    %801 = vmatpush1.xpose.msra.mxu0 0.0
    %802 = vmatprep.subr.mxu0 0.0
    %803 = vmatpush1.xpose.msra.mxu0 0.0
    %804 = vmatprep.subr.mxu0 0.0
    %805 = vmatpush1.xpose.msra.mxu0 0.0
    %806 = vmatprep.subr.mxu0 0.0
    %807 = vmatpush1.xpose.msra.mxu0 0.0
    %808 = vmatprep.subr.mxu0 0.0
    %809 = vmatpush1.xpose.msra.mxu0 0.0
    %810 = vmatprep.subr.mxu0 0.0
    %811 = vmatpush1.xpose.msra.mxu0 0.0
    %812 = vmatprep.subr.mxu0 0.0
    %813 = vmatpush1.xpose.msra.mxu0 0.0
    %814 = vmatprep.subr.mxu0 0.0
    %815 = vmatpush1.xpose.msra.mxu0 0.0
    %816 = vmatprep.subr.mxu0 0.0
    %817 = vmatpush1.xpose.msra.mxu0 0.0
    %818 = vmatprep.subr.mxu0 0.0
    %819 = vmatpush1.xpose.msra.mxu0 0.0
    %820 = vmatprep.subr.mxu0 0.0
    %821 = vmatpush1.xpose.msra.mxu0 0.0
    %822 = vmatprep.subr.mxu0 0.0
    %823 = vmatpush1.xpose.msra.mxu0 0.0
    %824 = vmatprep.subr.mxu0 0.0
    %825 = vmatpush1.xpose.msra.mxu0 0.0
    %826 = vmatprep.subr.mxu0 0.0
    %827 = vmatpush1.xpose.msra.mxu0 0.0
    %828 = vmatprep.subr.mxu0 0.0
    %829 = vmatpush1.xpose.msra.mxu0 0.0
    %830 = vmatprep.subr.mxu0 0.0
    %831 = vmatpush1.xpose.msra.mxu0 0.0
    %832 = vmatprep.subr.mxu0 0.0
    %833 = vmatpush1.xpose.msra.mxu0 0.0
    %834 = vmatprep.subr.mxu0 0.0
    %835 = vmatpush1.xpose.msra.mxu0 0.0
    %836 = vmatprep.subr.mxu0 0.0
    %837 = vmatpush1.xpose.msra.mxu0 0.0
    %838 = vmatprep.mubr.f32.mxu0 0.0
    %839 = vmatmul.mubr.f32.gmra.mrb[0].mxu0 %v758
    %v840 = vpop.f32.mrb[0].mxu0
    %v841 = vadd.f32 0.0, %v840
    %v842 = vpop.f32.mrb[0].mxu0
    %843 = vmatprep.mubr.f32.mxu0 0.0
    %844 = vmatmul.mubr.f32.gmra.mrb[0].mxu0 %v760
    %v845 = vpop.f32.mrb[0].mxu0
    %v846 = vadd.f32 0.0, %v845
    %v847 = vpop.f32.mrb[0].mxu0
    %848 = vmatprep.mubr.f32.mxu0 0.0
    %849 = vmatmul.mubr.f32.gmra.mrb[0].mxu0 %v762
    %v850 = vpop.f32.mrb[0].mxu0
    %v851 = vadd.f32 0.0, %v850
    %v852 = vpop.f32.mrb[0].mxu0
    %853 = vmatprep.mubr.f32.mxu0 0.0
    %854 = vmatmul.mubr.f32.gmra.mrb[0].mxu0 %v764
    %v855 = vpop.f32.mrb[0].mxu0
    %v856 = vadd.f32 0.0, %v855
    %v857 = vpop.f32.mrb[0].mxu0
    %858 = vdwg.mxu0
    %v859 = vmul.f32 %v841, 0.35355338
    %v860 = vmul.f32 %v846, 0.35355338
    %v861 = vmul.f32 %v851, 0.35355338
    %v862 = vmul.f32 %v856, 0.35355338
    %v863 = vadd.f32 %v859, %v74
    %v864 = vadd.f32 %v860, %v75
    %v865 = vadd.f32 %v861, %v76
    %v866 = vadd.f32 %v862, %v77
    %v867 = vsel %vm83, %v863, -inf
    %868 = vmax.xlane.f32.xlu0 %v867
    %v869 = vpop.xlane.xlu0 %868
    %v870 = vsel %vm83, %v864, -inf
    %871 = vmax.xlane.f32.xlu0 %v870
    %v872 = vpop.xlane.xlu0 %871
    %v873 = vsel %vm83, %v865, -inf
    %874 = vmax.xlane.f32.xlu0 %v873
    %v875 = vpop.xlane.xlu0 %874
    %v876 = vsel %vm83, %v866, -inf
    %877 = vmax.xlane.f32.xlu0 %v876
    %v878 = vpop.xlane.xlu0 %877
    %v879 = vsub.f32 %v863, %v869
    %v880 = vsub.f32 %v864, %v872
    %v881 = vsub.f32 %v865, %v875
    %v882 = vsub.f32 %v866, %v878
    %v883 = vmul.f32 %v879, 1.442695
    %v884 = vpow.pop %v883
    %v885 = vmul.f32 %v880, 1.442695
    %v886 = vpow.pop %v885
    %v887 = vmul.f32 %v881, 1.442695
    %v888 = vpow.pop %v887
    %v889 = vmul.f32 %v882, 1.442695
    %v890 = vpow.pop %v889
    %v891 = vsel %vm83, %v884, 0.0
    %892 = vadd.xlane.f32.xlu0 %v891
    %v893 = vpop.xlane.xlu0 %892
    %v894 = vsel %vm83, %v886, 0.0
    %895 = vadd.xlane.f32.xlu0 %v894
    %v896 = vpop.xlane.xlu0 %895
    %v897 = vsel %vm83, %v888, 0.0
    %898 = vadd.xlane.f32.xlu0 %v897
    %v899 = vpop.xlane.xlu0 %898
    %v900 = vsel %vm83, %v890, 0.0
    %901 = vadd.xlane.f32.xlu0 %v900
    %v902 = vpop.xlane.xlu0 %901
    %v903 = vrcp.pop %v893
    %v904 = vrcp.pop %v896
    %v905 = vrcp.pop %v899
    %v906 = vrcp.pop %v902
    %v907 = vmul.f32 %v884, %v903
    %v908 = vmul.f32 %v886, %v904
    %v909 = vmul.f32 %v888, %v905
    %v910 = vmul.f32 %v890, %v906
    %911 = vrot.lane.b32.xlu0 %v185, 48
    %v912 = vpop.permute.xlu0 %911
    %913 = vrot.lane.b32.xlu0 %v186, 48
    %v914 = vpop.permute.xlu0 %913
    %915 = vrot.lane.b32.xlu0 %v187, 48
    %v916 = vpop.permute.xlu0 %915
    %917 = vrot.lane.b32.xlu0 %v188, 48
    %v918 = vpop.permute.xlu0 %917
    %v924 = vsel %vm83, %v907, 0
    %v927 = vsel %vm83, %v908, 0
    %v930 = vsel %vm83, %v909, 0
    %v933 = vsel %vm83, %v910, 0
    %935 = vmatprep.subr.mxu0 0.0
    %936 = vmatpush1.msra.mxu0 %v912
    %937 = vmatprep.subr.mxu0 0.0
    %938 = vmatpush1.msra.mxu0 %v914
    %939 = vmatprep.subr.mxu0 0.0
    %940 = vmatpush1.msra.mxu0 %v916
    %941 = vmatprep.subr.mxu0 0.0
    %942 = vmatpush1.msra.mxu0 %v918
    %943 = vmatprep.subr.mxu0 0.0
    %944 = vmatpush1.msra.mxu0 0.0
    %945 = vmatprep.subr.mxu0 0.0
    %946 = vmatpush1.msra.mxu0 0.0
    %947 = vmatprep.subr.mxu0 0.0
    %948 = vmatpush1.msra.mxu0 0.0
    %949 = vmatprep.subr.mxu0 0.0
    %950 = vmatpush1.msra.mxu0 0.0
    %951 = vmatprep.subr.mxu0 0.0
    %952 = vmatpush1.msra.mxu0 0.0
    %953 = vmatprep.subr.mxu0 0.0
    %954 = vmatpush1.msra.mxu0 0.0
    %955 = vmatprep.subr.mxu0 0.0
    %956 = vmatpush1.msra.mxu0 0.0
    %957 = vmatprep.subr.mxu0 0.0
    %958 = vmatpush1.msra.mxu0 0.0
    %959 = vmatprep.subr.mxu0 0.0
    %960 = vmatpush1.msra.mxu0 0.0
    %961 = vmatprep.subr.mxu0 0.0
    %962 = vmatpush1.msra.mxu0 0.0
    %963 = vmatprep.subr.mxu0 0.0
    %964 = vmatpush1.msra.mxu0 0.0
    %965 = vmatprep.subr.mxu0 0.0
    %966 = vmatpush1.msra.mxu0 0.0
    %967 = vmatprep.subr.mxu0 0.0
    %968 = vmatpush1.msra.mxu0 0.0
    %969 = vmatprep.subr.mxu0 0.0
    %970 = vmatpush1.msra.mxu0 0.0
    %971 = vmatprep.subr.mxu0 0.0
    %972 = vmatpush1.msra.mxu0 0.0
    %973 = vmatprep.subr.mxu0 0.0
    %974 = vmatpush1.msra.mxu0 0.0
    %975 = vmatprep.subr.mxu0 0.0
    %976 = vmatpush1.msra.mxu0 0.0
    %977 = vmatprep.subr.mxu0 0.0
    %978 = vmatpush1.msra.mxu0 0.0
    %979 = vmatprep.subr.mxu0 0.0
    %980 = vmatpush1.msra.mxu0 0.0
    %981 = vmatprep.subr.mxu0 0.0
    %982 = vmatpush1.msra.mxu0 0.0
    %983 = vmatprep.subr.mxu0 0.0
    %984 = vmatpush1.msra.mxu0 0.0
    %985 = vmatprep.subr.mxu0 0.0
    %986 = vmatpush1.msra.mxu0 0.0
    %987 = vmatprep.subr.mxu0 0.0
    %988 = vmatpush1.msra.mxu0 0.0
    %989 = vmatprep.subr.mxu0 0.0
    %990 = vmatpush1.msra.mxu0 0.0
    %991 = vmatprep.subr.mxu0 0.0
    %992 = vmatpush1.msra.mxu0 0.0
    %993 = vmatprep.subr.mxu0 0.0
    %994 = vmatpush1.msra.mxu0 0.0
    %995 = vmatprep.subr.mxu0 0.0
    %996 = vmatpush1.msra.mxu0 0.0
    %997 = vmatprep.subr.mxu0 0.0
    %998 = vmatpush1.msra.mxu0 0.0
    %999 = vmatprep.mubr.f32.mxu0 0.0
    %1000 = vmatmul.mubr.f32.gmra.mrb[0].mxu0 %v924
    %v1001 = vpop.f32.mrb[0].mxu0
    %v1002 = vadd.f32 0.0, %v1001
    %v1003 = vpop.f32.mrb[0].mxu0
    %1004 = vmatprep.mubr.f32.mxu0 0.0
    %1005 = vmatmul.mubr.f32.gmra.mrb[0].mxu0 %v927
    %v1006 = vpop.f32.mrb[0].mxu0
    %v1007 = vadd.f32 0.0, %v1006
    %v1008 = vpop.f32.mrb[0].mxu0
    %1009 = vmatprep.mubr.f32.mxu0 0.0
    %1010 = vmatmul.mubr.f32.gmra.mrb[0].mxu0 %v930
    %v1011 = vpop.f32.mrb[0].mxu0
    %v1012 = vadd.f32 0.0, %v1011
    %v1013 = vpop.f32.mrb[0].mxu0
    %1014 = vmatprep.mubr.f32.mxu0 0.0
    %1015 = vmatmul.mubr.f32.gmra.mrb[0].mxu0 %v933
    %v1016 = vpop.f32.mrb[0].mxu0
    %v1017 = vadd.f32 0.0, %v1016
    %v1018 = vpop.f32.mrb[0].mxu0
    %1019 = vdwg.mxu0
    %1020 = vrot.lane.b32.xlu0 %v185, 104
    %v1021 = vpop.permute.xlu0 %1020
    %1022 = vrot.lane.b32.xlu0 %v186, 104
    %v1023 = vpop.permute.xlu0 %1022
    %1024 = vrot.lane.b32.xlu0 %v187, 104
    %v1025 = vpop.permute.xlu0 %1024
    %1026 = vrot.lane.b32.xlu0 %v188, 104
    %v1027 = vpop.permute.xlu0 %1026
    %1028 = vrot.lane.b32.xlu0 %v185, 72
    %v1029 = vpop.permute.xlu0 %1028
    %1030 = vrot.lane.b32.xlu0 %v186, 72
    %v1031 = vpop.permute.xlu0 %1030
    %1032 = vrot.lane.b32.xlu0 %v187, 72
    %v1033 = vpop.permute.xlu0 %1032
    %1034 = vrot.lane.b32.xlu0 %v188, 72
    %v1035 = vpop.permute.xlu0 %1034
    %v1036 = vsel %vm201, %v1021, 0
    %v1038 = vsel %vm201, %v1023, 0
    %v1040 = vsel %vm201, %v1025, 0
    %v1042 = vsel %vm201, %v1027, 0
    %v1044 = vsel %vm201, %v1029, 0
    %v1046 = vsel %vm201, %v1031, 0
    %v1048 = vsel %vm201, %v1033, 0
    %v1050 = vsel %vm201, %v1035, 0
    %1052 = vmatprep.subr.mxu0 0.0
    %1053 = vmatpush1.xpose.msra.mxu0 %v1044
    %1054 = vmatprep.subr.mxu0 0.0
    %1055 = vmatpush1.xpose.msra.mxu0 %v1046
    %1056 = vmatprep.subr.mxu0 0.0
    %1057 = vmatpush1.xpose.msra.mxu0 %v1048
    %1058 = vmatprep.subr.mxu0 0.0
    %1059 = vmatpush1.xpose.msra.mxu0 %v1050
    %1060 = vmatprep.subr.mxu0 0.0
    %1061 = vmatpush1.xpose.msra.mxu0 0.0
    %1062 = vmatprep.subr.mxu0 0.0
    %1063 = vmatpush1.xpose.msra.mxu0 0.0
    %1064 = vmatprep.subr.mxu0 0.0
    %1065 = vmatpush1.xpose.msra.mxu0 0.0
    %1066 = vmatprep.subr.mxu0 0.0
    %1067 = vmatpush1.xpose.msra.mxu0 0.0
    %1068 = vmatprep.subr.mxu0 0.0
    %1069 = vmatpush1.xpose.msra.mxu0 0.0
    %1070 = vmatprep.subr.mxu0 0.0
    %1071 = vmatpush1.xpose.msra.mxu0 0.0
    %1072 = vmatprep.subr.mxu0 0.0
    %1073 = vmatpush1.xpose.msra.mxu0 0.0
    %1074 = vmatprep.subr.mxu0 0.0
    %1075 = vmatpush1.xpose.msra.mxu0 0.0
    %1076 = vmatprep.subr.mxu0 0.0
    %1077 = vmatpush1.xpose.msra.mxu0 0.0
    %1078 = vmatprep.subr.mxu0 0.0
    %1079 = vmatpush1.xpose.msra.mxu0 0.0
    %1080 = vmatprep.subr.mxu0 0.0
    %1081 = vmatpush1.xpose.msra.mxu0 0.0
    %1082 = vmatprep.subr.mxu0 0.0
    %1083 = vmatpush1.xpose.msra.mxu0 0.0
    %1084 = vmatprep.subr.mxu0 0.0
    %1085 = vmatpush1.xpose.msra.mxu0 0.0
    %1086 = vmatprep.subr.mxu0 0.0
    %1087 = vmatpush1.xpose.msra.mxu0 0.0
    %1088 = vmatprep.subr.mxu0 0.0
    %1089 = vmatpush1.xpose.msra.mxu0 0.0
    %1090 = vmatprep.subr.mxu0 0.0
    %1091 = vmatpush1.xpose.msra.mxu0 0.0
    %1092 = vmatprep.subr.mxu0 0.0
    %1093 = vmatpush1.xpose.msra.mxu0 0.0
    %1094 = vmatprep.subr.mxu0 0.0
    %1095 = vmatpush1.xpose.msra.mxu0 0.0
    %1096 = vmatprep.subr.mxu0 0.0
    %1097 = vmatpush1.xpose.msra.mxu0 0.0
    %1098 = vmatprep.subr.mxu0 0.0
    %1099 = vmatpush1.xpose.msra.mxu0 0.0
    %1100 = vmatprep.subr.mxu0 0.0
    %1101 = vmatpush1.xpose.msra.mxu0 0.0
    %1102 = vmatprep.subr.mxu0 0.0
    %1103 = vmatpush1.xpose.msra.mxu0 0.0
    %1104 = vmatprep.subr.mxu0 0.0
    %1105 = vmatpush1.xpose.msra.mxu0 0.0
    %1106 = vmatprep.subr.mxu0 0.0
    %1107 = vmatpush1.xpose.msra.mxu0 0.0
    %1108 = vmatprep.subr.mxu0 0.0
    %1109 = vmatpush1.xpose.msra.mxu0 0.0
    %1110 = vmatprep.subr.mxu0 0.0
    %1111 = vmatpush1.xpose.msra.mxu0 0.0
    %1112 = vmatprep.subr.mxu0 0.0
    %1113 = vmatpush1.xpose.msra.mxu0 0.0
    %1114 = vmatprep.subr.mxu0 0.0
    %1115 = vmatpush1.xpose.msra.mxu0 0.0
    %1116 = vmatprep.mubr.f32.mxu0 0.0
    %1117 = vmatmul.mubr.f32.gmra.mrb[0].mxu0 %v1036
    %v1118 = vpop.f32.mrb[0].mxu0
    %v1119 = vadd.f32 0.0, %v1118
    %v1120 = vpop.f32.mrb[0].mxu0
    %1121 = vmatprep.mubr.f32.mxu0 0.0
    %1122 = vmatmul.mubr.f32.gmra.mrb[0].mxu0 %v1038
    %v1123 = vpop.f32.mrb[0].mxu0
    %v1124 = vadd.f32 0.0, %v1123
    %v1125 = vpop.f32.mrb[0].mxu0
    %1126 = vmatprep.mubr.f32.mxu0 0.0
    %1127 = vmatmul.mubr.f32.gmra.mrb[0].mxu0 %v1040
    %v1128 = vpop.f32.mrb[0].mxu0
    %v1129 = vadd.f32 0.0, %v1128
    %v1130 = vpop.f32.mrb[0].mxu0
    %1131 = vmatprep.mubr.f32.mxu0 0.0
    %1132 = vmatmul.mubr.f32.gmra.mrb[0].mxu0 %v1042
    %v1133 = vpop.f32.mrb[0].mxu0
    %v1134 = vadd.f32 0.0, %v1133
    %v1135 = vpop.f32.mrb[0].mxu0
    %1136 = vdwg.mxu0
    %v1137 = vmul.f32 %v1119, 0.35355338
    %v1138 = vmul.f32 %v1124, 0.35355338
    %v1139 = vmul.f32 %v1129, 0.35355338
    %v1140 = vmul.f32 %v1134, 0.35355338
    %v1141 = vadd.f32 %v1137, %v74
    %v1142 = vadd.f32 %v1138, %v75
    %v1143 = vadd.f32 %v1139, %v76
    %v1144 = vadd.f32 %v1140, %v77
    %v1145 = vsel %vm83, %v1141, -inf
    %1146 = vmax.xlane.f32.xlu0 %v1145
    %v1147 = vpop.xlane.xlu0 %1146
    %v1148 = vsel %vm83, %v1142, -inf
    %1149 = vmax.xlane.f32.xlu0 %v1148
    %v1150 = vpop.xlane.xlu0 %1149
    %v1151 = vsel %vm83, %v1143, -inf
    %1152 = vmax.xlane.f32.xlu0 %v1151
    %v1153 = vpop.xlane.xlu0 %1152
    %v1154 = vsel %vm83, %v1144, -inf
    %1155 = vmax.xlane.f32.xlu0 %v1154
    %v1156 = vpop.xlane.xlu0 %1155
    %v1157 = vsub.f32 %v1141, %v1147
    %v1158 = vsub.f32 %v1142, %v1150
    %v1159 = vsub.f32 %v1143, %v1153
    %v1160 = vsub.f32 %v1144, %v1156
    %v1161 = vmul.f32 %v1157, 1.442695
    %v1162 = vpow.pop %v1161
    %v1163 = vmul.f32 %v1158, 1.442695
    %v1164 = vpow.pop %v1163
    %v1165 = vmul.f32 %v1159, 1.442695
    %v1166 = vpow.pop %v1165
    %v1167 = vmul.f32 %v1160, 1.442695
    %v1168 = vpow.pop %v1167
    %v1169 = vsel %vm83, %v1162, 0.0
    %1170 = vadd.xlane.f32.xlu0 %v1169
    %v1171 = vpop.xlane.xlu0 %1170
    %v1172 = vsel %vm83, %v1164, 0.0
    %1173 = vadd.xlane.f32.xlu0 %v1172
    %v1174 = vpop.xlane.xlu0 %1173
    %v1175 = vsel %vm83, %v1166, 0.0
    %1176 = vadd.xlane.f32.xlu0 %v1175
    %v1177 = vpop.xlane.xlu0 %1176
    %v1178 = vsel %vm83, %v1168, 0.0
    %1179 = vadd.xlane.f32.xlu0 %v1178
    %v1180 = vpop.xlane.xlu0 %1179
    %v1181 = vrcp.pop %v1171
    %v1182 = vrcp.pop %v1174
    %v1183 = vrcp.pop %v1177
    %v1184 = vrcp.pop %v1180
    %v1185 = vmul.f32 %v1162, %v1181
    %v1186 = vmul.f32 %v1164, %v1182
    %v1187 = vmul.f32 %v1166, %v1183
    %v1188 = vmul.f32 %v1168, %v1184
    %1189 = vrot.lane.b32.xlu0 %v185, 40
    %v1190 = vpop.permute.xlu0 %1189
    %1191 = vrot.lane.b32.xlu0 %v186, 40
    %v1192 = vpop.permute.xlu0 %1191
    %1193 = vrot.lane.b32.xlu0 %v187, 40
    %v1194 = vpop.permute.xlu0 %1193
    %1195 = vrot.lane.b32.xlu0 %v188, 40
    %v1196 = vpop.permute.xlu0 %1195
    %v1202 = vsel %vm83, %v1185, 0
    %v1205 = vsel %vm83, %v1186, 0
    %v1208 = vsel %vm83, %v1187, 0
    %v1211 = vsel %vm83, %v1188, 0
    %1213 = vmatprep.subr.mxu0 0.0
    %1214 = vmatpush1.msra.mxu0 %v1190
    %1215 = vmatprep.subr.mxu0 0.0
    %1216 = vmatpush1.msra.mxu0 %v1192
    %1217 = vmatprep.subr.mxu0 0.0
    %1218 = vmatpush1.msra.mxu0 %v1194
    %1219 = vmatprep.subr.mxu0 0.0
    %1220 = vmatpush1.msra.mxu0 %v1196
    %1221 = vmatprep.subr.mxu0 0.0
    %1222 = vmatpush1.msra.mxu0 0.0
    %1223 = vmatprep.subr.mxu0 0.0
    %1224 = vmatpush1.msra.mxu0 0.0
    %1225 = vmatprep.subr.mxu0 0.0
    %1226 = vmatpush1.msra.mxu0 0.0
    %1227 = vmatprep.subr.mxu0 0.0
    %1228 = vmatpush1.msra.mxu0 0.0
    %1229 = vmatprep.subr.mxu0 0.0
    %1230 = vmatpush1.msra.mxu0 0.0
    %1231 = vmatprep.subr.mxu0 0.0
    %1232 = vmatpush1.msra.mxu0 0.0
    %1233 = vmatprep.subr.mxu0 0.0
    %1234 = vmatpush1.msra.mxu0 0.0
    %1235 = vmatprep.subr.mxu0 0.0
    %1236 = vmatpush1.msra.mxu0 0.0
    %1237 = vmatprep.subr.mxu0 0.0
    %1238 = vmatpush1.msra.mxu0 0.0
    %1239 = vmatprep.subr.mxu0 0.0
    %1240 = vmatpush1.msra.mxu0 0.0
    %1241 = vmatprep.subr.mxu0 0.0
    %1242 = vmatpush1.msra.mxu0 0.0
    %1243 = vmatprep.subr.mxu0 0.0
    %1244 = vmatpush1.msra.mxu0 0.0
    %1245 = vmatprep.subr.mxu0 0.0
    %1246 = vmatpush1.msra.mxu0 0.0
    %1247 = vmatprep.subr.mxu0 0.0
    %1248 = vmatpush1.msra.mxu0 0.0
    %1249 = vmatprep.subr.mxu0 0.0
    %1250 = vmatpush1.msra.mxu0 0.0
    %1251 = vmatprep.subr.mxu0 0.0
    %1252 = vmatpush1.msra.mxu0 0.0
    %1253 = vmatprep.subr.mxu0 0.0
    %1254 = vmatpush1.msra.mxu0 0.0
    %1255 = vmatprep.subr.mxu0 0.0
    %1256 = vmatpush1.msra.mxu0 0.0
    %1257 = vmatprep.subr.mxu0 0.0
    %1258 = vmatpush1.msra.mxu0 0.0
    %1259 = vmatprep.subr.mxu0 0.0
    %1260 = vmatpush1.msra.mxu0 0.0
    %1261 = vmatprep.subr.mxu0 0.0
    %1262 = vmatpush1.msra.mxu0 0.0
    %1263 = vmatprep.subr.mxu0 0.0
    %1264 = vmatpush1.msra.mxu0 0.0
    %1265 = vmatprep.subr.mxu0 0.0
    %1266 = vmatpush1.msra.mxu0 0.0
    %1267 = vmatprep.subr.mxu0 0.0
    %1268 = vmatpush1.msra.mxu0 0.0
    %1269 = vmatprep.subr.mxu0 0.0
    %1270 = vmatpush1.msra.mxu0 0.0
    %1271 = vmatprep.subr.mxu0 0.0
    %1272 = vmatpush1.msra.mxu0 0.0
    %1273 = vmatprep.subr.mxu0 0.0
    %1274 = vmatpush1.msra.mxu0 0.0
    %1275 = vmatprep.subr.mxu0 0.0
    %1276 = vmatpush1.msra.mxu0 0.0
    %1277 = vmatprep.mubr.f32.mxu0 0.0
    %1278 = vmatmul.mubr.f32.gmra.mrb[0].mxu0 %v1202
    %v1279 = vpop.f32.mrb[0].mxu0
    %v1280 = vadd.f32 0.0, %v1279
    %v1281 = vpop.f32.mrb[0].mxu0
    %1282 = vmatprep.mubr.f32.mxu0 0.0
    %1283 = vmatmul.mubr.f32.gmra.mrb[0].mxu0 %v1205
    %v1284 = vpop.f32.mrb[0].mxu0
    %v1285 = vadd.f32 0.0, %v1284
    %v1286 = vpop.f32.mrb[0].mxu0
    %1287 = vmatprep.mubr.f32.mxu0 0.0
    %1288 = vmatmul.mubr.f32.gmra.mrb[0].mxu0 %v1208
    %v1289 = vpop.f32.mrb[0].mxu0
    %v1290 = vadd.f32 0.0, %v1289
    %v1291 = vpop.f32.mrb[0].mxu0
    %1292 = vmatprep.mubr.f32.mxu0 0.0
    %1293 = vmatmul.mubr.f32.gmra.mrb[0].mxu0 %v1211
    %v1294 = vpop.f32.mrb[0].mxu0
    %v1295 = vadd.f32 0.0, %v1294
    %v1296 = vpop.f32.mrb[0].mxu0
    %1297 = vdwg.mxu0
    %1302 = vrot.lane.b32.xlu0 %v724, 8
    %v1303 = vpop.permute.xlu0 %1302
    %1304 = vrot.lane.b32.xlu0 %v729, 8
    %v1305 = vpop.permute.xlu0 %1304
    %1306 = vrot.lane.b32.xlu0 %v734, 8
    %v1307 = vpop.permute.xlu0 %1306
    %1308 = vrot.lane.b32.xlu0 %v739, 8
    %v1309 = vpop.permute.xlu0 %1308
    %1318 = vrot.lane.b32.xlu0 %v1002, 16
    %v1319 = vpop.permute.xlu0 %1318
    %1320 = vrot.lane.b32.xlu0 %v1007, 16
    %v1321 = vpop.permute.xlu0 %1320
    %1322 = vrot.lane.b32.xlu0 %v1012, 16
    %v1323 = vpop.permute.xlu0 %1322
    %1324 = vrot.lane.b32.xlu0 %v1017, 16
    %v1325 = vpop.permute.xlu0 %1324
    %1334 = vrot.lane.b32.xlu0 %v1280, 24
    %v1335 = vpop.permute.xlu0 %1334
    %1336 = vrot.lane.b32.xlu0 %v1285, 24
    %v1337 = vpop.permute.xlu0 %1336
    %1338 = vrot.lane.b32.xlu0 %v1290, 24
    %v1339 = vpop.permute.xlu0 %1338
    %1340 = vrot.lane.b32.xlu0 %v1295, 24
    %v1341 = vpop.permute.xlu0 %1340
    %v1346 = vsel %vm201, %v446, %v1303
    %v1347 = vsel %vm201, %v451, %v1305
    %v1348 = vsel %vm201, %v456, %v1307
    %v1349 = vsel %vm201, %v461, %v1309
    %vm1350 = vcmask 130048
    %v1351 = vsel %vm1350, %v1346, %v1319
    %v1352 = vsel %vm1350, %v1347, %v1321
    %v1353 = vsel %vm1350, %v1348, %v1323
    %v1354 = vsel %vm1350, %v1349, %v1325
    %vm1355 = vcmask 195584
    %v1356 = vsel %vm1355, %v1351, %v1335
    %v1357 = vsel %vm1355, %v1352, %v1337
    %v1358 = vsel %vm1355, %v1353, %v1339
    %v1359 = vsel %vm1355, %v1354, %v1341
    %v1360 = vlaneseq
    %v1361 = vshrl.u32 %v1360, 7
    %v1362 = vsub.s32 1, %v1361
    %v1363 = vrot.slane %v82, %v1362
    %1368 = vrot.lane.b32.xlu0 %v78, 32
    %v1369 = vpop.permute.xlu0 %1368
    %1370 = vrot.lane.b32.xlu0 %v79, 32
    %v1371 = vpop.permute.xlu0 %1370
    %1372 = vrot.lane.b32.xlu0 %v80, 32
    %v1373 = vpop.permute.xlu0 %1372
    %1374 = vrot.lane.b32.xlu0 %v81, 32
    %v1375 = vpop.permute.xlu0 %1374
    %v1381 = vsel %vm83, %v1356, 0
    %v1384 = vsel %vm83, %v1357, 0
    %v1387 = vsel %vm83, %v1358, 0
    %v1390 = vsel %vm83, %v1359, 0
    %1392 = vmatprep.subr.mxu0 0.0
    %1393 = vmatpush1.msra.mxu0 %v1369
    %1394 = vmatprep.subr.mxu0 0.0
    %1395 = vmatpush1.msra.mxu0 %v1371
    %1396 = vmatprep.subr.mxu0 0.0
    %1397 = vmatpush1.msra.mxu0 %v1373
    %1398 = vmatprep.subr.mxu0 0.0
    %1399 = vmatpush1.msra.mxu0 %v1375
    %1400 = vmatprep.subr.mxu0 0.0
    %1401 = vmatpush1.msra.mxu0 0.0
    %1402 = vmatprep.subr.mxu0 0.0
    %1403 = vmatpush1.msra.mxu0 0.0
    %1404 = vmatprep.subr.mxu0 0.0
    %1405 = vmatpush1.msra.mxu0 0.0
    %1406 = vmatprep.subr.mxu0 0.0
    %1407 = vmatpush1.msra.mxu0 0.0
    %1408 = vmatprep.subr.mxu0 0.0
    %1409 = vmatpush1.msra.mxu0 0.0
    %1410 = vmatprep.subr.mxu0 0.0
    %1411 = vmatpush1.msra.mxu0 0.0
    %1412 = vmatprep.subr.mxu0 0.0
    %1413 = vmatpush1.msra.mxu0 0.0
    %1414 = vmatprep.subr.mxu0 0.0
    %1415 = vmatpush1.msra.mxu0 0.0
    %1416 = vmatprep.subr.mxu0 0.0
    %1417 = vmatpush1.msra.mxu0 0.0
    %1418 = vmatprep.subr.mxu0 0.0
    %1419 = vmatpush1.msra.mxu0 0.0
    %1420 = vmatprep.subr.mxu0 0.0
    %1421 = vmatpush1.msra.mxu0 0.0
    %1422 = vmatprep.subr.mxu0 0.0
    %1423 = vmatpush1.msra.mxu0 0.0
    %1424 = vmatprep.subr.mxu0 0.0
    %1425 = vmatpush1.msra.mxu0 0.0
    %1426 = vmatprep.subr.mxu0 0.0
    %1427 = vmatpush1.msra.mxu0 0.0
    %1428 = vmatprep.subr.mxu0 0.0
    %1429 = vmatpush1.msra.mxu0 0.0
    %1430 = vmatprep.subr.mxu0 0.0
    %1431 = vmatpush1.msra.mxu0 0.0
    %1432 = vmatprep.subr.mxu0 0.0
    %1433 = vmatpush1.msra.mxu0 0.0
    %1434 = vmatprep.subr.mxu0 0.0
    %1435 = vmatpush1.msra.mxu0 0.0
    %1436 = vmatprep.subr.mxu0 0.0
    %1437 = vmatpush1.msra.mxu0 0.0
    %1438 = vmatprep.subr.mxu0 0.0
    %1439 = vmatpush1.msra.mxu0 0.0
    %1440 = vmatprep.subr.mxu0 0.0
    %1441 = vmatpush1.msra.mxu0 0.0
    %1442 = vmatprep.subr.mxu0 0.0
    %1443 = vmatpush1.msra.mxu0 0.0
    %1444 = vmatprep.subr.mxu0 0.0
    %1445 = vmatpush1.msra.mxu0 0.0
    %1446 = vmatprep.subr.mxu0 0.0
    %1447 = vmatpush1.msra.mxu0 0.0
    %1448 = vmatprep.subr.mxu0 0.0
    %1449 = vmatpush1.msra.mxu0 0.0
    %1450 = vmatprep.subr.mxu0 0.0
    %1451 = vmatpush1.msra.mxu0 0.0
    %1452 = vmatprep.subr.mxu0 0.0
    %1453 = vmatpush1.msra.mxu0 0.0
    %1454 = vmatprep.subr.mxu0 0.0
    %1455 = vmatpush1.msra.mxu0 0.0
    %1456 = vmatprep.mubr.f32.mxu0 0.0
    %1457 = vmatmul.mubr.f32.gmra.mrb[0].mxu0 %v1381
    %v1458 = vpop.f32.mrb[0].mxu0
    %v1459 = vadd.f32 %v1363, %v1458
    %v1460 = vpop.f32.mrb[0].mxu0
    %1461 = vmatprep.mubr.f32.mxu0 0.0
    %1462 = vmatmul.mubr.f32.gmra.mrb[0].mxu0 %v1384
    %v1463 = vpop.f32.mrb[0].mxu0
    %v1464 = vadd.f32 %v1363, %v1463
    %v1465 = vpop.f32.mrb[0].mxu0
    %1466 = vmatprep.mubr.f32.mxu0 0.0
    %1467 = vmatmul.mubr.f32.gmra.mrb[0].mxu0 %v1387
    %v1468 = vpop.f32.mrb[0].mxu0
    %v1469 = vadd.f32 %v1363, %v1468
    %v1470 = vpop.f32.mrb[0].mxu0
    %1471 = vmatprep.mubr.f32.mxu0 0.0
    %1472 = vmatmul.mubr.f32.gmra.mrb[0].mxu0 %v1390
    %v1473 = vpop.f32.mrb[0].mxu0
    %v1474 = vadd.f32 %v1363, %v1473
    %v1475 = vpop.f32.mrb[0].mxu0
    %1476 = vdwg.mxu0
    %v1477 = vadd.f32 %v70, %v1459
    %v1478 = vadd.f32 %v71, %v1464
    %v1479 = vadd.f32 %v72, %v1469
    %v1480 = vadd.f32 %v73, %v1474
    %v1481 = vsel %vm83, %v1477, 0.0
    %1482 = vadd.xlane.f32.xlu0 %v1481
    %v1483 = vpop.xlane.xlu0 %1482
    %v1484 = vsel %vm83, %v1478, 0.0
    %1485 = vadd.xlane.f32.xlu0 %v1484
    %v1486 = vpop.xlane.xlu0 %1485
    %v1487 = vsel %vm83, %v1479, 0.0
    %1488 = vadd.xlane.f32.xlu0 %v1487
    %v1489 = vpop.xlane.xlu0 %1488
    %v1490 = vsel %vm83, %v1480, 0.0
    %1491 = vadd.xlane.f32.xlu0 %v1490
    %v1492 = vpop.xlane.xlu0 %1491
    %v1493 = vrcp.pop 32.0
    %v1494 = vmul.f32 %v1483, %v1493
    %v1495 = vmul.f32 %v1486, %v1493
    %v1496 = vmul.f32 %v1489, %v1493
    %v1497 = vmul.f32 %v1492, %v1493
    %v1498 = vsub.f32 %v1477, %v1494
    %v1499 = vsub.f32 %v1478, %v1495
    %v1500 = vsub.f32 %v1479, %v1496
    %v1501 = vsub.f32 %v1480, %v1497
    %v1502 = vmul.f32 %v1498, %v1498
    %v1503 = vmul.f32 %v1499, %v1499
    %v1504 = vmul.f32 %v1500, %v1500
    %v1505 = vmul.f32 %v1501, %v1501
    %v1506 = vsel %vm83, %v1502, 0.0
    %1507 = vadd.xlane.f32.xlu0 %v1506
    %v1508 = vpop.xlane.xlu0 %1507
    %v1509 = vsel %vm83, %v1503, 0.0
    %1510 = vadd.xlane.f32.xlu0 %v1509
    %v1511 = vpop.xlane.xlu0 %1510
    %v1512 = vsel %vm83, %v1504, 0.0
    %1513 = vadd.xlane.f32.xlu0 %v1512
    %v1514 = vpop.xlane.xlu0 %1513
    %v1515 = vsel %vm83, %v1505, 0.0
    %1516 = vadd.xlane.f32.xlu0 %v1515
    %v1517 = vpop.xlane.xlu0 %1516
    %v1518 = vmul.f32 %v1508, %v1493
    %v1519 = vmul.f32 %v1511, %v1493
    %v1520 = vmul.f32 %v1514, %v1493
    %v1521 = vmul.f32 %v1517, %v1493
    %v1522 = vadd.f32 %v1518, 1e-05
    %v1523 = vadd.f32 %v1519, 1e-05
    %v1524 = vadd.f32 %v1520, 1e-05
    %v1525 = vadd.f32 %v1521, 1e-05
    %v1526 = vrsqrt.pop %v1522
    %v1527 = vrsqrt.pop %v1523
    %v1528 = vrsqrt.pop %v1524
    %v1529 = vrsqrt.pop %v1525
    %v1530 = vmul.f32 %v1498, %v1526
    %v1531 = vmul.f32 %v1499, %v1527
    %v1532 = vmul.f32 %v1500, %v1528
    %v1533 = vmul.f32 %v1501, %v1529
    %v1534 = vlaneseq
    %v1535 = vshrl.u32 %v1534, 7
    %v1536 = vsub.s32 4, %v1535
    %v1537 = vrot.slane %v82, %v1536
    %v1538 = vmul.f32 %v1530, %v1537
    %v1539 = vmul.f32 %v1531, %v1537
    %v1540 = vmul.f32 %v1532, %v1537
    %v1541 = vmul.f32 %v1533, %v1537
    %v1542 = vlaneseq
    %v1543 = vshrl.u32 %v1542, 7
    %v1544 = vsub.s32 5, %v1543
    %v1545 = vrot.slane %v82, %v1544
    %v1546 = vadd.f32 %v1538, %v1545
    %v1547 = vadd.f32 %v1539, %v1545
    %v1548 = vadd.f32 %v1540, %v1545
    %v1549 = vadd.f32 %v1541, %v1545
    %v1550 = vld [vmem:[%s6] sm:$0xff]
    %v1551 = vld [vmem:[%s6 + $0x8] sm:$0xff]
    %v1552 = vld [vmem:[%s6 + $0x10] sm:$0xff]
    %v1553 = vld [vmem:[%s6 + $0x18] sm:$0xff]
    %v1554 = vlaneseq
    %v1555 = vshrl.u32 %v1554, 7
    %v1556 = vsub.s32 2, %v1555
    %v1557 = vrot.slane %v82, %v1556
    %v1559 = vsel %vm83, %v1546, 0
    %v1562 = vsel %vm83, %v1547, 0
    %v1565 = vsel %vm83, %v1548, 0
    %v1568 = vsel %vm83, %v1549, 0
    %1570 = vmatprep.subr.mxu0 0.0
    %1571 = vmatpush1.msra.mxu0 %v1550
    %1572 = vmatprep.subr.mxu0 0.0
    %1573 = vmatpush1.msra.mxu0 %v1551
    %1574 = vmatprep.subr.mxu0 0.0
    %1575 = vmatpush1.msra.mxu0 %v1552
    %1576 = vmatprep.subr.mxu0 0.0
    %1577 = vmatpush1.msra.mxu0 %v1553
    %1578 = vmatprep.subr.mxu0 0.0
    %1579 = vmatpush1.msra.mxu0 0.0
    %1580 = vmatprep.subr.mxu0 0.0
    %1581 = vmatpush1.msra.mxu0 0.0
    %1582 = vmatprep.subr.mxu0 0.0
    %1583 = vmatpush1.msra.mxu0 0.0
    %1584 = vmatprep.subr.mxu0 0.0
    %1585 = vmatpush1.msra.mxu0 0.0
    %1586 = vmatprep.subr.mxu0 0.0
    %1587 = vmatpush1.msra.mxu0 0.0
    %1588 = vmatprep.subr.mxu0 0.0
    %1589 = vmatpush1.msra.mxu0 0.0
    %1590 = vmatprep.subr.mxu0 0.0
    %1591 = vmatpush1.msra.mxu0 0.0
    %1592 = vmatprep.subr.mxu0 0.0
    %1593 = vmatpush1.msra.mxu0 0.0
    %1594 = vmatprep.subr.mxu0 0.0
    %1595 = vmatpush1.msra.mxu0 0.0
    %1596 = vmatprep.subr.mxu0 0.0
    %1597 = vmatpush1.msra.mxu0 0.0
    %1598 = vmatprep.subr.mxu0 0.0
    %1599 = vmatpush1.msra.mxu0 0.0
    %1600 = vmatprep.subr.mxu0 0.0
    %1601 = vmatpush1.msra.mxu0 0.0
    %1602 = vmatprep.subr.mxu0 0.0
    %1603 = vmatpush1.msra.mxu0 0.0
    %1604 = vmatprep.subr.mxu0 0.0
    %1605 = vmatpush1.msra.mxu0 0.0
    %1606 = vmatprep.subr.mxu0 0.0
    %1607 = vmatpush1.msra.mxu0 0.0
    %1608 = vmatprep.subr.mxu0 0.0
    %1609 = vmatpush1.msra.mxu0 0.0
    %1610 = vmatprep.subr.mxu0 0.0
    %1611 = vmatpush1.msra.mxu0 0.0
    %1612 = vmatprep.subr.mxu0 0.0
    %1613 = vmatpush1.msra.mxu0 0.0
    %1614 = vmatprep.subr.mxu0 0.0
    %1615 = vmatpush1.msra.mxu0 0.0
    %1616 = vmatprep.subr.mxu0 0.0
    %1617 = vmatpush1.msra.mxu0 0.0
    %1618 = vmatprep.subr.mxu0 0.0
    %1619 = vmatpush1.msra.mxu0 0.0
    %1620 = vmatprep.subr.mxu0 0.0
    %1621 = vmatpush1.msra.mxu0 0.0
    %1622 = vmatprep.subr.mxu0 0.0
    %1623 = vmatpush1.msra.mxu0 0.0
    %1624 = vmatprep.subr.mxu0 0.0
    %1625 = vmatpush1.msra.mxu0 0.0
    %1626 = vmatprep.subr.mxu0 0.0
    %1627 = vmatpush1.msra.mxu0 0.0
    %1628 = vmatprep.subr.mxu0 0.0
    %1629 = vmatpush1.msra.mxu0 0.0
    %1630 = vmatprep.subr.mxu0 0.0
    %1631 = vmatpush1.msra.mxu0 0.0
    %1632 = vmatprep.subr.mxu0 0.0
    %1633 = vmatpush1.msra.mxu0 0.0
    %1634 = vmatprep.mubr.f32.mxu0 0.0
    %1635 = vmatmul.mubr.f32.gmra.mrb[0].mxu0 %v1559
    %v1636 = vpop.f32.mrb[0].mxu0
    %v1637 = vadd.f32 %v1557, %v1636
    %v1638 = vpop.f32.mrb[0].mxu0
    %1639 = vmatprep.mubr.f32.mxu0 0.0
    %1640 = vmatmul.mubr.f32.gmra.mrb[0].mxu0 %v1562
    %v1641 = vpop.f32.mrb[0].mxu0
    %v1642 = vadd.f32 %v1557, %v1641
    %v1643 = vpop.f32.mrb[0].mxu0
    %1644 = vmatprep.mubr.f32.mxu0 0.0
    %1645 = vmatmul.mubr.f32.gmra.mrb[0].mxu0 %v1565
    %v1646 = vpop.f32.mrb[0].mxu0
    %v1647 = vadd.f32 %v1557, %v1646
    %v1648 = vpop.f32.mrb[0].mxu0
    %1649 = vmatprep.mubr.f32.mxu0 0.0
    %1650 = vmatmul.mubr.f32.gmra.mrb[0].mxu0 %v1568
    %v1651 = vpop.f32.mrb[0].mxu0
    %v1652 = vadd.f32 %v1557, %v1651
    %v1653 = vpop.f32.mrb[0].mxu0
    %1654 = vdwg.mxu0
    %v1655 = vmax.f32 %v1637, 0.0
    %v1656 = vmax.f32 %v1642, 0.0
    %v1657 = vmax.f32 %v1647, 0.0
    %v1658 = vmax.f32 %v1652, 0.0
    %v1659 = vld [vmem:[%s7] sm:$0xff]
    %v1660 = vld [vmem:[%s7 + $0x8] sm:$0xff]
    %v1661 = vld [vmem:[%s7 + $0x10] sm:$0xff]
    %v1662 = vld [vmem:[%s7 + $0x18] sm:$0xff]
    %v1663 = vld [vmem:[%s7 + $0x20] sm:$0xff]
    %v1664 = vld [vmem:[%s7 + $0x28] sm:$0xff]
    %v1665 = vld [vmem:[%s7 + $0x30] sm:$0xff]
    %v1666 = vld [vmem:[%s7 + $0x38] sm:$0xff]
    %v1667 = vlaneseq
    %v1668 = vshrl.u32 %v1667, 7
    %v1669 = vsub.s32 3, %v1668
    %v1670 = vrot.slane %v82, %v1669
    %vm1671 = vcmask 523264
    %v1673 = vsel %vm1671, %v1655, 0
    %v1676 = vsel %vm1671, %v1656, 0
    %v1679 = vsel %vm1671, %v1657, 0
    %v1682 = vsel %vm1671, %v1658, 0
    %1684 = vmatprep.subr.mxu0 0.0
    %1685 = vmatpush1.msra.mxu0 %v1659
    %1686 = vmatprep.subr.mxu0 0.0
    %1687 = vmatpush1.msra.mxu0 %v1660
    %1688 = vmatprep.subr.mxu0 0.0
    %1689 = vmatpush1.msra.mxu0 %v1661
    %1690 = vmatprep.subr.mxu0 0.0
    %1691 = vmatpush1.msra.mxu0 %v1662
    %1692 = vmatprep.subr.mxu0 0.0
    %1693 = vmatpush1.msra.mxu0 %v1663
    %1694 = vmatprep.subr.mxu0 0.0
    %1695 = vmatpush1.msra.mxu0 %v1664
    %1696 = vmatprep.subr.mxu0 0.0
    %1697 = vmatpush1.msra.mxu0 %v1665
    %1698 = vmatprep.subr.mxu0 0.0
    %1699 = vmatpush1.msra.mxu0 %v1666
    %1700 = vmatprep.subr.mxu0 0.0
    %1701 = vmatpush1.msra.mxu0 0.0
    %1702 = vmatprep.subr.mxu0 0.0
    %1703 = vmatpush1.msra.mxu0 0.0
    %1704 = vmatprep.subr.mxu0 0.0
    %1705 = vmatpush1.msra.mxu0 0.0
    %1706 = vmatprep.subr.mxu0 0.0
    %1707 = vmatpush1.msra.mxu0 0.0
    %1708 = vmatprep.subr.mxu0 0.0
    %1709 = vmatpush1.msra.mxu0 0.0
    %1710 = vmatprep.subr.mxu0 0.0
    %1711 = vmatpush1.msra.mxu0 0.0
    %1712 = vmatprep.subr.mxu0 0.0
    %1713 = vmatpush1.msra.mxu0 0.0
    %1714 = vmatprep.subr.mxu0 0.0
    %1715 = vmatpush1.msra.mxu0 0.0
    %1716 = vmatprep.subr.mxu0 0.0
    %1717 = vmatpush1.msra.mxu0 0.0
    %1718 = vmatprep.subr.mxu0 0.0
    %1719 = vmatpush1.msra.mxu0 0.0
    %1720 = vmatprep.subr.mxu0 0.0
    %1721 = vmatpush1.msra.mxu0 0.0
    %1722 = vmatprep.subr.mxu0 0.0
    %1723 = vmatpush1.msra.mxu0 0.0
    %1724 = vmatprep.subr.mxu0 0.0
    %1725 = vmatpush1.msra.mxu0 0.0
    %1726 = vmatprep.subr.mxu0 0.0
    %1727 = vmatpush1.msra.mxu0 0.0
    %1728 = vmatprep.subr.mxu0 0.0
    %1729 = vmatpush1.msra.mxu0 0.0
    %1730 = vmatprep.subr.mxu0 0.0
    %1731 = vmatpush1.msra.mxu0 0.0
    %1732 = vmatprep.subr.mxu0 0.0
    %1733 = vmatpush1.msra.mxu0 0.0
    %1734 = vmatprep.subr.mxu0 0.0
    %1735 = vmatpush1.msra.mxu0 0.0
    %1736 = vmatprep.subr.mxu0 0.0
    %1737 = vmatpush1.msra.mxu0 0.0
    %1738 = vmatprep.subr.mxu0 0.0
    %1739 = vmatpush1.msra.mxu0 0.0
    %1740 = vmatprep.subr.mxu0 0.0
    %1741 = vmatpush1.msra.mxu0 0.0
    %1742 = vmatprep.subr.mxu0 0.0
    %1743 = vmatpush1.msra.mxu0 0.0
    %1744 = vmatprep.subr.mxu0 0.0
    %1745 = vmatpush1.msra.mxu0 0.0
    %1746 = vmatprep.subr.mxu0 0.0
    %1747 = vmatpush1.msra.mxu0 0.0
    %1748 = vmatprep.mubr.f32.mxu0 0.0
    %1749 = vmatmul.mubr.f32.gmra.mrb[0].mxu0 %v1673
    %v1750 = vpop.f32.mrb[0].mxu0
    %v1751 = vadd.f32 %v1670, %v1750
    %v1752 = vpop.f32.mrb[0].mxu0
    %1753 = vmatprep.mubr.f32.mxu0 0.0
    %1754 = vmatmul.mubr.f32.gmra.mrb[0].mxu0 %v1676
    %v1755 = vpop.f32.mrb[0].mxu0
    %v1756 = vadd.f32 %v1670, %v1755
    %v1757 = vpop.f32.mrb[0].mxu0
    %1758 = vmatprep.mubr.f32.mxu0 0.0
    %1759 = vmatmul.mubr.f32.gmra.mrb[0].mxu0 %v1679
    %v1760 = vpop.f32.mrb[0].mxu0
    %v1761 = vadd.f32 %v1670, %v1760
    %v1762 = vpop.f32.mrb[0].mxu0
    %1763 = vmatprep.mubr.f32.mxu0 0.0
    %1764 = vmatmul.mubr.f32.gmra.mrb[0].mxu0 %v1682
    %v1765 = vpop.f32.mrb[0].mxu0
    %v1766 = vadd.f32 %v1670, %v1765
    %v1767 = vpop.f32.mrb[0].mxu0
    %1768 = vdwg.mxu0
    %v1769 = vadd.f32 %v1546, %v1751
    %v1770 = vadd.f32 %v1547, %v1756
    %v1771 = vadd.f32 %v1548, %v1761
    %v1772 = vadd.f32 %v1549, %v1766
    %v1773 = vsel %vm83, %v1769, 0.0
    %1774 = vadd.xlane.f32.xlu0 %v1773
    %v1775 = vpop.xlane.xlu0 %1774
    %v1776 = vsel %vm83, %v1770, 0.0
    %1777 = vadd.xlane.f32.xlu0 %v1776
    %v1778 = vpop.xlane.xlu0 %1777
    %v1779 = vsel %vm83, %v1771, 0.0
    %1780 = vadd.xlane.f32.xlu0 %v1779
    %v1781 = vpop.xlane.xlu0 %1780
    %v1782 = vsel %vm83, %v1772, 0.0
    %1783 = vadd.xlane.f32.xlu0 %v1782
    %v1784 = vpop.xlane.xlu0 %1783
    %v1785 = vmul.f32 %v1775, %v1493
    %v1786 = vmul.f32 %v1778, %v1493
    %v1787 = vmul.f32 %v1781, %v1493
    %v1788 = vmul.f32 %v1784, %v1493
    %v1789 = vsub.f32 %v1769, %v1785
    %v1790 = vsub.f32 %v1770, %v1786
    %v1791 = vsub.f32 %v1771, %v1787
    %v1792 = vsub.f32 %v1772, %v1788
    %v1793 = vmul.f32 %v1789, %v1789
    %v1794 = vmul.f32 %v1790, %v1790
    %v1795 = vmul.f32 %v1791, %v1791
    %v1796 = vmul.f32 %v1792, %v1792
    %v1797 = vsel %vm83, %v1793, 0.0
    %1798 = vadd.xlane.f32.xlu0 %v1797
    %v1799 = vpop.xlane.xlu0 %1798
    %v1800 = vsel %vm83, %v1794, 0.0
    %1801 = vadd.xlane.f32.xlu0 %v1800
    %v1802 = vpop.xlane.xlu0 %1801
    %v1803 = vsel %vm83, %v1795, 0.0
    %1804 = vadd.xlane.f32.xlu0 %v1803
    %v1805 = vpop.xlane.xlu0 %1804
    %v1806 = vsel %vm83, %v1796, 0.0
    %1807 = vadd.xlane.f32.xlu0 %v1806
    %v1808 = vpop.xlane.xlu0 %1807
    %v1809 = vmul.f32 %v1799, %v1493
    %v1810 = vmul.f32 %v1802, %v1493
    %v1811 = vmul.f32 %v1805, %v1493
    %v1812 = vmul.f32 %v1808, %v1493
    %v1813 = vadd.f32 %v1809, 1e-05
    %v1814 = vadd.f32 %v1810, 1e-05
    %v1815 = vadd.f32 %v1811, 1e-05
    %v1816 = vadd.f32 %v1812, 1e-05
    %v1817 = vrsqrt.pop %v1813
    %v1818 = vrsqrt.pop %v1814
    %v1819 = vrsqrt.pop %v1815
    %v1820 = vrsqrt.pop %v1816
    %v1821 = vmul.f32 %v1789, %v1817
    %v1822 = vmul.f32 %v1790, %v1818
    %v1823 = vmul.f32 %v1791, %v1819
    %v1824 = vmul.f32 %v1792, %v1820
    %v1825 = vlaneseq
    %v1826 = vshrl.u32 %v1825, 7
    %v1827 = vsub.s32 6, %v1826
    %v1828 = vrot.slane %v82, %v1827
    %v1829 = vmul.f32 %v1821, %v1828
    %v1830 = vmul.f32 %v1822, %v1828
    %v1831 = vmul.f32 %v1823, %v1828
    %v1832 = vmul.f32 %v1824, %v1828
    %v1833 = vlaneseq
    %v1834 = vshrl.u32 %v1833, 7
    %v1835 = vsub.s32 7, %v1834
    %v1836 = vrot.slane %v82, %v1835
    %v1837 = vadd.f32 %v1829, %v1836
    %v1838 = vadd.f32 %v1830, %v1836
    %v1839 = vadd.f32 %v1831, %v1836
    %v1840 = vadd.f32 %v1832, %v1836
    %s1841 = scalar_lea.vmem %s5, 32
    %v1842 = vld [vmem:[%s1841] sm:$0xff]
    %v1843 = vld [vmem:[%s1841 + $0x8] sm:$0xff]
    %v1844 = vld [vmem:[%s1841 + $0x10] sm:$0xff]
    %v1845 = vld [vmem:[%s1841 + $0x18] sm:$0xff]
    %s1846 = scalar_lea.vmem %s8, 8
    %v1847 = vld [vmem:[%s1846] sm:$0xff]
    %v1849 = vsel %vm83, %v1837, 0
    %v1852 = vsel %vm83, %v1838, 0
    %v1855 = vsel %vm83, %v1839, 0
    %v1858 = vsel %vm83, %v1840, 0
    %1860 = vmatprep.subr.mxu0 0.0
    %1861 = vmatpush1.msra.mxu0 %v1842
    %1862 = vmatprep.subr.mxu0 0.0
    %1863 = vmatpush1.msra.mxu0 %v1843
    %1864 = vmatprep.subr.mxu0 0.0
    %1865 = vmatpush1.msra.mxu0 %v1844
    %1866 = vmatprep.subr.mxu0 0.0
    %1867 = vmatpush1.msra.mxu0 %v1845
    %1868 = vmatprep.subr.mxu0 0.0
    %1869 = vmatpush1.msra.mxu0 0.0
    %1870 = vmatprep.subr.mxu0 0.0
    %1871 = vmatpush1.msra.mxu0 0.0
    %1872 = vmatprep.subr.mxu0 0.0
    %1873 = vmatpush1.msra.mxu0 0.0
    %1874 = vmatprep.subr.mxu0 0.0
    %1875 = vmatpush1.msra.mxu0 0.0
    %1876 = vmatprep.subr.mxu0 0.0
    %1877 = vmatpush1.msra.mxu0 0.0
    %1878 = vmatprep.subr.mxu0 0.0
    %1879 = vmatpush1.msra.mxu0 0.0
    %1880 = vmatprep.subr.mxu0 0.0
    %1881 = vmatpush1.msra.mxu0 0.0
    %1882 = vmatprep.subr.mxu0 0.0
    %1883 = vmatpush1.msra.mxu0 0.0
    %1884 = vmatprep.subr.mxu0 0.0
    %1885 = vmatpush1.msra.mxu0 0.0
    %1886 = vmatprep.subr.mxu0 0.0
    %1887 = vmatpush1.msra.mxu0 0.0
    %1888 = vmatprep.subr.mxu0 0.0
    %1889 = vmatpush1.msra.mxu0 0.0
    %1890 = vmatprep.subr.mxu0 0.0
    %1891 = vmatpush1.msra.mxu0 0.0
    %1892 = vmatprep.subr.mxu0 0.0
    %1893 = vmatpush1.msra.mxu0 0.0
    %1894 = vmatprep.subr.mxu0 0.0
    %1895 = vmatpush1.msra.mxu0 0.0
    %1896 = vmatprep.subr.mxu0 0.0
    %1897 = vmatpush1.msra.mxu0 0.0
    %1898 = vmatprep.subr.mxu0 0.0
    %1899 = vmatpush1.msra.mxu0 0.0
    %1900 = vmatprep.subr.mxu0 0.0
    %1901 = vmatpush1.msra.mxu0 0.0
    %1902 = vmatprep.subr.mxu0 0.0
    %1903 = vmatpush1.msra.mxu0 0.0
    %1904 = vmatprep.subr.mxu0 0.0
    %1905 = vmatpush1.msra.mxu0 0.0
    %1906 = vmatprep.subr.mxu0 0.0
    %1907 = vmatpush1.msra.mxu0 0.0
    %1908 = vmatprep.subr.mxu0 0.0
    %1909 = vmatpush1.msra.mxu0 0.0
    %1910 = vmatprep.subr.mxu0 0.0
    %1911 = vmatpush1.msra.mxu0 0.0
    %1912 = vmatprep.subr.mxu0 0.0
    %1913 = vmatpush1.msra.mxu0 0.0
    %1914 = vmatprep.subr.mxu0 0.0
    %1915 = vmatpush1.msra.mxu0 0.0
    %1916 = vmatprep.subr.mxu0 0.0
    %1917 = vmatpush1.msra.mxu0 0.0
    %1918 = vmatprep.subr.mxu0 0.0
    %1919 = vmatpush1.msra.mxu0 0.0
    %1920 = vmatprep.subr.mxu0 0.0
    %1921 = vmatpush1.msra.mxu0 0.0
    %1922 = vmatprep.subr.mxu0 0.0
    %1923 = vmatpush1.msra.mxu0 0.0
    %1924 = vmatprep.mubr.f32.mxu0 0.0
    %1925 = vmatmul.mubr.f32.gmra.mrb[0].mxu0 %v1849
    %v1926 = vpop.f32.mrb[0].mxu0
    %v1927 = vadd.f32 0.0, %v1926
    %v1928 = vpop.f32.mrb[0].mxu0
    %1929 = vmatprep.mubr.f32.mxu0 0.0
    %1930 = vmatmul.mubr.f32.gmra.mrb[0].mxu0 %v1852
    %v1931 = vpop.f32.mrb[0].mxu0
    %v1932 = vadd.f32 0.0, %v1931
    %v1933 = vpop.f32.mrb[0].mxu0
    %1934 = vmatprep.mubr.f32.mxu0 0.0
    %1935 = vmatmul.mubr.f32.gmra.mrb[0].mxu0 %v1855
    %v1936 = vpop.f32.mrb[0].mxu0
    %v1937 = vadd.f32 0.0, %v1936
    %v1938 = vpop.f32.mrb[0].mxu0
    %1939 = vmatprep.mubr.f32.mxu0 0.0
    %1940 = vmatmul.mubr.f32.gmra.mrb[0].mxu0 %v1858
    %v1941 = vpop.f32.mrb[0].mxu0
    %v1942 = vadd.f32 0.0, %v1941
    %v1943 = vpop.f32.mrb[0].mxu0
    %1944 = vdwg.mxu0
    %v1945 = vlaneseq
    %v1946 = vshrl.u32 %v1945, 7
    %v1947 = vsub.s32 0, %v1946
    %v1948 = vrot.slane %v1847, %v1947
    %v1949 = vadd.f32 %v1927, %v1948
    %v1950 = vadd.f32 %v1932, %v1948
    %v1951 = vadd.f32 %v1937, %v1948
    %v1952 = vadd.f32 %v1942, %v1948
    %1957 = vrot.lane.b32.xlu0 %v1949, 96
    %v1958 = vpop.permute.xlu0 %1957
    %1959 = vrot.lane.b32.xlu0 %v1950, 96
    %v1960 = vpop.permute.xlu0 %1959
    %1961 = vrot.lane.b32.xlu0 %v1951, 96
    %v1962 = vpop.permute.xlu0 %1961
    %1963 = vrot.lane.b32.xlu0 %v1952, 96
    %v1964 = vpop.permute.xlu0 %1963
    %v1965 = vsel %vm201, %v1949, 0
    %v1967 = vsel %vm201, %v1950, 0
    %v1969 = vsel %vm201, %v1951, 0
    %v1971 = vsel %vm201, %v1952, 0
    %v1973 = vsel %vm201, %v1958, 0
    %v1975 = vsel %vm201, %v1960, 0
    %v1977 = vsel %vm201, %v1962, 0
    %v1979 = vsel %vm201, %v1964, 0
    %1981 = vmatprep.subr.mxu0 0.0
    %1982 = vmatpush1.xpose.msra.mxu0 %v1973
    %1983 = vmatprep.subr.mxu0 0.0
    %1984 = vmatpush1.xpose.msra.mxu0 %v1975
    %1985 = vmatprep.subr.mxu0 0.0
    %1986 = vmatpush1.xpose.msra.mxu0 %v1977
    %1987 = vmatprep.subr.mxu0 0.0
    %1988 = vmatpush1.xpose.msra.mxu0 %v1979
    %1989 = vmatprep.subr.mxu0 0.0
    %1990 = vmatpush1.xpose.msra.mxu0 0.0
    %1991 = vmatprep.subr.mxu0 0.0
    %1992 = vmatpush1.xpose.msra.mxu0 0.0
    %1993 = vmatprep.subr.mxu0 0.0
    %1994 = vmatpush1.xpose.msra.mxu0 0.0
    %1995 = vmatprep.subr.mxu0 0.0
    %1996 = vmatpush1.xpose.msra.mxu0 0.0
    %1997 = vmatprep.subr.mxu0 0.0
    %1998 = vmatpush1.xpose.msra.mxu0 0.0
    %1999 = vmatprep.subr.mxu0 0.0
    %2000 = vmatpush1.xpose.msra.mxu0 0.0
    %2001 = vmatprep.subr.mxu0 0.0
    %2002 = vmatpush1.xpose.msra.mxu0 0.0
    %2003 = vmatprep.subr.mxu0 0.0
    %2004 = vmatpush1.xpose.msra.mxu0 0.0
    %2005 = vmatprep.subr.mxu0 0.0
    %2006 = vmatpush1.xpose.msra.mxu0 0.0
    %2007 = vmatprep.subr.mxu0 0.0
    %2008 = vmatpush1.xpose.msra.mxu0 0.0
    %2009 = vmatprep.subr.mxu0 0.0
    %2010 = vmatpush1.xpose.msra.mxu0 0.0
    %2011 = vmatprep.subr.mxu0 0.0
    %2012 = vmatpush1.xpose.msra.mxu0 0.0
    %2013 = vmatprep.subr.mxu0 0.0
    %2014 = vmatpush1.xpose.msra.mxu0 0.0
    %2015 = vmatprep.subr.mxu0 0.0
    %2016 = vmatpush1.xpose.msra.mxu0 0.0
    %2017 = vmatprep.subr.mxu0 0.0
    %2018 = vmatpush1.xpose.msra.mxu0 0.0
    %2019 = vmatprep.subr.mxu0 0.0
    %2020 = vmatpush1.xpose.msra.mxu0 0.0
    %2021 = vmatprep.subr.mxu0 0.0
    %2022 = vmatpush1.xpose.msra.mxu0 0.0
    %2023 = vmatprep.subr.mxu0 0.0
    %2024 = vmatpush1.xpose.msra.mxu0 0.0
    %2025 = vmatprep.subr.mxu0 0.0
    %2026 = vmatpush1.xpose.msra.mxu0 0.0
    %2027 = vmatprep.subr.mxu0 0.0
    %2028 = vmatpush1.xpose.msra.mxu0 0.0
    %2029 = vmatprep.subr.mxu0 0.0
    %2030 = vmatpush1.xpose.msra.mxu0 0.0
    %2031 = vmatprep.subr.mxu0 0.0
    %2032 = vmatpush1.xpose.msra.mxu0 0.0
    %2033 = vmatprep.subr.mxu0 0.0
    %2034 = vmatpush1.xpose.msra.mxu0 0.0
    %2035 = vmatprep.subr.mxu0 0.0
    %2036 = vmatpush1.xpose.msra.mxu0 0.0
    %2037 = vmatprep.subr.mxu0 0.0
    %2038 = vmatpush1.xpose.msra.mxu0 0.0
    %2039 = vmatprep.subr.mxu0 0.0
    %2040 = vmatpush1.xpose.msra.mxu0 0.0
    %2041 = vmatprep.subr.mxu0 0.0
    %2042 = vmatpush1.xpose.msra.mxu0 0.0
    %2043 = vmatprep.subr.mxu0 0.0
    %2044 = vmatpush1.xpose.msra.mxu0 0.0
    %2045 = vmatprep.mubr.f32.mxu0 0.0
    %2046 = vmatmul.mubr.f32.gmra.mrb[0].mxu0 %v1965
    %v2047 = vpop.f32.mrb[0].mxu0
    %v2048 = vadd.f32 0.0, %v2047
    %v2049 = vpop.f32.mrb[0].mxu0
    %2050 = vmatprep.mubr.f32.mxu0 0.0
    %2051 = vmatmul.mubr.f32.gmra.mrb[0].mxu0 %v1967
    %v2052 = vpop.f32.mrb[0].mxu0
    %v2053 = vadd.f32 0.0, %v2052
    %v2054 = vpop.f32.mrb[0].mxu0
    %2055 = vmatprep.mubr.f32.mxu0 0.0
    %2056 = vmatmul.mubr.f32.gmra.mrb[0].mxu0 %v1969
    %v2057 = vpop.f32.mrb[0].mxu0
    %v2058 = vadd.f32 0.0, %v2057
    %v2059 = vpop.f32.mrb[0].mxu0
    %2060 = vmatprep.mubr.f32.mxu0 0.0
    %2061 = vmatmul.mubr.f32.gmra.mrb[0].mxu0 %v1971
    %v2062 = vpop.f32.mrb[0].mxu0
    %v2063 = vadd.f32 0.0, %v2062
    %v2064 = vpop.f32.mrb[0].mxu0
    %2065 = vdwg.mxu0
    %v2066 = vmul.f32 %v2048, 0.35355338
    %v2067 = vmul.f32 %v2053, 0.35355338
    %v2068 = vmul.f32 %v2058, 0.35355338
    %v2069 = vmul.f32 %v2063, 0.35355338
    %v2070 = vadd.f32 %v2066, %v74
    %v2071 = vadd.f32 %v2067, %v75
    %v2072 = vadd.f32 %v2068, %v76
    %v2073 = vadd.f32 %v2069, %v77
    %v2074 = vsel %vm83, %v2070, -inf
    %2075 = vmax.xlane.f32.xlu0 %v2074
    %v2076 = vpop.xlane.xlu0 %2075
    %v2077 = vsel %vm83, %v2071, -inf
    %2078 = vmax.xlane.f32.xlu0 %v2077
    %v2079 = vpop.xlane.xlu0 %2078
    %v2080 = vsel %vm83, %v2072, -inf
    %2081 = vmax.xlane.f32.xlu0 %v2080
    %v2082 = vpop.xlane.xlu0 %2081
    %v2083 = vsel %vm83, %v2073, -inf
    %2084 = vmax.xlane.f32.xlu0 %v2083
    %v2085 = vpop.xlane.xlu0 %2084
    %v2086 = vsub.f32 %v2070, %v2076
    %v2087 = vsub.f32 %v2071, %v2079
    %v2088 = vsub.f32 %v2072, %v2082
    %v2089 = vsub.f32 %v2073, %v2085
    %v2090 = vmul.f32 %v2086, 1.442695
    %v2091 = vpow.pop %v2090
    %v2092 = vmul.f32 %v2087, 1.442695
    %v2093 = vpow.pop %v2092
    %v2094 = vmul.f32 %v2088, 1.442695
    %v2095 = vpow.pop %v2094
    %v2096 = vmul.f32 %v2089, 1.442695
    %v2097 = vpow.pop %v2096
    %v2098 = vsel %vm83, %v2091, 0.0
    %2099 = vadd.xlane.f32.xlu0 %v2098
    %v2100 = vpop.xlane.xlu0 %2099
    %v2101 = vsel %vm83, %v2093, 0.0
    %2102 = vadd.xlane.f32.xlu0 %v2101
    %v2103 = vpop.xlane.xlu0 %2102
    %v2104 = vsel %vm83, %v2095, 0.0
    %2105 = vadd.xlane.f32.xlu0 %v2104
    %v2106 = vpop.xlane.xlu0 %2105
    %v2107 = vsel %vm83, %v2097, 0.0
    %2108 = vadd.xlane.f32.xlu0 %v2107
    %v2109 = vpop.xlane.xlu0 %2108
    %v2110 = vrcp.pop %v2100
    %v2111 = vrcp.pop %v2103
    %v2112 = vrcp.pop %v2106
    %v2113 = vrcp.pop %v2109
    %v2114 = vmul.f32 %v2091, %v2110
    %v2115 = vmul.f32 %v2093, %v2111
    %v2116 = vmul.f32 %v2095, %v2112
    %v2117 = vmul.f32 %v2097, %v2113
    %2118 = vrot.lane.b32.xlu0 %v1949, 64
    %v2119 = vpop.permute.xlu0 %2118
    %2120 = vrot.lane.b32.xlu0 %v1950, 64
    %v2121 = vpop.permute.xlu0 %2120
    %2122 = vrot.lane.b32.xlu0 %v1951, 64
    %v2123 = vpop.permute.xlu0 %2122
    %2124 = vrot.lane.b32.xlu0 %v1952, 64
    %v2125 = vpop.permute.xlu0 %2124
    %v2131 = vsel %vm83, %v2114, 0
    %v2134 = vsel %vm83, %v2115, 0
    %v2137 = vsel %vm83, %v2116, 0
    %v2140 = vsel %vm83, %v2117, 0
    %2142 = vmatprep.subr.mxu0 0.0
    %2143 = vmatpush1.msra.mxu0 %v2119
    %2144 = vmatprep.subr.mxu0 0.0
    %2145 = vmatpush1.msra.mxu0 %v2121
    %2146 = vmatprep.subr.mxu0 0.0
    %2147 = vmatpush1.msra.mxu0 %v2123
    %2148 = vmatprep.subr.mxu0 0.0
    %2149 = vmatpush1.msra.mxu0 %v2125
    %2150 = vmatprep.subr.mxu0 0.0
    %2151 = vmatpush1.msra.mxu0 0.0
    %2152 = vmatprep.subr.mxu0 0.0
    %2153 = vmatpush1.msra.mxu0 0.0
    %2154 = vmatprep.subr.mxu0 0.0
    %2155 = vmatpush1.msra.mxu0 0.0
    %2156 = vmatprep.subr.mxu0 0.0
    %2157 = vmatpush1.msra.mxu0 0.0
    %2158 = vmatprep.subr.mxu0 0.0
    %2159 = vmatpush1.msra.mxu0 0.0
    %2160 = vmatprep.subr.mxu0 0.0
    %2161 = vmatpush1.msra.mxu0 0.0
    %2162 = vmatprep.subr.mxu0 0.0
    %2163 = vmatpush1.msra.mxu0 0.0
    %2164 = vmatprep.subr.mxu0 0.0
    %2165 = vmatpush1.msra.mxu0 0.0
    %2166 = vmatprep.subr.mxu0 0.0
    %2167 = vmatpush1.msra.mxu0 0.0
    %2168 = vmatprep.subr.mxu0 0.0
    %2169 = vmatpush1.msra.mxu0 0.0
    %2170 = vmatprep.subr.mxu0 0.0
    %2171 = vmatpush1.msra.mxu0 0.0
    %2172 = vmatprep.subr.mxu0 0.0
    %2173 = vmatpush1.msra.mxu0 0.0
    %2174 = vmatprep.subr.mxu0 0.0
    %2175 = vmatpush1.msra.mxu0 0.0
    %2176 = vmatprep.subr.mxu0 0.0
    %2177 = vmatpush1.msra.mxu0 0.0
    %2178 = vmatprep.subr.mxu0 0.0
    %2179 = vmatpush1.msra.mxu0 0.0
    %2180 = vmatprep.subr.mxu0 0.0
    %2181 = vmatpush1.msra.mxu0 0.0
    %2182 = vmatprep.subr.mxu0 0.0
    %2183 = vmatpush1.msra.mxu0 0.0
    %2184 = vmatprep.subr.mxu0 0.0
    %2185 = vmatpush1.msra.mxu0 0.0
    %2186 = vmatprep.subr.mxu0 0.0
    %2187 = vmatpush1.msra.mxu0 0.0
    %2188 = vmatprep.subr.mxu0 0.0
    %2189 = vmatpush1.msra.mxu0 0.0
    %2190 = vmatprep.subr.mxu0 0.0
    %2191 = vmatpush1.msra.mxu0 0.0
    %2192 = vmatprep.subr.mxu0 0.0
    %2193 = vmatpush1.msra.mxu0 0.0
    %2194 = vmatprep.subr.mxu0 0.0
    %2195 = vmatpush1.msra.mxu0 0.0
    %2196 = vmatprep.subr.mxu0 0.0
    %2197 = vmatpush1.msra.mxu0 0.0
    %2198 = vmatprep.subr.mxu0 0.0
    %2199 = vmatpush1.msra.mxu0 0.0
    %2200 = vmatprep.subr.mxu0 0.0
    %2201 = vmatpush1.msra.mxu0 0.0
    %2202 = vmatprep.subr.mxu0 0.0
    %2203 = vmatpush1.msra.mxu0 0.0
    %2204 = vmatprep.subr.mxu0 0.0
    %2205 = vmatpush1.msra.mxu0 0.0
    %2206 = vmatprep.mubr.f32.mxu0 0.0
    %2207 = vmatmul.mubr.f32.gmra.mrb[0].mxu0 %v2131
    %v2208 = vpop.f32.mrb[0].mxu0
    %v2209 = vadd.f32 0.0, %v2208
    %v2210 = vpop.f32.mrb[0].mxu0
    %2211 = vmatprep.mubr.f32.mxu0 0.0
    %2212 = vmatmul.mubr.f32.gmra.mrb[0].mxu0 %v2134
    %v2213 = vpop.f32.mrb[0].mxu0
    %v2214 = vadd.f32 0.0, %v2213
    %v2215 = vpop.f32.mrb[0].mxu0
    %2216 = vmatprep.mubr.f32.mxu0 0.0
    %2217 = vmatmul.mubr.f32.gmra.mrb[0].mxu0 %v2137
    %v2218 = vpop.f32.mrb[0].mxu0
    %v2219 = vadd.f32 0.0, %v2218
    %v2220 = vpop.f32.mrb[0].mxu0
    %2221 = vmatprep.mubr.f32.mxu0 0.0
    %2222 = vmatmul.mubr.f32.gmra.mrb[0].mxu0 %v2140
    %v2223 = vpop.f32.mrb[0].mxu0
    %v2224 = vadd.f32 0.0, %v2223
    %v2225 = vpop.f32.mrb[0].mxu0
    %2226 = vdwg.mxu0
    %2227 = vrot.lane.b32.xlu0 %v1949, 120
    %v2228 = vpop.permute.xlu0 %2227
    %2229 = vrot.lane.b32.xlu0 %v1950, 120
    %v2230 = vpop.permute.xlu0 %2229
    %2231 = vrot.lane.b32.xlu0 %v1951, 120
    %v2232 = vpop.permute.xlu0 %2231
    %2233 = vrot.lane.b32.xlu0 %v1952, 120
    %v2234 = vpop.permute.xlu0 %2233
    %2235 = vrot.lane.b32.xlu0 %v1949, 88
    %v2236 = vpop.permute.xlu0 %2235
    %2237 = vrot.lane.b32.xlu0 %v1950, 88
    %v2238 = vpop.permute.xlu0 %2237
    %2239 = vrot.lane.b32.xlu0 %v1951, 88
    %v2240 = vpop.permute.xlu0 %2239
    %2241 = vrot.lane.b32.xlu0 %v1952, 88
    %v2242 = vpop.permute.xlu0 %2241
    %v2243 = vsel %vm201, %v2228, 0
    %v2245 = vsel %vm201, %v2230, 0
    %v2247 = vsel %vm201, %v2232, 0
    %v2249 = vsel %vm201, %v2234, 0
    %v2251 = vsel %vm201, %v2236, 0
    %v2253 = vsel %vm201, %v2238, 0
    %v2255 = vsel %vm201, %v2240, 0
    %v2257 = vsel %vm201, %v2242, 0
    %2259 = vmatprep.subr.mxu0 0.0
    %2260 = vmatpush1.xpose.msra.mxu0 %v2251
    %2261 = vmatprep.subr.mxu0 0.0
    %2262 = vmatpush1.xpose.msra.mxu0 %v2253
    %2263 = vmatprep.subr.mxu0 0.0
    %2264 = vmatpush1.xpose.msra.mxu0 %v2255
    %2265 = vmatprep.subr.mxu0 0.0
    %2266 = vmatpush1.xpose.msra.mxu0 %v2257
    %2267 = vmatprep.subr.mxu0 0.0
    %2268 = vmatpush1.xpose.msra.mxu0 0.0
    %2269 = vmatprep.subr.mxu0 0.0
    %2270 = vmatpush1.xpose.msra.mxu0 0.0
    %2271 = vmatprep.subr.mxu0 0.0
    %2272 = vmatpush1.xpose.msra.mxu0 0.0
    %2273 = vmatprep.subr.mxu0 0.0
    %2274 = vmatpush1.xpose.msra.mxu0 0.0
    %2275 = vmatprep.subr.mxu0 0.0
    %2276 = vmatpush1.xpose.msra.mxu0 0.0
    %2277 = vmatprep.subr.mxu0 0.0
    %2278 = vmatpush1.xpose.msra.mxu0 0.0
    %2279 = vmatprep.subr.mxu0 0.0
    %2280 = vmatpush1.xpose.msra.mxu0 0.0
    %2281 = vmatprep.subr.mxu0 0.0
    %2282 = vmatpush1.xpose.msra.mxu0 0.0
    %2283 = vmatprep.subr.mxu0 0.0
    %2284 = vmatpush1.xpose.msra.mxu0 0.0
    %2285 = vmatprep.subr.mxu0 0.0
    %2286 = vmatpush1.xpose.msra.mxu0 0.0
    %2287 = vmatprep.subr.mxu0 0.0
    %2288 = vmatpush1.xpose.msra.mxu0 0.0
    %2289 = vmatprep.subr.mxu0 0.0
    %2290 = vmatpush1.xpose.msra.mxu0 0.0
    %2291 = vmatprep.subr.mxu0 0.0
    %2292 = vmatpush1.xpose.msra.mxu0 0.0
    %2293 = vmatprep.subr.mxu0 0.0
    %2294 = vmatpush1.xpose.msra.mxu0 0.0
    %2295 = vmatprep.subr.mxu0 0.0
    %2296 = vmatpush1.xpose.msra.mxu0 0.0
    %2297 = vmatprep.subr.mxu0 0.0
    %2298 = vmatpush1.xpose.msra.mxu0 0.0
    %2299 = vmatprep.subr.mxu0 0.0
    %2300 = vmatpush1.xpose.msra.mxu0 0.0
    %2301 = vmatprep.subr.mxu0 0.0
    %2302 = vmatpush1.xpose.msra.mxu0 0.0
    %2303 = vmatprep.subr.mxu0 0.0
    %2304 = vmatpush1.xpose.msra.mxu0 0.0
    %2305 = vmatprep.subr.mxu0 0.0
    %2306 = vmatpush1.xpose.msra.mxu0 0.0
    %2307 = vmatprep.subr.mxu0 0.0
    %2308 = vmatpush1.xpose.msra.mxu0 0.0
    %2309 = vmatprep.subr.mxu0 0.0
    %2310 = vmatpush1.xpose.msra.mxu0 0.0
    %2311 = vmatprep.subr.mxu0 0.0
    %2312 = vmatpush1.xpose.msra.mxu0 0.0
    %2313 = vmatprep.subr.mxu0 0.0
    %2314 = vmatpush1.xpose.msra.mxu0 0.0
    %2315 = vmatprep.subr.mxu0 0.0
    %2316 = vmatpush1.xpose.msra.mxu0 0.0
    %2317 = vmatprep.subr.mxu0 0.0
    %2318 = vmatpush1.xpose.msra.mxu0 0.0
    %2319 = vmatprep.subr.mxu0 0.0
    %2320 = vmatpush1.xpose.msra.mxu0 0.0
    %2321 = vmatprep.subr.mxu0 0.0
    %2322 = vmatpush1.xpose.msra.mxu0 0.0
    %2323 = vmatprep.mubr.f32.mxu0 0.0
    %2324 = vmatmul.mubr.f32.gmra.mrb[0].mxu0 %v2243
    %v2325 = vpop.f32.mrb[0].mxu0
    %v2326 = vadd.f32 0.0, %v2325
    %v2327 = vpop.f32.mrb[0].mxu0
    %2328 = vmatprep.mubr.f32.mxu0 0.0
    %2329 = vmatmul.mubr.f32.gmra.mrb[0].mxu0 %v2245
    %v2330 = vpop.f32.mrb[0].mxu0
    %v2331 = vadd.f32 0.0, %v2330
    %v2332 = vpop.f32.mrb[0].mxu0
    %2333 = vmatprep.mubr.f32.mxu0 0.0
    %2334 = vmatmul.mubr.f32.gmra.mrb[0].mxu0 %v2247
    %v2335 = vpop.f32.mrb[0].mxu0
    %v2336 = vadd.f32 0.0, %v2335
    %v2337 = vpop.f32.mrb[0].mxu0
    %2338 = vmatprep.mubr.f32.mxu0 0.0
    %2339 = vmatmul.mubr.f32.gmra.mrb[0].mxu0 %v2249
    %v2340 = vpop.f32.mrb[0].mxu0
    %v2341 = vadd.f32 0.0, %v2340
    %v2342 = vpop.f32.mrb[0].mxu0
    %2343 = vdwg.mxu0
    %v2344 = vmul.f32 %v2326, 0.35355338
    %v2345 = vmul.f32 %v2331, 0.35355338
    %v2346 = vmul.f32 %v2336, 0.35355338
    %v2347 = vmul.f32 %v2341, 0.35355338
    %v2348 = vadd.f32 %v2344, %v74
    %v2349 = vadd.f32 %v2345, %v75
    %v2350 = vadd.f32 %v2346, %v76
    %v2351 = vadd.f32 %v2347, %v77
    %v2352 = vsel %vm83, %v2348, -inf
    %2353 = vmax.xlane.f32.xlu0 %v2352
    %v2354 = vpop.xlane.xlu0 %2353
    %v2355 = vsel %vm83, %v2349, -inf
    %2356 = vmax.xlane.f32.xlu0 %v2355
    %v2357 = vpop.xlane.xlu0 %2356
    %v2358 = vsel %vm83, %v2350, -inf
    %2359 = vmax.xlane.f32.xlu0 %v2358
    %v2360 = vpop.xlane.xlu0 %2359
    %v2361 = vsel %vm83, %v2351, -inf
    %2362 = vmax.xlane.f32.xlu0 %v2361
    %v2363 = vpop.xlane.xlu0 %2362
    %v2364 = vsub.f32 %v2348, %v2354
    %v2365 = vsub.f32 %v2349, %v2357
    %v2366 = vsub.f32 %v2350, %v2360
    %v2367 = vsub.f32 %v2351, %v2363
    %v2368 = vmul.f32 %v2364, 1.442695
    %v2369 = vpow.pop %v2368
    %v2370 = vmul.f32 %v2365, 1.442695
    %v2371 = vpow.pop %v2370
    %v2372 = vmul.f32 %v2366, 1.442695
    %v2373 = vpow.pop %v2372
    %v2374 = vmul.f32 %v2367, 1.442695
    %v2375 = vpow.pop %v2374
    %v2376 = vsel %vm83, %v2369, 0.0
    %2377 = vadd.xlane.f32.xlu0 %v2376
    %v2378 = vpop.xlane.xlu0 %2377
    %v2379 = vsel %vm83, %v2371, 0.0
    %2380 = vadd.xlane.f32.xlu0 %v2379
    %v2381 = vpop.xlane.xlu0 %2380
    %v2382 = vsel %vm83, %v2373, 0.0
    %2383 = vadd.xlane.f32.xlu0 %v2382
    %v2384 = vpop.xlane.xlu0 %2383
    %v2385 = vsel %vm83, %v2375, 0.0
    %2386 = vadd.xlane.f32.xlu0 %v2385
    %v2387 = vpop.xlane.xlu0 %2386
    %v2388 = vrcp.pop %v2378
    %v2389 = vrcp.pop %v2381
    %v2390 = vrcp.pop %v2384
    %v2391 = vrcp.pop %v2387
    %v2392 = vmul.f32 %v2369, %v2388
    %v2393 = vmul.f32 %v2371, %v2389
    %v2394 = vmul.f32 %v2373, %v2390
    %v2395 = vmul.f32 %v2375, %v2391
    %2396 = vrot.lane.b32.xlu0 %v1949, 56
    %v2397 = vpop.permute.xlu0 %2396
    %2398 = vrot.lane.b32.xlu0 %v1950, 56
    %v2399 = vpop.permute.xlu0 %2398
    %2400 = vrot.lane.b32.xlu0 %v1951, 56
    %v2401 = vpop.permute.xlu0 %2400
    %2402 = vrot.lane.b32.xlu0 %v1952, 56
    %v2403 = vpop.permute.xlu0 %2402
    %v2409 = vsel %vm83, %v2392, 0
    %v2412 = vsel %vm83, %v2393, 0
    %v2415 = vsel %vm83, %v2394, 0
    %v2418 = vsel %vm83, %v2395, 0
    %2420 = vmatprep.subr.mxu0 0.0
    %2421 = vmatpush1.msra.mxu0 %v2397
    %2422 = vmatprep.subr.mxu0 0.0
    %2423 = vmatpush1.msra.mxu0 %v2399
    %2424 = vmatprep.subr.mxu0 0.0
    %2425 = vmatpush1.msra.mxu0 %v2401
    %2426 = vmatprep.subr.mxu0 0.0
    %2427 = vmatpush1.msra.mxu0 %v2403
    %2428 = vmatprep.subr.mxu0 0.0
    %2429 = vmatpush1.msra.mxu0 0.0
    %2430 = vmatprep.subr.mxu0 0.0
    %2431 = vmatpush1.msra.mxu0 0.0
    %2432 = vmatprep.subr.mxu0 0.0
    %2433 = vmatpush1.msra.mxu0 0.0
    %2434 = vmatprep.subr.mxu0 0.0
    %2435 = vmatpush1.msra.mxu0 0.0
    %2436 = vmatprep.subr.mxu0 0.0
    %2437 = vmatpush1.msra.mxu0 0.0
    %2438 = vmatprep.subr.mxu0 0.0
    %2439 = vmatpush1.msra.mxu0 0.0
    %2440 = vmatprep.subr.mxu0 0.0
    %2441 = vmatpush1.msra.mxu0 0.0
    %2442 = vmatprep.subr.mxu0 0.0
    %2443 = vmatpush1.msra.mxu0 0.0
    %2444 = vmatprep.subr.mxu0 0.0
    %2445 = vmatpush1.msra.mxu0 0.0
    %2446 = vmatprep.subr.mxu0 0.0
    %2447 = vmatpush1.msra.mxu0 0.0
    %2448 = vmatprep.subr.mxu0 0.0
    %2449 = vmatpush1.msra.mxu0 0.0
    %2450 = vmatprep.subr.mxu0 0.0
    %2451 = vmatpush1.msra.mxu0 0.0
    %2452 = vmatprep.subr.mxu0 0.0
    %2453 = vmatpush1.msra.mxu0 0.0
    %2454 = vmatprep.subr.mxu0 0.0
    %2455 = vmatpush1.msra.mxu0 0.0
    %2456 = vmatprep.subr.mxu0 0.0
    %2457 = vmatpush1.msra.mxu0 0.0
    %2458 = vmatprep.subr.mxu0 0.0
    %2459 = vmatpush1.msra.mxu0 0.0
    %2460 = vmatprep.subr.mxu0 0.0
    %2461 = vmatpush1.msra.mxu0 0.0
    %2462 = vmatprep.subr.mxu0 0.0
    %2463 = vmatpush1.msra.mxu0 0.0
    %2464 = vmatprep.subr.mxu0 0.0
    %2465 = vmatpush1.msra.mxu0 0.0
    %2466 = vmatprep.subr.mxu0 0.0
    %2467 = vmatpush1.msra.mxu0 0.0
    %2468 = vmatprep.subr.mxu0 0.0
    %2469 = vmatpush1.msra.mxu0 0.0
    %2470 = vmatprep.subr.mxu0 0.0
    %2471 = vmatpush1.msra.mxu0 0.0
    %2472 = vmatprep.subr.mxu0 0.0
    %2473 = vmatpush1.msra.mxu0 0.0
    %2474 = vmatprep.subr.mxu0 0.0
    %2475 = vmatpush1.msra.mxu0 0.0
    %2476 = vmatprep.subr.mxu0 0.0
    %2477 = vmatpush1.msra.mxu0 0.0
    %2478 = vmatprep.subr.mxu0 0.0
    %2479 = vmatpush1.msra.mxu0 0.0
    %2480 = vmatprep.subr.mxu0 0.0
    %2481 = vmatpush1.msra.mxu0 0.0
    %2482 = vmatprep.subr.mxu0 0.0
    %2483 = vmatpush1.msra.mxu0 0.0
    %2484 = vmatprep.mubr.f32.mxu0 0.0
    %2485 = vmatmul.mubr.f32.gmra.mrb[0].mxu0 %v2409
    %v2486 = vpop.f32.mrb[0].mxu0
    %v2487 = vadd.f32 0.0, %v2486
    %v2488 = vpop.f32.mrb[0].mxu0
    %2489 = vmatprep.mubr.f32.mxu0 0.0
    %2490 = vmatmul.mubr.f32.gmra.mrb[0].mxu0 %v2412
    %v2491 = vpop.f32.mrb[0].mxu0
    %v2492 = vadd.f32 0.0, %v2491
    %v2493 = vpop.f32.mrb[0].mxu0
    %2494 = vmatprep.mubr.f32.mxu0 0.0
    %2495 = vmatmul.mubr.f32.gmra.mrb[0].mxu0 %v2415
    %v2496 = vpop.f32.mrb[0].mxu0
    %v2497 = vadd.f32 0.0, %v2496
    %v2498 = vpop.f32.mrb[0].mxu0
    %2499 = vmatprep.mubr.f32.mxu0 0.0
    %2500 = vmatmul.mubr.f32.gmra.mrb[0].mxu0 %v2418
    %v2501 = vpop.f32.mrb[0].mxu0
    %v2502 = vadd.f32 0.0, %v2501
    %v2503 = vpop.f32.mrb[0].mxu0
    %2504 = vdwg.mxu0
    %2505 = vrot.lane.b32.xlu0 %v1949, 112
    %v2506 = vpop.permute.xlu0 %2505
    %2507 = vrot.lane.b32.xlu0 %v1950, 112
    %v2508 = vpop.permute.xlu0 %2507
    %2509 = vrot.lane.b32.xlu0 %v1951, 112
    %v2510 = vpop.permute.xlu0 %2509
    %2511 = vrot.lane.b32.xlu0 %v1952, 112
    %v2512 = vpop.permute.xlu0 %2511
    %2513 = vrot.lane.b32.xlu0 %v1949, 80
    %v2514 = vpop.permute.xlu0 %2513
    %2515 = vrot.lane.b32.xlu0 %v1950, 80
    %v2516 = vpop.permute.xlu0 %2515
    %2517 = vrot.lane.b32.xlu0 %v1951, 80
    %v2518 = vpop.permute.xlu0 %2517
    %2519 = vrot.lane.b32.xlu0 %v1952, 80
    %v2520 = vpop.permute.xlu0 %2519
    %v2521 = vsel %vm201, %v2506, 0
    %v2523 = vsel %vm201, %v2508, 0
    %v2525 = vsel %vm201, %v2510, 0
    %v2527 = vsel %vm201, %v2512, 0
    %v2529 = vsel %vm201, %v2514, 0
    %v2531 = vsel %vm201, %v2516, 0
    %v2533 = vsel %vm201, %v2518, 0
    %v2535 = vsel %vm201, %v2520, 0
    %2537 = vmatprep.subr.mxu0 0.0
    %2538 = vmatpush1.xpose.msra.mxu0 %v2529
    %2539 = vmatprep.subr.mxu0 0.0
    %2540 = vmatpush1.xpose.msra.mxu0 %v2531
    %2541 = vmatprep.subr.mxu0 0.0
    %2542 = vmatpush1.xpose.msra.mxu0 %v2533
    %2543 = vmatprep.subr.mxu0 0.0
    %2544 = vmatpush1.xpose.msra.mxu0 %v2535
    %2545 = vmatprep.subr.mxu0 0.0
    %2546 = vmatpush1.xpose.msra.mxu0 0.0
    %2547 = vmatprep.subr.mxu0 0.0
    %2548 = vmatpush1.xpose.msra.mxu0 0.0
    %2549 = vmatprep.subr.mxu0 0.0
    %2550 = vmatpush1.xpose.msra.mxu0 0.0
    %2551 = vmatprep.subr.mxu0 0.0
    %2552 = vmatpush1.xpose.msra.mxu0 0.0
    %2553 = vmatprep.subr.mxu0 0.0
    %2554 = vmatpush1.xpose.msra.mxu0 0.0
    %2555 = vmatprep.subr.mxu0 0.0
    %2556 = vmatpush1.xpose.msra.mxu0 0.0
    %2557 = vmatprep.subr.mxu0 0.0
    %2558 = vmatpush1.xpose.msra.mxu0 0.0
    %2559 = vmatprep.subr.mxu0 0.0
    %2560 = vmatpush1.xpose.msra.mxu0 0.0
    %2561 = vmatprep.subr.mxu0 0.0
    %2562 = vmatpush1.xpose.msra.mxu0 0.0
    %2563 = vmatprep.subr.mxu0 0.0
    %2564 = vmatpush1.xpose.msra.mxu0 0.0
    %2565 = vmatprep.subr.mxu0 0.0
    %2566 = vmatpush1.xpose.msra.mxu0 0.0
    %2567 = vmatprep.subr.mxu0 0.0
    %2568 = vmatpush1.xpose.msra.mxu0 0.0
    %2569 = vmatprep.subr.mxu0 0.0
    %2570 = vmatpush1.xpose.msra.mxu0 0.0
    %2571 = vmatprep.subr.mxu0 0.0
    %2572 = vmatpush1.xpose.msra.mxu0 0.0
    %2573 = vmatprep.subr.mxu0 0.0
    %2574 = vmatpush1.xpose.msra.mxu0 0.0
    %2575 = vmatprep.subr.mxu0 0.0
    %2576 = vmatpush1.xpose.msra.mxu0 0.0
    %2577 = vmatprep.subr.mxu0 0.0
    %2578 = vmatpush1.xpose.msra.mxu0 0.0
    %2579 = vmatprep.subr.mxu0 0.0
    %2580 = vmatpush1.xpose.msra.mxu0 0.0
    %2581 = vmatprep.subr.mxu0 0.0
    %2582 = vmatpush1.xpose.msra.mxu0 0.0
    %2583 = vmatprep.subr.mxu0 0.0
    %2584 = vmatpush1.xpose.msra.mxu0 0.0
    %2585 = vmatprep.subr.mxu0 0.0
    %2586 = vmatpush1.xpose.msra.mxu0 0.0
    %2587 = vmatprep.subr.mxu0 0.0
    %2588 = vmatpush1.xpose.msra.mxu0 0.0
    %2589 = vmatprep.subr.mxu0 0.0
    %2590 = vmatpush1.xpose.msra.mxu0 0.0
    %2591 = vmatprep.subr.mxu0 0.0
    %2592 = vmatpush1.xpose.msra.mxu0 0.0
    %2593 = vmatprep.subr.mxu0 0.0
    %2594 = vmatpush1.xpose.msra.mxu0 0.0
    %2595 = vmatprep.subr.mxu0 0.0
    %2596 = vmatpush1.xpose.msra.mxu0 0.0
    %2597 = vmatprep.subr.mxu0 0.0
    %2598 = vmatpush1.xpose.msra.mxu0 0.0
    %2599 = vmatprep.subr.mxu0 0.0
    %2600 = vmatpush1.xpose.msra.mxu0 0.0
    %2601 = vmatprep.mubr.f32.mxu0 0.0
    %2602 = vmatmul.mubr.f32.gmra.mrb[0].mxu0 %v2521
    %v2603 = vpop.f32.mrb[0].mxu0
    %v2604 = vadd.f32 0.0, %v2603
    %v2605 = vpop.f32.mrb[0].mxu0
    %2606 = vmatprep.mubr.f32.mxu0 0.0
    %2607 = vmatmul.mubr.f32.gmra.mrb[0].mxu0 %v2523
    %v2608 = vpop.f32.mrb[0].mxu0
    %v2609 = vadd.f32 0.0, %v2608
    %v2610 = vpop.f32.mrb[0].mxu0
    %2611 = vmatprep.mubr.f32.mxu0 0.0
    %2612 = vmatmul.mubr.f32.gmra.mrb[0].mxu0 %v2525
    %v2613 = vpop.f32.mrb[0].mxu0
    %v2614 = vadd.f32 0.0, %v2613
    %v2615 = vpop.f32.mrb[0].mxu0
    %2616 = vmatprep.mubr.f32.mxu0 0.0
    %2617 = vmatmul.mubr.f32.gmra.mrb[0].mxu0 %v2527
    %v2618 = vpop.f32.mrb[0].mxu0
    %v2619 = vadd.f32 0.0, %v2618
    %v2620 = vpop.f32.mrb[0].mxu0
    %2621 = vdwg.mxu0
    %v2622 = vmul.f32 %v2604, 0.35355338
    %v2623 = vmul.f32 %v2609, 0.35355338
    %v2624 = vmul.f32 %v2614, 0.35355338
    %v2625 = vmul.f32 %v2619, 0.35355338
    %v2626 = vadd.f32 %v2622, %v74
    %v2627 = vadd.f32 %v2623, %v75
    %v2628 = vadd.f32 %v2624, %v76
    %v2629 = vadd.f32 %v2625, %v77
    %v2630 = vsel %vm83, %v2626, -inf
    %2631 = vmax.xlane.f32.xlu0 %v2630
    %v2632 = vpop.xlane.xlu0 %2631
    %v2633 = vsel %vm83, %v2627, -inf
    %2634 = vmax.xlane.f32.xlu0 %v2633
    %v2635 = vpop.xlane.xlu0 %2634
    %v2636 = vsel %vm83, %v2628, -inf
    %2637 = vmax.xlane.f32.xlu0 %v2636
    %v2638 = vpop.xlane.xlu0 %2637
    %v2639 = vsel %vm83, %v2629, -inf
    %2640 = vmax.xlane.f32.xlu0 %v2639
    %v2641 = vpop.xlane.xlu0 %2640
    %v2642 = vsub.f32 %v2626, %v2632
    %v2643 = vsub.f32 %v2627, %v2635
    %v2644 = vsub.f32 %v2628, %v2638
    %v2645 = vsub.f32 %v2629, %v2641
    %v2646 = vmul.f32 %v2642, 1.442695
    %v2647 = vpow.pop %v2646
    %v2648 = vmul.f32 %v2643, 1.442695
    %v2649 = vpow.pop %v2648
    %v2650 = vmul.f32 %v2644, 1.442695
    %v2651 = vpow.pop %v2650
    %v2652 = vmul.f32 %v2645, 1.442695
    %v2653 = vpow.pop %v2652
    %v2654 = vsel %vm83, %v2647, 0.0
    %2655 = vadd.xlane.f32.xlu0 %v2654
    %v2656 = vpop.xlane.xlu0 %2655
    %v2657 = vsel %vm83, %v2649, 0.0
    %2658 = vadd.xlane.f32.xlu0 %v2657
    %v2659 = vpop.xlane.xlu0 %2658
    %v2660 = vsel %vm83, %v2651, 0.0
    %2661 = vadd.xlane.f32.xlu0 %v2660
    %v2662 = vpop.xlane.xlu0 %2661
    %v2663 = vsel %vm83, %v2653, 0.0
    %2664 = vadd.xlane.f32.xlu0 %v2663
    %v2665 = vpop.xlane.xlu0 %2664
    %v2666 = vrcp.pop %v2656
    %v2667 = vrcp.pop %v2659
    %v2668 = vrcp.pop %v2662
    %v2669 = vrcp.pop %v2665
    %v2670 = vmul.f32 %v2647, %v2666
    %v2671 = vmul.f32 %v2649, %v2667
    %v2672 = vmul.f32 %v2651, %v2668
    %v2673 = vmul.f32 %v2653, %v2669
    %2674 = vrot.lane.b32.xlu0 %v1949, 48
    %v2675 = vpop.permute.xlu0 %2674
    %2676 = vrot.lane.b32.xlu0 %v1950, 48
    %v2677 = vpop.permute.xlu0 %2676
    %2678 = vrot.lane.b32.xlu0 %v1951, 48
    %v2679 = vpop.permute.xlu0 %2678
    %2680 = vrot.lane.b32.xlu0 %v1952, 48
    %v2681 = vpop.permute.xlu0 %2680
    %v2687 = vsel %vm83, %v2670, 0
    %v2690 = vsel %vm83, %v2671, 0
    %v2693 = vsel %vm83, %v2672, 0
    %v2696 = vsel %vm83, %v2673, 0
    %2698 = vmatprep.subr.mxu0 0.0
    %2699 = vmatpush1.msra.mxu0 %v2675
    %2700 = vmatprep.subr.mxu0 0.0
    %2701 = vmatpush1.msra.mxu0 %v2677
    %2702 = vmatprep.subr.mxu0 0.0
    %2703 = vmatpush1.msra.mxu0 %v2679
    %2704 = vmatprep.subr.mxu0 0.0
    %2705 = vmatpush1.msra.mxu0 %v2681
    %2706 = vmatprep.subr.mxu0 0.0
    %2707 = vmatpush1.msra.mxu0 0.0
    %2708 = vmatprep.subr.mxu0 0.0
    %2709 = vmatpush1.msra.mxu0 0.0
    %2710 = vmatprep.subr.mxu0 0.0
    %2711 = vmatpush1.msra.mxu0 0.0
    %2712 = vmatprep.subr.mxu0 0.0
    %2713 = vmatpush1.msra.mxu0 0.0
    %2714 = vmatprep.subr.mxu0 0.0
    %2715 = vmatpush1.msra.mxu0 0.0
    %2716 = vmatprep.subr.mxu0 0.0
    %2717 = vmatpush1.msra.mxu0 0.0
    %2718 = vmatprep.subr.mxu0 0.0
    %2719 = vmatpush1.msra.mxu0 0.0
    %2720 = vmatprep.subr.mxu0 0.0
    %2721 = vmatpush1.msra.mxu0 0.0
    %2722 = vmatprep.subr.mxu0 0.0
    %2723 = vmatpush1.msra.mxu0 0.0
    %2724 = vmatprep.subr.mxu0 0.0
    %2725 = vmatpush1.msra.mxu0 0.0
    %2726 = vmatprep.subr.mxu0 0.0
    %2727 = vmatpush1.msra.mxu0 0.0
    %2728 = vmatprep.subr.mxu0 0.0
    %2729 = vmatpush1.msra.mxu0 0.0
    %2730 = vmatprep.subr.mxu0 0.0
    %2731 = vmatpush1.msra.mxu0 0.0
    %2732 = vmatprep.subr.mxu0 0.0
    %2733 = vmatpush1.msra.mxu0 0.0
    %2734 = vmatprep.subr.mxu0 0.0
    %2735 = vmatpush1.msra.mxu0 0.0
    %2736 = vmatprep.subr.mxu0 0.0
    %2737 = vmatpush1.msra.mxu0 0.0
    %2738 = vmatprep.subr.mxu0 0.0
    %2739 = vmatpush1.msra.mxu0 0.0
    %2740 = vmatprep.subr.mxu0 0.0
    %2741 = vmatpush1.msra.mxu0 0.0
    %2742 = vmatprep.subr.mxu0 0.0
    %2743 = vmatpush1.msra.mxu0 0.0
    %2744 = vmatprep.subr.mxu0 0.0
    %2745 = vmatpush1.msra.mxu0 0.0
    %2746 = vmatprep.subr.mxu0 0.0
    %2747 = vmatpush1.msra.mxu0 0.0
    %2748 = vmatprep.subr.mxu0 0.0
    %2749 = vmatpush1.msra.mxu0 0.0
    %2750 = vmatprep.subr.mxu0 0.0
    %2751 = vmatpush1.msra.mxu0 0.0
    %2752 = vmatprep.subr.mxu0 0.0
    %2753 = vmatpush1.msra.mxu0 0.0
    %2754 = vmatprep.subr.mxu0 0.0
    %2755 = vmatpush1.msra.mxu0 0.0
    %2756 = vmatprep.subr.mxu0 0.0
    %2757 = vmatpush1.msra.mxu0 0.0
    %2758 = vmatprep.subr.mxu0 0.0
    %2759 = vmatpush1.msra.mxu0 0.0
    %2760 = vmatprep.subr.mxu0 0.0
    %2761 = vmatpush1.msra.mxu0 0.0
    %2762 = vmatprep.mubr.f32.mxu0 0.0
    %2763 = vmatmul.mubr.f32.gmra.mrb[0].mxu0 %v2687
    %v2764 = vpop.f32.mrb[0].mxu0
    %v2765 = vadd.f32 0.0, %v2764
    %v2766 = vpop.f32.mrb[0].mxu0
    %2767 = vmatprep.mubr.f32.mxu0 0.0
    %2768 = vmatmul.mubr.f32.gmra.mrb[0].mxu0 %v2690
    %v2769 = vpop.f32.mrb[0].mxu0
    %v2770 = vadd.f32 0.0, %v2769
    %v2771 = vpop.f32.mrb[0].mxu0
    %2772 = vmatprep.mubr.f32.mxu0 0.0
    %2773 = vmatmul.mubr.f32.gmra.mrb[0].mxu0 %v2693
    %v2774 = vpop.f32.mrb[0].mxu0
    %v2775 = vadd.f32 0.0, %v2774
    %v2776 = vpop.f32.mrb[0].mxu0
    %2777 = vmatprep.mubr.f32.mxu0 0.0
    %2778 = vmatmul.mubr.f32.gmra.mrb[0].mxu0 %v2696
    %v2779 = vpop.f32.mrb[0].mxu0
    %v2780 = vadd.f32 0.0, %v2779
    %v2781 = vpop.f32.mrb[0].mxu0
    %2782 = vdwg.mxu0
    %2783 = vrot.lane.b32.xlu0 %v1949, 104
    %v2784 = vpop.permute.xlu0 %2783
    %2785 = vrot.lane.b32.xlu0 %v1950, 104
    %v2786 = vpop.permute.xlu0 %2785
    %2787 = vrot.lane.b32.xlu0 %v1951, 104
    %v2788 = vpop.permute.xlu0 %2787
    %2789 = vrot.lane.b32.xlu0 %v1952, 104
    %v2790 = vpop.permute.xlu0 %2789
    %2791 = vrot.lane.b32.xlu0 %v1949, 72
    %v2792 = vpop.permute.xlu0 %2791
    %2793 = vrot.lane.b32.xlu0 %v1950, 72
    %v2794 = vpop.permute.xlu0 %2793
    %2795 = vrot.lane.b32.xlu0 %v1951, 72
    %v2796 = vpop.permute.xlu0 %2795
    %2797 = vrot.lane.b32.xlu0 %v1952, 72
    %v2798 = vpop.permute.xlu0 %2797
    %v2799 = vsel %vm201, %v2784, 0
    %v2801 = vsel %vm201, %v2786, 0
    %v2803 = vsel %vm201, %v2788, 0
    %v2805 = vsel %vm201, %v2790, 0
    %v2807 = vsel %vm201, %v2792, 0
    %v2809 = vsel %vm201, %v2794, 0
    %v2811 = vsel %vm201, %v2796, 0
    %v2813 = vsel %vm201, %v2798, 0
    %2815 = vmatprep.subr.mxu0 0.0
    %2816 = vmatpush1.xpose.msra.mxu0 %v2807
    %2817 = vmatprep.subr.mxu0 0.0
    %2818 = vmatpush1.xpose.msra.mxu0 %v2809
    %2819 = vmatprep.subr.mxu0 0.0
    %2820 = vmatpush1.xpose.msra.mxu0 %v2811
    %2821 = vmatprep.subr.mxu0 0.0
    %2822 = vmatpush1.xpose.msra.mxu0 %v2813
    %2823 = vmatprep.subr.mxu0 0.0
    %2824 = vmatpush1.xpose.msra.mxu0 0.0
    %2825 = vmatprep.subr.mxu0 0.0
    %2826 = vmatpush1.xpose.msra.mxu0 0.0
    %2827 = vmatprep.subr.mxu0 0.0
    %2828 = vmatpush1.xpose.msra.mxu0 0.0
    %2829 = vmatprep.subr.mxu0 0.0
    %2830 = vmatpush1.xpose.msra.mxu0 0.0
    %2831 = vmatprep.subr.mxu0 0.0
    %2832 = vmatpush1.xpose.msra.mxu0 0.0
    %2833 = vmatprep.subr.mxu0 0.0
    %2834 = vmatpush1.xpose.msra.mxu0 0.0
    %2835 = vmatprep.subr.mxu0 0.0
    %2836 = vmatpush1.xpose.msra.mxu0 0.0
    %2837 = vmatprep.subr.mxu0 0.0
    %2838 = vmatpush1.xpose.msra.mxu0 0.0
    %2839 = vmatprep.subr.mxu0 0.0
    %2840 = vmatpush1.xpose.msra.mxu0 0.0
    %2841 = vmatprep.subr.mxu0 0.0
    %2842 = vmatpush1.xpose.msra.mxu0 0.0
    %2843 = vmatprep.subr.mxu0 0.0
    %2844 = vmatpush1.xpose.msra.mxu0 0.0
    %2845 = vmatprep.subr.mxu0 0.0
    %2846 = vmatpush1.xpose.msra.mxu0 0.0
    %2847 = vmatprep.subr.mxu0 0.0
    %2848 = vmatpush1.xpose.msra.mxu0 0.0
    %2849 = vmatprep.subr.mxu0 0.0
    %2850 = vmatpush1.xpose.msra.mxu0 0.0
    %2851 = vmatprep.subr.mxu0 0.0
    %2852 = vmatpush1.xpose.msra.mxu0 0.0
    %2853 = vmatprep.subr.mxu0 0.0
    %2854 = vmatpush1.xpose.msra.mxu0 0.0
    %2855 = vmatprep.subr.mxu0 0.0
    %2856 = vmatpush1.xpose.msra.mxu0 0.0
    %2857 = vmatprep.subr.mxu0 0.0
    %2858 = vmatpush1.xpose.msra.mxu0 0.0
    %2859 = vmatprep.subr.mxu0 0.0
    %2860 = vmatpush1.xpose.msra.mxu0 0.0
    %2861 = vmatprep.subr.mxu0 0.0
    %2862 = vmatpush1.xpose.msra.mxu0 0.0
    %2863 = vmatprep.subr.mxu0 0.0
    %2864 = vmatpush1.xpose.msra.mxu0 0.0
    %2865 = vmatprep.subr.mxu0 0.0
    %2866 = vmatpush1.xpose.msra.mxu0 0.0
    %2867 = vmatprep.subr.mxu0 0.0
    %2868 = vmatpush1.xpose.msra.mxu0 0.0
    %2869 = vmatprep.subr.mxu0 0.0
    %2870 = vmatpush1.xpose.msra.mxu0 0.0
    %2871 = vmatprep.subr.mxu0 0.0
    %2872 = vmatpush1.xpose.msra.mxu0 0.0
    %2873 = vmatprep.subr.mxu0 0.0
    %2874 = vmatpush1.xpose.msra.mxu0 0.0
    %2875 = vmatprep.subr.mxu0 0.0
    %2876 = vmatpush1.xpose.msra.mxu0 0.0
    %2877 = vmatprep.subr.mxu0 0.0
    %2878 = vmatpush1.xpose.msra.mxu0 0.0
    %2879 = vmatprep.mubr.f32.mxu0 0.0
    %2880 = vmatmul.mubr.f32.gmra.mrb[0].mxu0 %v2799
    %v2881 = vpop.f32.mrb[0].mxu0
    %v2882 = vadd.f32 0.0, %v2881
    %v2883 = vpop.f32.mrb[0].mxu0
    %2884 = vmatprep.mubr.f32.mxu0 0.0
    %2885 = vmatmul.mubr.f32.gmra.mrb[0].mxu0 %v2801
    %v2886 = vpop.f32.mrb[0].mxu0
    %v2887 = vadd.f32 0.0, %v2886
    %v2888 = vpop.f32.mrb[0].mxu0
    %2889 = vmatprep.mubr.f32.mxu0 0.0
    %2890 = vmatmul.mubr.f32.gmra.mrb[0].mxu0 %v2803
    %v2891 = vpop.f32.mrb[0].mxu0
    %v2892 = vadd.f32 0.0, %v2891
    %v2893 = vpop.f32.mrb[0].mxu0
    %2894 = vmatprep.mubr.f32.mxu0 0.0
    %2895 = vmatmul.mubr.f32.gmra.mrb[0].mxu0 %v2805
    %v2896 = vpop.f32.mrb[0].mxu0
    %v2897 = vadd.f32 0.0, %v2896
    %v2898 = vpop.f32.mrb[0].mxu0
    %2899 = vdwg.mxu0
    %v2900 = vmul.f32 %v2882, 0.35355338
    %v2901 = vmul.f32 %v2887, 0.35355338
    %v2902 = vmul.f32 %v2892, 0.35355338
    %v2903 = vmul.f32 %v2897, 0.35355338
    %v2904 = vadd.f32 %v2900, %v74
    %v2905 = vadd.f32 %v2901, %v75
    %v2906 = vadd.f32 %v2902, %v76
    %v2907 = vadd.f32 %v2903, %v77
    %v2908 = vsel %vm83, %v2904, -inf
    %2909 = vmax.xlane.f32.xlu0 %v2908
    %v2910 = vpop.xlane.xlu0 %2909
    %v2911 = vsel %vm83, %v2905, -inf
    %2912 = vmax.xlane.f32.xlu0 %v2911
    %v2913 = vpop.xlane.xlu0 %2912
    %v2914 = vsel %vm83, %v2906, -inf
    %2915 = vmax.xlane.f32.xlu0 %v2914
    %v2916 = vpop.xlane.xlu0 %2915
    %v2917 = vsel %vm83, %v2907, -inf
    %2918 = vmax.xlane.f32.xlu0 %v2917
    %v2919 = vpop.xlane.xlu0 %2918
    %v2920 = vsub.f32 %v2904, %v2910
    %v2921 = vsub.f32 %v2905, %v2913
    %v2922 = vsub.f32 %v2906, %v2916
    %v2923 = vsub.f32 %v2907, %v2919
    %v2924 = vmul.f32 %v2920, 1.442695
    %v2925 = vpow.pop %v2924
    %v2926 = vmul.f32 %v2921, 1.442695
    %v2927 = vpow.pop %v2926
    %v2928 = vmul.f32 %v2922, 1.442695
    %v2929 = vpow.pop %v2928
    %v2930 = vmul.f32 %v2923, 1.442695
    %v2931 = vpow.pop %v2930
    %v2932 = vsel %vm83, %v2925, 0.0
    %2933 = vadd.xlane.f32.xlu0 %v2932
    %v2934 = vpop.xlane.xlu0 %2933
    %v2935 = vsel %vm83, %v2927, 0.0
    %2936 = vadd.xlane.f32.xlu0 %v2935
    %v2937 = vpop.xlane.xlu0 %2936
    %v2938 = vsel %vm83, %v2929, 0.0
    %2939 = vadd.xlane.f32.xlu0 %v2938
    %v2940 = vpop.xlane.xlu0 %2939
    %v2941 = vsel %vm83, %v2931, 0.0
    %2942 = vadd.xlane.f32.xlu0 %v2941
    %v2943 = vpop.xlane.xlu0 %2942
    %v2944 = vrcp.pop %v2934
    %v2945 = vrcp.pop %v2937
    %v2946 = vrcp.pop %v2940
    %v2947 = vrcp.pop %v2943
    %v2948 = vmul.f32 %v2925, %v2944
    %v2949 = vmul.f32 %v2927, %v2945
    %v2950 = vmul.f32 %v2929, %v2946
    %v2951 = vmul.f32 %v2931, %v2947
    %2952 = vrot.lane.b32.xlu0 %v1949, 40
    %v2953 = vpop.permute.xlu0 %2952
    %2954 = vrot.lane.b32.xlu0 %v1950, 40
    %v2955 = vpop.permute.xlu0 %2954
    %2956 = vrot.lane.b32.xlu0 %v1951, 40
    %v2957 = vpop.permute.xlu0 %2956
    %2958 = vrot.lane.b32.xlu0 %v1952, 40
    %v2959 = vpop.permute.xlu0 %2958
    %v2965 = vsel %vm83, %v2948, 0
    %v2968 = vsel %vm83, %v2949, 0
    %v2971 = vsel %vm83, %v2950, 0
    %v2974 = vsel %vm83, %v2951, 0
    %2976 = vmatprep.subr.mxu0 0.0
    %2977 = vmatpush1.msra.mxu0 %v2953
    %2978 = vmatprep.subr.mxu0 0.0
    %2979 = vmatpush1.msra.mxu0 %v2955
    %2980 = vmatprep.subr.mxu0 0.0
    %2981 = vmatpush1.msra.mxu0 %v2957
    %2982 = vmatprep.subr.mxu0 0.0
    %2983 = vmatpush1.msra.mxu0 %v2959
    %2984 = vmatprep.subr.mxu0 0.0
    %2985 = vmatpush1.msra.mxu0 0.0
    %2986 = vmatprep.subr.mxu0 0.0
    %2987 = vmatpush1.msra.mxu0 0.0
    %2988 = vmatprep.subr.mxu0 0.0
    %2989 = vmatpush1.msra.mxu0 0.0
    %2990 = vmatprep.subr.mxu0 0.0
    %2991 = vmatpush1.msra.mxu0 0.0
    %2992 = vmatprep.subr.mxu0 0.0
    %2993 = vmatpush1.msra.mxu0 0.0
    %2994 = vmatprep.subr.mxu0 0.0
    %2995 = vmatpush1.msra.mxu0 0.0
    %2996 = vmatprep.subr.mxu0 0.0
    %2997 = vmatpush1.msra.mxu0 0.0
    %2998 = vmatprep.subr.mxu0 0.0
    %2999 = vmatpush1.msra.mxu0 0.0
    %3000 = vmatprep.subr.mxu0 0.0
    %3001 = vmatpush1.msra.mxu0 0.0
    %3002 = vmatprep.subr.mxu0 0.0
    %3003 = vmatpush1.msra.mxu0 0.0
    %3004 = vmatprep.subr.mxu0 0.0
    %3005 = vmatpush1.msra.mxu0 0.0
    %3006 = vmatprep.subr.mxu0 0.0
    %3007 = vmatpush1.msra.mxu0 0.0
    %3008 = vmatprep.subr.mxu0 0.0
    %3009 = vmatpush1.msra.mxu0 0.0
    %3010 = vmatprep.subr.mxu0 0.0
    %3011 = vmatpush1.msra.mxu0 0.0
    %3012 = vmatprep.subr.mxu0 0.0
    %3013 = vmatpush1.msra.mxu0 0.0
    %3014 = vmatprep.subr.mxu0 0.0
    %3015 = vmatpush1.msra.mxu0 0.0
    %3016 = vmatprep.subr.mxu0 0.0
    %3017 = vmatpush1.msra.mxu0 0.0
    %3018 = vmatprep.subr.mxu0 0.0
    %3019 = vmatpush1.msra.mxu0 0.0
    %3020 = vmatprep.subr.mxu0 0.0
    %3021 = vmatpush1.msra.mxu0 0.0
    %3022 = vmatprep.subr.mxu0 0.0
    %3023 = vmatpush1.msra.mxu0 0.0
    %3024 = vmatprep.subr.mxu0 0.0
    %3025 = vmatpush1.msra.mxu0 0.0
    %3026 = vmatprep.subr.mxu0 0.0
    %3027 = vmatpush1.msra.mxu0 0.0
    %3028 = vmatprep.subr.mxu0 0.0
    %3029 = vmatpush1.msra.mxu0 0.0
    %3030 = vmatprep.subr.mxu0 0.0
    %3031 = vmatpush1.msra.mxu0 0.0
    %3032 = vmatprep.subr.mxu0 0.0
    %3033 = vmatpush1.msra.mxu0 0.0
    %3034 = vmatprep.subr.mxu0 0.0
    %3035 = vmatpush1.msra.mxu0 0.0
    %3036 = vmatprep.subr.mxu0 0.0
    %3037 = vmatpush1.msra.mxu0 0.0
    %3038 = vmatprep.subr.mxu0 0.0
    %3039 = vmatpush1.msra.mxu0 0.0
    %3040 = vmatprep.mubr.f32.mxu0 0.0
    %3041 = vmatmul.mubr.f32.gmra.mrb[0].mxu0 %v2965
    %v3042 = vpop.f32.mrb[0].mxu0
    %v3043 = vadd.f32 0.0, %v3042
    %v3044 = vpop.f32.mrb[0].mxu0
    %3045 = vmatprep.mubr.f32.mxu0 0.0
    %3046 = vmatmul.mubr.f32.gmra.mrb[0].mxu0 %v2968
    %v3047 = vpop.f32.mrb[0].mxu0
    %v3048 = vadd.f32 0.0, %v3047
    %v3049 = vpop.f32.mrb[0].mxu0
    %3050 = vmatprep.mubr.f32.mxu0 0.0
    %3051 = vmatmul.mubr.f32.gmra.mrb[0].mxu0 %v2971
    %v3052 = vpop.f32.mrb[0].mxu0
    %v3053 = vadd.f32 0.0, %v3052
    %v3054 = vpop.f32.mrb[0].mxu0
    %3055 = vmatprep.mubr.f32.mxu0 0.0
    %3056 = vmatmul.mubr.f32.gmra.mrb[0].mxu0 %v2974
    %v3057 = vpop.f32.mrb[0].mxu0
    %v3058 = vadd.f32 0.0, %v3057
    %v3059 = vpop.f32.mrb[0].mxu0
    %3060 = vdwg.mxu0
    %3065 = vrot.lane.b32.xlu0 %v2487, 8
    %v3066 = vpop.permute.xlu0 %3065
    %3067 = vrot.lane.b32.xlu0 %v2492, 8
    %v3068 = vpop.permute.xlu0 %3067
    %3069 = vrot.lane.b32.xlu0 %v2497, 8
    %v3070 = vpop.permute.xlu0 %3069
    %3071 = vrot.lane.b32.xlu0 %v2502, 8
    %v3072 = vpop.permute.xlu0 %3071
    %3081 = vrot.lane.b32.xlu0 %v2765, 16
    %v3082 = vpop.permute.xlu0 %3081
    %3083 = vrot.lane.b32.xlu0 %v2770, 16
    %v3084 = vpop.permute.xlu0 %3083
    %3085 = vrot.lane.b32.xlu0 %v2775, 16
    %v3086 = vpop.permute.xlu0 %3085
    %3087 = vrot.lane.b32.xlu0 %v2780, 16
    %v3088 = vpop.permute.xlu0 %3087
    %3097 = vrot.lane.b32.xlu0 %v3043, 24
    %v3098 = vpop.permute.xlu0 %3097
    %3099 = vrot.lane.b32.xlu0 %v3048, 24
    %v3100 = vpop.permute.xlu0 %3099
    %3101 = vrot.lane.b32.xlu0 %v3053, 24
    %v3102 = vpop.permute.xlu0 %3101
    %3103 = vrot.lane.b32.xlu0 %v3058, 24
    %v3104 = vpop.permute.xlu0 %3103
    %v3109 = vsel %vm201, %v2209, %v3066
    %v3110 = vsel %vm201, %v2214, %v3068
    %v3111 = vsel %vm201, %v2219, %v3070
    %v3112 = vsel %vm201, %v2224, %v3072
    %v3113 = vsel %vm1350, %v3109, %v3082
    %v3114 = vsel %vm1350, %v3110, %v3084
    %v3115 = vsel %vm1350, %v3111, %v3086
    %v3116 = vsel %vm1350, %v3112, %v3088
    %v3117 = vsel %vm1355, %v3113, %v3098
    %v3118 = vsel %vm1355, %v3114, %v3100
    %v3119 = vsel %vm1355, %v3115, %v3102
    %v3120 = vsel %vm1355, %v3116, %v3104
    %v3121 = vlaneseq
    %v3122 = vshrl.u32 %v3121, 7
    %v3123 = vsub.s32 1, %v3122
    %v3124 = vrot.slane %v1847, %v3123
    %3129 = vrot.lane.b32.xlu0 %v1842, 32
    %v3130 = vpop.permute.xlu0 %3129
    %3131 = vrot.lane.b32.xlu0 %v1843, 32
    %v3132 = vpop.permute.xlu0 %3131
    %3133 = vrot.lane.b32.xlu0 %v1844, 32
    %v3134 = vpop.permute.xlu0 %3133
    %3135 = vrot.lane.b32.xlu0 %v1845, 32
    %v3136 = vpop.permute.xlu0 %3135
    %v3142 = vsel %vm83, %v3117, 0
    %v3145 = vsel %vm83, %v3118, 0
    %v3148 = vsel %vm83, %v3119, 0
    %v3151 = vsel %vm83, %v3120, 0
    %3153 = vmatprep.subr.mxu0 0.0
    %3154 = vmatpush1.msra.mxu0 %v3130
    %3155 = vmatprep.subr.mxu0 0.0
    %3156 = vmatpush1.msra.mxu0 %v3132
    %3157 = vmatprep.subr.mxu0 0.0
    %3158 = vmatpush1.msra.mxu0 %v3134
    %3159 = vmatprep.subr.mxu0 0.0
    %3160 = vmatpush1.msra.mxu0 %v3136
    %3161 = vmatprep.subr.mxu0 0.0
    %3162 = vmatpush1.msra.mxu0 0.0
    %3163 = vmatprep.subr.mxu0 0.0
    %3164 = vmatpush1.msra.mxu0 0.0
    %3165 = vmatprep.subr.mxu0 0.0
    %3166 = vmatpush1.msra.mxu0 0.0
    %3167 = vmatprep.subr.mxu0 0.0
    %3168 = vmatpush1.msra.mxu0 0.0
    %3169 = vmatprep.subr.mxu0 0.0
    %3170 = vmatpush1.msra.mxu0 0.0
    %3171 = vmatprep.subr.mxu0 0.0
    %3172 = vmatpush1.msra.mxu0 0.0
    %3173 = vmatprep.subr.mxu0 0.0
    %3174 = vmatpush1.msra.mxu0 0.0
    %3175 = vmatprep.subr.mxu0 0.0
    %3176 = vmatpush1.msra.mxu0 0.0
    %3177 = vmatprep.subr.mxu0 0.0
    %3178 = vmatpush1.msra.mxu0 0.0
    %3179 = vmatprep.subr.mxu0 0.0
    %3180 = vmatpush1.msra.mxu0 0.0
    %3181 = vmatprep.subr.mxu0 0.0
    %3182 = vmatpush1.msra.mxu0 0.0
    %3183 = vmatprep.subr.mxu0 0.0
    %3184 = vmatpush1.msra.mxu0 0.0
    %3185 = vmatprep.subr.mxu0 0.0
    %3186 = vmatpush1.msra.mxu0 0.0
    %3187 = vmatprep.subr.mxu0 0.0
    %3188 = vmatpush1.msra.mxu0 0.0
    %3189 = vmatprep.subr.mxu0 0.0
    %3190 = vmatpush1.msra.mxu0 0.0
    %3191 = vmatprep.subr.mxu0 0.0
    %3192 = vmatpush1.msra.mxu0 0.0
    %3193 = vmatprep.subr.mxu0 0.0
    %3194 = vmatpush1.msra.mxu0 0.0
    %3195 = vmatprep.subr.mxu0 0.0
    %3196 = vmatpush1.msra.mxu0 0.0
    %3197 = vmatprep.subr.mxu0 0.0
    %3198 = vmatpush1.msra.mxu0 0.0
    %3199 = vmatprep.subr.mxu0 0.0
    %3200 = vmatpush1.msra.mxu0 0.0
    %3201 = vmatprep.subr.mxu0 0.0
    %3202 = vmatpush1.msra.mxu0 0.0
    %3203 = vmatprep.subr.mxu0 0.0
    %3204 = vmatpush1.msra.mxu0 0.0
    %3205 = vmatprep.subr.mxu0 0.0
    %3206 = vmatpush1.msra.mxu0 0.0
    %3207 = vmatprep.subr.mxu0 0.0
    %3208 = vmatpush1.msra.mxu0 0.0
    %3209 = vmatprep.subr.mxu0 0.0
    %3210 = vmatpush1.msra.mxu0 0.0
    %3211 = vmatprep.subr.mxu0 0.0
    %3212 = vmatpush1.msra.mxu0 0.0
    %3213 = vmatprep.subr.mxu0 0.0
    %3214 = vmatpush1.msra.mxu0 0.0
    %3215 = vmatprep.subr.mxu0 0.0
    %3216 = vmatpush1.msra.mxu0 0.0
    %3217 = vmatprep.mubr.f32.mxu0 0.0
    %3218 = vmatmul.mubr.f32.gmra.mrb[0].mxu0 %v3142
    %v3219 = vpop.f32.mrb[0].mxu0
    %v3220 = vadd.f32 %v3124, %v3219
    %v3221 = vpop.f32.mrb[0].mxu0
    %3222 = vmatprep.mubr.f32.mxu0 0.0
    %3223 = vmatmul.mubr.f32.gmra.mrb[0].mxu0 %v3145
    %v3224 = vpop.f32.mrb[0].mxu0
    %v3225 = vadd.f32 %v3124, %v3224
    %v3226 = vpop.f32.mrb[0].mxu0
    %3227 = vmatprep.mubr.f32.mxu0 0.0
    %3228 = vmatmul.mubr.f32.gmra.mrb[0].mxu0 %v3148
    %v3229 = vpop.f32.mrb[0].mxu0
    %v3230 = vadd.f32 %v3124, %v3229
    %v3231 = vpop.f32.mrb[0].mxu0
    %3232 = vmatprep.mubr.f32.mxu0 0.0
    %3233 = vmatmul.mubr.f32.gmra.mrb[0].mxu0 %v3151
    %v3234 = vpop.f32.mrb[0].mxu0
    %v3235 = vadd.f32 %v3124, %v3234
    %v3236 = vpop.f32.mrb[0].mxu0
    %3237 = vdwg.mxu0
    %v3238 = vadd.f32 %v1837, %v3220
    %v3239 = vadd.f32 %v1838, %v3225
    %v3240 = vadd.f32 %v1839, %v3230
    %v3241 = vadd.f32 %v1840, %v3235
    %v3242 = vsel %vm83, %v3238, 0.0
    %3243 = vadd.xlane.f32.xlu0 %v3242
    %v3244 = vpop.xlane.xlu0 %3243
    %v3245 = vsel %vm83, %v3239, 0.0
    %3246 = vadd.xlane.f32.xlu0 %v3245
    %v3247 = vpop.xlane.xlu0 %3246
    %v3248 = vsel %vm83, %v3240, 0.0
    %3249 = vadd.xlane.f32.xlu0 %v3248
    %v3250 = vpop.xlane.xlu0 %3249
    %v3251 = vsel %vm83, %v3241, 0.0
    %3252 = vadd.xlane.f32.xlu0 %v3251
    %v3253 = vpop.xlane.xlu0 %3252
    %v3254 = vmul.f32 %v3244, %v1493
    %v3255 = vmul.f32 %v3247, %v1493
    %v3256 = vmul.f32 %v3250, %v1493
    %v3257 = vmul.f32 %v3253, %v1493
    %v3258 = vsub.f32 %v3238, %v3254
    %v3259 = vsub.f32 %v3239, %v3255
    %v3260 = vsub.f32 %v3240, %v3256
    %v3261 = vsub.f32 %v3241, %v3257
    %v3262 = vmul.f32 %v3258, %v3258
    %v3263 = vmul.f32 %v3259, %v3259
    %v3264 = vmul.f32 %v3260, %v3260
    %v3265 = vmul.f32 %v3261, %v3261
    %v3266 = vsel %vm83, %v3262, 0.0
    %3267 = vadd.xlane.f32.xlu0 %v3266
    %v3268 = vpop.xlane.xlu0 %3267
    %v3269 = vsel %vm83, %v3263, 0.0
    %3270 = vadd.xlane.f32.xlu0 %v3269
    %v3271 = vpop.xlane.xlu0 %3270
    %v3272 = vsel %vm83, %v3264, 0.0
    %3273 = vadd.xlane.f32.xlu0 %v3272
    %v3274 = vpop.xlane.xlu0 %3273
    %v3275 = vsel %vm83, %v3265, 0.0
    %3276 = vadd.xlane.f32.xlu0 %v3275
    %v3277 = vpop.xlane.xlu0 %3276
    %v3278 = vmul.f32 %v3268, %v1493
    %v3279 = vmul.f32 %v3271, %v1493
    %v3280 = vmul.f32 %v3274, %v1493
    %v3281 = vmul.f32 %v3277, %v1493
    %v3282 = vadd.f32 %v3278, 1e-05
    %v3283 = vadd.f32 %v3279, 1e-05
    %v3284 = vadd.f32 %v3280, 1e-05
    %v3285 = vadd.f32 %v3281, 1e-05
    %v3286 = vrsqrt.pop %v3282
    %v3287 = vrsqrt.pop %v3283
    %v3288 = vrsqrt.pop %v3284
    %v3289 = vrsqrt.pop %v3285
    %v3290 = vmul.f32 %v3258, %v3286
    %v3291 = vmul.f32 %v3259, %v3287
    %v3292 = vmul.f32 %v3260, %v3288
    %v3293 = vmul.f32 %v3261, %v3289
    %v3294 = vlaneseq
    %v3295 = vshrl.u32 %v3294, 7
    %v3296 = vsub.s32 4, %v3295
    %v3297 = vrot.slane %v1847, %v3296
    %v3298 = vmul.f32 %v3290, %v3297
    %v3299 = vmul.f32 %v3291, %v3297
    %v3300 = vmul.f32 %v3292, %v3297
    %v3301 = vmul.f32 %v3293, %v3297
    %v3302 = vlaneseq
    %v3303 = vshrl.u32 %v3302, 7
    %v3304 = vsub.s32 5, %v3303
    %v3305 = vrot.slane %v1847, %v3304
    %v3306 = vadd.f32 %v3298, %v3305
    %v3307 = vadd.f32 %v3299, %v3305
    %v3308 = vadd.f32 %v3300, %v3305
    %v3309 = vadd.f32 %v3301, %v3305
    %s3310 = scalar_lea.vmem %s6, 32
    %v3311 = vld [vmem:[%s3310] sm:$0xff]
    %v3312 = vld [vmem:[%s3310 + $0x8] sm:$0xff]
    %v3313 = vld [vmem:[%s3310 + $0x10] sm:$0xff]
    %v3314 = vld [vmem:[%s3310 + $0x18] sm:$0xff]
    %v3315 = vlaneseq
    %v3316 = vshrl.u32 %v3315, 7
    %v3317 = vsub.s32 2, %v3316
    %v3318 = vrot.slane %v1847, %v3317
    %v3320 = vsel %vm83, %v3306, 0
    %v3323 = vsel %vm83, %v3307, 0
    %v3326 = vsel %vm83, %v3308, 0
    %v3329 = vsel %vm83, %v3309, 0
    %3331 = vmatprep.subr.mxu0 0.0
    %3332 = vmatpush1.msra.mxu0 %v3311
    %3333 = vmatprep.subr.mxu0 0.0
    %3334 = vmatpush1.msra.mxu0 %v3312
    %3335 = vmatprep.subr.mxu0 0.0
    %3336 = vmatpush1.msra.mxu0 %v3313
    %3337 = vmatprep.subr.mxu0 0.0
    %3338 = vmatpush1.msra.mxu0 %v3314
    %3339 = vmatprep.subr.mxu0 0.0
    %3340 = vmatpush1.msra.mxu0 0.0
    %3341 = vmatprep.subr.mxu0 0.0
    %3342 = vmatpush1.msra.mxu0 0.0
    %3343 = vmatprep.subr.mxu0 0.0
    %3344 = vmatpush1.msra.mxu0 0.0
    %3345 = vmatprep.subr.mxu0 0.0
    %3346 = vmatpush1.msra.mxu0 0.0
    %3347 = vmatprep.subr.mxu0 0.0
    %3348 = vmatpush1.msra.mxu0 0.0
    %3349 = vmatprep.subr.mxu0 0.0
    %3350 = vmatpush1.msra.mxu0 0.0
    %3351 = vmatprep.subr.mxu0 0.0
    %3352 = vmatpush1.msra.mxu0 0.0
    %3353 = vmatprep.subr.mxu0 0.0
    %3354 = vmatpush1.msra.mxu0 0.0
    %3355 = vmatprep.subr.mxu0 0.0
    %3356 = vmatpush1.msra.mxu0 0.0
    %3357 = vmatprep.subr.mxu0 0.0
    %3358 = vmatpush1.msra.mxu0 0.0
    %3359 = vmatprep.subr.mxu0 0.0
    %3360 = vmatpush1.msra.mxu0 0.0
    %3361 = vmatprep.subr.mxu0 0.0
    %3362 = vmatpush1.msra.mxu0 0.0
    %3363 = vmatprep.subr.mxu0 0.0
    %3364 = vmatpush1.msra.mxu0 0.0
    %3365 = vmatprep.subr.mxu0 0.0
    %3366 = vmatpush1.msra.mxu0 0.0
    %3367 = vmatprep.subr.mxu0 0.0
    %3368 = vmatpush1.msra.mxu0 0.0
    %3369 = vmatprep.subr.mxu0 0.0
    %3370 = vmatpush1.msra.mxu0 0.0
    %3371 = vmatprep.subr.mxu0 0.0
    %3372 = vmatpush1.msra.mxu0 0.0
    %3373 = vmatprep.subr.mxu0 0.0
    %3374 = vmatpush1.msra.mxu0 0.0
    %3375 = vmatprep.subr.mxu0 0.0
    %3376 = vmatpush1.msra.mxu0 0.0
    %3377 = vmatprep.subr.mxu0 0.0
    %3378 = vmatpush1.msra.mxu0 0.0
    %3379 = vmatprep.subr.mxu0 0.0
    %3380 = vmatpush1.msra.mxu0 0.0
    %3381 = vmatprep.subr.mxu0 0.0
    %3382 = vmatpush1.msra.mxu0 0.0
    %3383 = vmatprep.subr.mxu0 0.0
    %3384 = vmatpush1.msra.mxu0 0.0
    %3385 = vmatprep.subr.mxu0 0.0
    %3386 = vmatpush1.msra.mxu0 0.0
    %3387 = vmatprep.subr.mxu0 0.0
    %3388 = vmatpush1.msra.mxu0 0.0
    %3389 = vmatprep.subr.mxu0 0.0
    %3390 = vmatpush1.msra.mxu0 0.0
    %3391 = vmatprep.subr.mxu0 0.0
    %3392 = vmatpush1.msra.mxu0 0.0
    %3393 = vmatprep.subr.mxu0 0.0
    %3394 = vmatpush1.msra.mxu0 0.0
    %3395 = vmatprep.mubr.f32.mxu0 0.0
    %3396 = vmatmul.mubr.f32.gmra.mrb[0].mxu0 %v3320
    %v3397 = vpop.f32.mrb[0].mxu0
    %v3398 = vadd.f32 %v3318, %v3397
    %v3399 = vpop.f32.mrb[0].mxu0
    %3400 = vmatprep.mubr.f32.mxu0 0.0
    %3401 = vmatmul.mubr.f32.gmra.mrb[0].mxu0 %v3323
    %v3402 = vpop.f32.mrb[0].mxu0
    %v3403 = vadd.f32 %v3318, %v3402
    %v3404 = vpop.f32.mrb[0].mxu0
    %3405 = vmatprep.mubr.f32.mxu0 0.0
    %3406 = vmatmul.mubr.f32.gmra.mrb[0].mxu0 %v3326
    %v3407 = vpop.f32.mrb[0].mxu0
    %v3408 = vadd.f32 %v3318, %v3407
    %v3409 = vpop.f32.mrb[0].mxu0
    %3410 = vmatprep.mubr.f32.mxu0 0.0
    %3411 = vmatmul.mubr.f32.gmra.mrb[0].mxu0 %v3329
    %v3412 = vpop.f32.mrb[0].mxu0
    %v3413 = vadd.f32 %v3318, %v3412
    %v3414 = vpop.f32.mrb[0].mxu0
    %3415 = vdwg.mxu0
    %v3416 = vmax.f32 %v3398, 0.0
    %v3417 = vmax.f32 %v3403, 0.0
    %v3418 = vmax.f32 %v3408, 0.0
    %v3419 = vmax.f32 %v3413, 0.0
    %s3420 = scalar_lea.vmem %s7, 64
    %v3421 = vld [vmem:[%s3420] sm:$0xff]
    %v3422 = vld [vmem:[%s3420 + $0x8] sm:$0xff]
    %v3423 = vld [vmem:[%s3420 + $0x10] sm:$0xff]
    %v3424 = vld [vmem:[%s3420 + $0x18] sm:$0xff]
    %v3425 = vld [vmem:[%s3420 + $0x20] sm:$0xff]
    %v3426 = vld [vmem:[%s3420 + $0x28] sm:$0xff]
    %v3427 = vld [vmem:[%s3420 + $0x30] sm:$0xff]
    %v3428 = vld [vmem:[%s3420 + $0x38] sm:$0xff]
    %v3429 = vlaneseq
    %v3430 = vshrl.u32 %v3429, 7
    %v3431 = vsub.s32 3, %v3430
    %v3432 = vrot.slane %v1847, %v3431
    %v3434 = vsel %vm1671, %v3416, 0
    %v3437 = vsel %vm1671, %v3417, 0
    %v3440 = vsel %vm1671, %v3418, 0
    %v3443 = vsel %vm1671, %v3419, 0
    %3445 = vmatprep.subr.mxu0 0.0
    %3446 = vmatpush1.msra.mxu0 %v3421
    %3447 = vmatprep.subr.mxu0 0.0
    %3448 = vmatpush1.msra.mxu0 %v3422
    %3449 = vmatprep.subr.mxu0 0.0
    %3450 = vmatpush1.msra.mxu0 %v3423
    %3451 = vmatprep.subr.mxu0 0.0
    %3452 = vmatpush1.msra.mxu0 %v3424
    %3453 = vmatprep.subr.mxu0 0.0
    %3454 = vmatpush1.msra.mxu0 %v3425
    %3455 = vmatprep.subr.mxu0 0.0
    %3456 = vmatpush1.msra.mxu0 %v3426
    %3457 = vmatprep.subr.mxu0 0.0
    %3458 = vmatpush1.msra.mxu0 %v3427
    %3459 = vmatprep.subr.mxu0 0.0
    %3460 = vmatpush1.msra.mxu0 %v3428
    %3461 = vmatprep.subr.mxu0 0.0
    %3462 = vmatpush1.msra.mxu0 0.0
    %3463 = vmatprep.subr.mxu0 0.0
    %3464 = vmatpush1.msra.mxu0 0.0
    %3465 = vmatprep.subr.mxu0 0.0
    %3466 = vmatpush1.msra.mxu0 0.0
    %3467 = vmatprep.subr.mxu0 0.0
    %3468 = vmatpush1.msra.mxu0 0.0
    %3469 = vmatprep.subr.mxu0 0.0
    %3470 = vmatpush1.msra.mxu0 0.0
    %3471 = vmatprep.subr.mxu0 0.0
    %3472 = vmatpush1.msra.mxu0 0.0
    %3473 = vmatprep.subr.mxu0 0.0
    %3474 = vmatpush1.msra.mxu0 0.0
    %3475 = vmatprep.subr.mxu0 0.0
    %3476 = vmatpush1.msra.mxu0 0.0
    %3477 = vmatprep.subr.mxu0 0.0
    %3478 = vmatpush1.msra.mxu0 0.0
    %3479 = vmatprep.subr.mxu0 0.0
    %3480 = vmatpush1.msra.mxu0 0.0
    %3481 = vmatprep.subr.mxu0 0.0
    %3482 = vmatpush1.msra.mxu0 0.0
    %3483 = vmatprep.subr.mxu0 0.0
    %3484 = vmatpush1.msra.mxu0 0.0
    %3485 = vmatprep.subr.mxu0 0.0
    %3486 = vmatpush1.msra.mxu0 0.0
    %3487 = vmatprep.subr.mxu0 0.0
    %3488 = vmatpush1.msra.mxu0 0.0
    %3489 = vmatprep.subr.mxu0 0.0
    %3490 = vmatpush1.msra.mxu0 0.0
    %3491 = vmatprep.subr.mxu0 0.0
    %3492 = vmatpush1.msra.mxu0 0.0
    %3493 = vmatprep.subr.mxu0 0.0
    %3494 = vmatpush1.msra.mxu0 0.0
    %3495 = vmatprep.subr.mxu0 0.0
    %3496 = vmatpush1.msra.mxu0 0.0
    %3497 = vmatprep.subr.mxu0 0.0
    %3498 = vmatpush1.msra.mxu0 0.0
    %3499 = vmatprep.subr.mxu0 0.0
    %3500 = vmatpush1.msra.mxu0 0.0
    %3501 = vmatprep.subr.mxu0 0.0
    %3502 = vmatpush1.msra.mxu0 0.0
    %3503 = vmatprep.subr.mxu0 0.0
    %3504 = vmatpush1.msra.mxu0 0.0
    %3505 = vmatprep.subr.mxu0 0.0
    %3506 = vmatpush1.msra.mxu0 0.0
    %3507 = vmatprep.subr.mxu0 0.0
    %3508 = vmatpush1.msra.mxu0 0.0
    %3509 = vmatprep.mubr.f32.mxu0 0.0
    %3510 = vmatmul.mubr.f32.gmra.mrb[0].mxu0 %v3434
    %v3511 = vpop.f32.mrb[0].mxu0
    %v3512 = vpop.f32.mrb[0].mxu0
    %3513 = vmatprep.mubr.f32.mxu0 0.0
    %3514 = vmatmul.mubr.f32.gmra.mrb[0].mxu0 %v3437
    %v3515 = vpop.f32.mrb[0].mxu0
    %v3516 = vadd.f32 %v3432, %v3515
    %v3517 = vpop.f32.mrb[0].mxu0
    %3518 = vmatprep.mubr.f32.mxu0 0.0
    %3519 = vmatmul.mubr.f32.gmra.mrb[0].mxu0 %v3440
    %v3520 = vpop.f32.mrb[0].mxu0
    %v3521 = vpop.f32.mrb[0].mxu0
    %3522 = vmatprep.mubr.f32.mxu0 0.0
    %3523 = vmatmul.mubr.f32.gmra.mrb[0].mxu0 %v3443
    %v3524 = vpop.f32.mrb[0].mxu0
    %v3525 = vadd.f32 %v3432, %v3524
    %v3526 = vpop.f32.mrb[0].mxu0
    %3527 = vdwg.mxu0
    %v3528 = vadd.f32 %v3307, %v3516
    %v3529 = vadd.f32 %v3309, %v3525
    %v3530 = vsel %vm83, %v3528, 0.0
    %3531 = vadd.xlane.f32.xlu0 %v3530
    %v3532 = vpop.xlane.xlu0 %3531
    %v3533 = vsel %vm83, %v3529, 0.0
    %3534 = vadd.xlane.f32.xlu0 %v3533
    %v3535 = vpop.xlane.xlu0 %3534
    %v3536 = vmul.f32 %v3532, %v1493
    %v3537 = vmul.f32 %v3535, %v1493
    %v3538 = vsub.f32 %v3528, %v3536
    %v3539 = vsub.f32 %v3529, %v3537
    %v3540 = vmul.f32 %v3538, %v3538
    %v3541 = vmul.f32 %v3539, %v3539
    %v3542 = vsel %vm83, %v3540, 0.0
    %3543 = vadd.xlane.f32.xlu0 %v3542
    %v3544 = vpop.xlane.xlu0 %3543
    %v3545 = vsel %vm83, %v3541, 0.0
    %3546 = vadd.xlane.f32.xlu0 %v3545
    %v3547 = vpop.xlane.xlu0 %3546
    %v3548 = vmul.f32 %v3544, %v1493
    %v3549 = vmul.f32 %v3547, %v1493
    %v3550 = vadd.f32 %v3548, 1e-05
    %v3551 = vadd.f32 %v3549, 1e-05
    %v3552 = vrsqrt.pop %v3550
    %v3553 = vrsqrt.pop %v3551
    %v3554 = vmul.f32 %v3538, %v3552
    %v3555 = vmul.f32 %v3539, %v3553
    %v3556 = vlaneseq
    %v3557 = vshrl.u32 %v3556, 7
    %v3558 = vsub.s32 6, %v3557
    %v3559 = vrot.slane %v1847, %v3558
    %v3560 = vmul.f32 %v3554, %v3559
    %v3561 = vmul.f32 %v3555, %v3559
    %v3562 = vlaneseq
    %v3563 = vshrl.u32 %v3562, 7
    %v3564 = vsub.s32 7, %v3563
    %v3565 = vrot.slane %v1847, %v3564
    %v3566 = vadd.f32 %v3560, %v3565
    %v3567 = vadd.f32 %v3561, %v3565
    %v3569 = vrot.slane %v3566, 7
    %v3572 = vrot.slane %v3567, 6
    %vm3574 = vcmask 1040384
    %v3575 = vsel %vm3574, %v3569, %v3572
    %v3576 = vlaneseq
    %v3577 = vshrl.u32 %v3576, 7
    %v3578 = vsub.s32 2, %v3577
    %v3579 = vrot.slane %v33, %v3578
    %v3580 = vmul.f32 %v3575, %v3579
    %vm3581 = vcmask 254976
    %v3582 = vsel %vm3581, %v3580, 0.0
    %3583 = vadd.xlane.f32.xlu0 %v3582
    %v3584 = vpop.xlane.xlu0 %3583
    %v3585 = vlaneseq
    %v3586 = vshrl.u32 %v3585, 7
    %v3587 = vsub.s32 3, %v3586
    %v3588 = vrot.slane %v33, %v3587
    %v3589 = vadd.f32 %v3584, %v3588
    %v3590 = vld [vmem:[%s1] sm:$0x3]
    %3592 = vrot.lane.b32.xlu0 %v3590, 8
    %v3593 = vpop.permute.xlu0 %3592
    %v3595 = vsub.f32 %v3590, %v3593
    %v3596 = vmul.f32 %v3595, 0.125
    %v3597 = vlaneseq
    %v3598 = vand.u32 %v3597, 127
    %v3599 = vadd.s32 %v3598, 1
    %v3600 = vcvt.s32.f32 %v3599
    %3602 = vset.pattern.permute.xlu0 15
    %3603 = vperm.xlu0 %3602, %v3596
    %v3604 = vpop.permute.xlu0 %3603
    %v3606 = vmul.f32 %v3604, %v3600
    %3607 = vset.pattern.permute.xlu0 15
    %3608 = vperm.xlu0 %3607, %v3590
    %v3609 = vpop.permute.xlu0 %3608
    %v3611 = vadd.f32 %v3609, %v3606
    %v3612 = vld [vmem:[%s2] sm:$0x3]
    %3614 = vrot.lane.b32.xlu0 %v3588, 127
    %v3615 = vpop.permute.xlu0 %3614
    %v3617 = vmul.f32 %v3589, %v3615
    %v3619 = vrot.slane %v33, 3
    %3620 = vrot.lane.b32.xlu0 %v3619, 126
    %v3621 = vpop.permute.xlu0 %3620
    %s3622 = vtos %v3621
    %v3623 = vstv %s3622
    %v3625 = vmul.f32 %v3611, %v3623
    %3627 = vset.pattern.permute.xlu0 0
    %3628 = vperm.xlu0 %3627, %v3617
    %v3629 = vpop.permute.xlu0 %3628
    %v3631 = vadd.f32 %v3629, %v3625
    %3632 = vrot.lane.b32.xlu0 %v3619, 125
    %v3633 = vpop.permute.xlu0 %3632
    %s3634 = vtos %v3633
    %v3635 = vstv %s3634
    %v3637 = vmul.f32 %v3612, %v3635
    %v3638 = vadd.f32 %v3631, %v3637
    %3639 = vrot.lane.b32.xlu0 %v3619, 124
    %v3640 = vpop.permute.xlu0 %3639
    %s3641 = vtos %v3640
    %v3642 = vstv %s3641
    %v3644 = vadd.f32 %v3638, %v3642
    %vm3645 = vcmask 58368
    %3646 = vst.msk [vmem:[#allocation2] sm:$0x3] %vm3645, %v3644
    // Predicated region
    $region38: #{run_model.1} parent=1 // pred_check
      _
    $region39: #{run_model.1} parent=1 // pred_check_branch
      %3648 = sbr.rel (0) target = $region41
    $region40: #{run_model.1} parent=1 // pred_region
      %s3650 = ssub.s32 32, 32
      %3651 = vsyncadd [#allocation3], %s3650
      %s3653 = sshll.u32 [#allocation2], 4
      %s3654 = int_to_ptr.vmem [resolvable:$true] %s3653
      %3656 = dma.vmem_to_hbm [thread:$0]  %s3654, 32, %s9, [#allocation3]
    $region41: #{run_model.1} parent=1 // pred_fallthru
      _
    // Predicated region
    $region42: #{run_model.1} parent=1 // pred_check
      _
    $region43: #{run_model.1} parent=1 // pred_check_branch
      %3658 = sbr.rel (0) target = $region45
    $region44: #{run_model.1} parent=1 // pred_region
      %3659 = dma.done [#allocation3], 32
    $region45: #{run_model.1} parent=1 // pred_fallthru
      _
    %3660 = vsyncpa [#allocation3], 1

</llo_original>
